<compile_context>
chip_gen: v7x
topology: tpu7x:2x2x1
jax: 0.10.0
libtpu: 0.0.40
codegen_flags: <defaults>
</compile_context>

<pallas_src>
import math

import jax
import jax.numpy as jnp
from jax.experimental import pallas as pl
from jax.experimental.pallas import tpu as pltpu

# ---- L0 / hard-concrete hyperparameters (module defaults) -------------------
BETA = 2.0 / 3.0
GAMMA = -0.1
ZETA = 1.1
EPSILON = 1e-6
DROPRATE_INIT = 0.5
INIT_STDDEV = 0.1

# ---- chosen primitive-function set ------------------------------------------
N_SINGLE = 4                   # identity, square, sin, sigmoid
N_DOUBLE = 1                   # multiply
N_FUNCS = N_SINGLE + N_DOUBLE  # 5
OUT_DIM = N_FUNCS + N_DOUBLE   # 6 (double funcs consume two columns of h)


# -----------------------------------------------------------------------------
# Kernel: one batch tile per grid step.
#   x_ref    : (TB, in_dim)       batch tile (pipelined DMA)
#   weff_ref : (in_dim, OUT_DIM)  effective weight (constant index_map -> VMEM-resident)
#   o_ref    : (TB, N_FUNCS)      output tile, written directly (no wrapper transpose)
# -----------------------------------------------------------------------------
def _symbolic_l0_kernel(x_ref, weff_ref, o_ref):
    # h = x @ (mask * W): natural MXU orientation, no relayout of the x tile.
    h = jnp.dot(x_ref[...], weff_ref[...], preferred_element_type=jnp.float32)  # (TB, 6)

    # Activation units, written straight into the output ref (no concat of tiny
    # slices).  Compute is negligible -- the kernel is DMA-bound.
    o_ref[:, 0:1] = h[:, 0:1].astype(o_ref.dtype)                  # identity
    o_ref[:, 1:2] = (h[:, 1:2] * h[:, 1:2]).astype(o_ref.dtype)    # square
    o_ref[:, 2:3] = jnp.sin(h[:, 2:3]).astype(o_ref.dtype)         # sin (VPU polynomial)
    o_ref[:, 3:4] = jax.nn.sigmoid(h[:, 3:4]).astype(o_ref.dtype)  # sigmoid (EUP)
    o_ref[:, 4:5] = (h[:, 4:5] * h[:, 5:6]).astype(o_ref.dtype)    # multiply (double-input)


def symbolic_l0_forward(x, W, qz_log_alpha, u, *, block_b=8192):
    """forward(x, sample=True, reuse_u=False) with use_bias=False (module default)."""
    B, in_dim = x.shape
    assert W.shape == (in_dim, OUT_DIM)

    # --- hoisted sample_weights(): batch-independent, tiny, fused by XLA ------
    z = jax.nn.sigmoid((jnp.log(u) - jnp.log(1.0 - u) + qz_log_alpha) / BETA)
    z = z * (ZETA - GAMMA) + GAMMA
    mask = jnp.clip(z, 0.0, 1.0)
    w_eff = (mask * W).astype(x.dtype)                      # (in_dim, OUT_DIM)

    # Batch tile: full-batch block for small B (block dims equal to array dims are
    # always legal), otherwise a large multiple-of-8 tile so each grid step moves
    # enough bytes to amortize the fixed per-step pipeline overhead.
    tb = B if B <= block_b else block_b
    grid = (pl.cdiv(B, tb),)

    # VMEM budget: both the x block (last dim 16) and the out block (last dim 5) are
    # lane-padded to 128 in VMEM and each is double-buffered.
    x_row_bytes = 128 * jnp.dtype(x.dtype).itemsize
    o_row_bytes = 128 * 4
    vmem_needed = 2 * tb * (x_row_bytes + o_row_bytes) + 2 * in_dim * 128 * 4
    vmem_limit = max(32 * 1024 * 1024, int(vmem_needed * 1.25))

    cost = pl.CostEstimate(
        flops=2 * B * in_dim * OUT_DIM,
        transcendentals=2 * B,                               # one sin + one sigmoid per row
        bytes_accessed=(x.size * jnp.dtype(x.dtype).itemsize
                        + w_eff.size * jnp.dtype(w_eff.dtype).itemsize
                        + B * N_FUNCS * 4),
    )

    return pl.pallas_call(
        _symbolic_l0_kernel,
        out_shape=jax.ShapeDtypeStruct((B, N_FUNCS), jnp.float32),
        grid=grid,
        in_specs=[
            pl.BlockSpec((tb, in_dim), lambda i: (i, 0)),        # x: batch-tiled, pipelined
            pl.BlockSpec((in_dim, OUT_DIM), lambda i: (0, 0)),   # w_eff: VMEM-resident
        ],
        out_specs=pl.BlockSpec((tb, N_FUNCS), lambda i: (i, 0)), # direct (B, 5) output
        compiler_params=pltpu.CompilerParams(
            dimension_semantics=("parallel",),                   # v7x: use both TensorCores
            vmem_limit_bytes=vmem_limit,
        ),
        cost_estimate=cost,
    )(x, w_eff)


# -----------------------------------------------------------------------------
# Pure-JAX reference (mirrors the PyTorch forward) for a sanity check.
# -----------------------------------------------------------------------------
def _reference_forward(x, W, qz_log_alpha, u):
    z = jax.nn.sigmoid((jnp.log(u) - jnp.log(1.0 - u) + qz_log_alpha) / BETA)
    z = z * (ZETA - GAMMA) + GAMMA
    mask = jnp.clip(z, 0.0, 1.0)
    h = x @ (mask * W)
    cols = [
        h[:, 0],
        h[:, 1] ** 2,
        jnp.sin(h[:, 2]),
        jax.nn.sigmoid(h[:, 3]),
        h[:, 4] * h[:, 5],
    ]
    return jnp.stack(cols, axis=1)


def _make_inputs(key, batch, in_dim):
    k_x, k_w, k_alpha, k_u = jax.random.split(key, 4)
    x = jax.random.normal(k_x, (batch, in_dim), dtype=jnp.float32)
    W = INIT_STDDEV * jax.random.normal(k_w, (in_dim, OUT_DIM), dtype=jnp.float32)
    qz_log_alpha = (
        (math.log(1.0 - DROPRATE_INIT) - math.log(DROPRATE_INIT))
        + 0.01 * jax.random.normal(k_alpha, (in_dim, OUT_DIM), dtype=jnp.float32)
    )
    # sample_u(): uniform noise stretched to (epsilon, 1 - epsilon)
    u = (
        jax.random.uniform(k_u, (in_dim, OUT_DIM), dtype=jnp.float32)
        * (1.0 - 2.0 * EPSILON)
        + EPSILON
    )
    return x, W, qz_log_alpha, u


if __name__ == "__main__":
    key = jax.random.PRNGKey(0)
    k1, k2 = jax.random.split(key)
    in_dim = 16

    # (1) tiled path: block_b forced small so the grid has several steps and the
    #     pipelined-DMA / "parallel" axis path is exercised at a small test shape.
    x, W, alpha, u = _make_inputs(k1, batch=1024, in_dim=in_dim)
    out = jax.block_until_ready(symbolic_l0_forward(x, W, alpha, u, block_b=256))
    ref = _reference_forward(x, W, alpha, u)
    assert out.shape == (1024, N_FUNCS)
    assert jnp.allclose(out, ref, atol=1e-4, rtol=1e-4), "tiled kernel mismatch vs reference"

    # (2) small-batch path: single full-batch block (default large block_b).
    x_s, W_s, alpha_s, u_s = _make_inputs(k2, batch=8, in_dim=in_dim)
    out_s = jax.block_until_ready(symbolic_l0_forward(x_s, W_s, alpha_s, u_s))
    ref_s = _reference_forward(x_s, W_s, alpha_s, u_s)
    assert out_s.shape == (8, N_FUNCS)
    assert jnp.allclose(out_s, ref_s, atol=1e-4, rtol=1e-4), "small kernel mismatch vs reference"

    print("KERNEL_OK")
</pallas_src>

<mosaic_0001>
module attributes {stable_mosaic.version = 11 : i64} {
  func.func @_symbolic_l0_kernel(%arg0: i32, %arg1: memref<256x16xf32, #tpu.memory_space<vmem>>, %arg2: memref<16x6xf32, #tpu.memory_space<vmem>>, %arg3: memref<256x5xf32, #tpu.memory_space<vmem>>) attributes {dimension_semantics = [#tpu.dimension_semantics<parallel>], iteration_bounds = array<i64: 4>, scalar_prefetch = 0 : i64, scratch_operands = 0 : i64, tpu.core_type = #tpu.core_type<tc>, window_params = [{transform_indices = @transform_0, window_bounds = array<i64: 256, 16>}, {pipeline_mode = #tpu.pipeline_mode<synchronous>, transform_indices = @transform_1, window_bounds = array<i64: 16, 6>}, {transform_indices = @transform_2, window_bounds = array<i64: 256, 5>}]} {
    %c0 = arith.constant 0 : index
    %c0_0 = arith.constant 0 : index
    %0 = vector.load %arg1[%c0, %c0_0] : memref<256x16xf32, #tpu.memory_space<vmem>>, vector<256x16xf32>
    %c0_1 = arith.constant 0 : index
    %c0_2 = arith.constant 0 : index
    %1 = vector.load %arg2[%c0_1, %c0_2] : memref<16x6xf32, #tpu.memory_space<vmem>>, vector<16x6xf32>
    %cst = arith.constant dense<0.000000e+00> : vector<256x6xf32>
    %2 = tpu.matmul %0, %1, %cst {dimension_numbers = #tpu.dot_dimension_numbers<[1], [0], [0], [1], [0, 0, 1, 1], [], []>} : vector<256x16xf32>, vector<16x6xf32>, vector<256x6xf32> -> vector<256x6xf32>
    %3 = vector.extract_strided_slice %2 {offsets = [0, 0], sizes = [256, 1], strides = [1, 1]} : vector<256x6xf32> to vector<256x1xf32>
    %c0_3 = arith.constant 0 : index
    %c0_4 = arith.constant 0 : index
    %4 = vector.load %arg3[%c0_3, %c0_4] : memref<256x5xf32, #tpu.memory_space<vmem>>, vector<256x1xf32>
    tpu.vector_store %arg3[%c0_3, %c0_4], %3 {strides = array<i32>} : memref<256x5xf32, #tpu.memory_space<vmem>>, vector<256x1xf32>,
    %5 = vector.extract_strided_slice %2 {offsets = [0, 1], sizes = [256, 1], strides = [1, 1]} : vector<256x6xf32> to vector<256x1xf32>
    %6 = vector.extract_strided_slice %2 {offsets = [0, 1], sizes = [256, 1], strides = [1, 1]} : vector<256x6xf32> to vector<256x1xf32>
    %7 = arith.mulf %5, %6 : vector<256x1xf32>
    %c0_5 = arith.constant 0 : index
    %c1 = arith.constant 1 : index
    %8 = vector.load %arg3[%c0_5, %c1] : memref<256x5xf32, #tpu.memory_space<vmem>>, vector<256x1xf32>
    tpu.vector_store %arg3[%c0_5, %c1], %7 {strides = array<i32>} : memref<256x5xf32, #tpu.memory_space<vmem>>, vector<256x1xf32>,
    %9 = vector.extract_strided_slice %2 {offsets = [0, 2], sizes = [256, 1], strides = [1, 1]} : vector<256x6xf32> to vector<256x1xf32>
    %10 = math.sin %9 : vector<256x1xf32>
    %c0_6 = arith.constant 0 : index
    %c2 = arith.constant 2 : index
    %11 = vector.load %arg3[%c0_6, %c2] : memref<256x5xf32, #tpu.memory_space<vmem>>, vector<256x1xf32>
    tpu.vector_store %arg3[%c0_6, %c2], %10 {strides = array<i32>} : memref<256x5xf32, #tpu.memory_space<vmem>>, vector<256x1xf32>,
    %12 = vector.extract_strided_slice %2 {offsets = [0, 3], sizes = [256, 1], strides = [1, 1]} : vector<256x6xf32> to vector<256x1xf32>
    %13 = arith.negf %12 : vector<256x1xf32>
    %14 = math.exp %13 : vector<256x1xf32>
    %cst_7 = arith.constant 1.000000e+00 : f32
    %15 = vector.broadcast %cst_7 : f32 to vector<256x1xf32>
    %16 = arith.addf %15, %14 : vector<256x1xf32>
    %17 = arith.divf %15, %16 : vector<256x1xf32>
    %c0_8 = arith.constant 0 : index
    %c3 = arith.constant 3 : index
    %18 = vector.load %arg3[%c0_8, %c3] : memref<256x5xf32, #tpu.memory_space<vmem>>, vector<256x1xf32>
    tpu.vector_store %arg3[%c0_8, %c3], %17 {strides = array<i32>} : memref<256x5xf32, #tpu.memory_space<vmem>>, vector<256x1xf32>,
    %19 = vector.extract_strided_slice %2 {offsets = [0, 4], sizes = [256, 1], strides = [1, 1]} : vector<256x6xf32> to vector<256x1xf32>
    %20 = vector.extract_strided_slice %2 {offsets = [0, 5], sizes = [256, 1], strides = [1, 1]} : vector<256x6xf32> to vector<256x1xf32>
    %21 = arith.mulf %19, %20 : vector<256x1xf32>
    %c0_9 = arith.constant 0 : index
    %c4 = arith.constant 4 : index
    %22 = vector.load %arg3[%c0_9, %c4] : memref<256x5xf32, #tpu.memory_space<vmem>>, vector<256x1xf32>
    tpu.vector_store %arg3[%c0_9, %c4], %21 {strides = array<i32>} : memref<256x5xf32, #tpu.memory_space<vmem>>, vector<256x1xf32>,
    return
  }
  func.func @transform_0(%arg0: i32) -> (i32, i32) {
    %c0_i32 = arith.constant 0 : i32
    %c0_i32_0 = arith.constant 0 : i32
    return %arg0, %c0_i32 : i32, i32
  }
  func.func @transform_1(%arg0: i32) -> (i32, i32) {
    %c0_i32 = arith.constant 0 : i32
    %c0_i32_0 = arith.constant 0 : i32
    %c0_i32_1 = arith.constant 0 : i32
    return %c0_i32, %c0_i32_0 : i32, i32
  }
  func.func @transform_2(%arg0: i32) -> (i32, i32) {
    %c0_i32 = arith.constant 0 : i32
    %c0_i32_0 = arith.constant 0 : i32
    return %arg0, %c0_i32 : i32, i32
  }
}

</mosaic_0001>

<llo_original>
// kernel: tpu_custom_call.1
$region0: #{tpu_custom_call.1}
  #allocation0 [shape = 'u32[]', space=smem, size = 0x4, offset = 0x4, fixed_abs, tag = 'smem constant byte address 0x4 - core index']
  #allocation1 [shape = 'u32[144,128]{1,0:T(1,128)}', space=vmem, size = 0x12000, scoped, tag = 'internal scratch']
  %s0 = inlined_call_operand.vmem [shape: f32[1024,16], index: 0, kind: input, shape index: {}]
  %s1 = inlined_call_operand.vmem [shape: f32[16,6], index: 1, kind: input, shape index: {}]
  %s2 = inlined_call_operand.vmem [shape: f32[1024,5], index: 2, kind: output, shape index: {}]
  %s3 = sld [smem:[#allocation0]]
  $region41: #{tpu_custom_call.1} parent=0
    _
  %s5 = ssub.s32 1, %s3
  %s6 = scalar_select 0, %s5, %s3
  loop: start=0, step=1, limit=6
  $region2: #{tpu_custom_call.1} parent=0 // loop_pre_header
    _
  $region3: #{tpu_custom_call.1} parent=0 // loop_header
    %s8 = sphi 0, %s12
    %p9 = scmp.ge.s32.totalorder %s8, 6
    %s18 = sphi 0, %s20
    %s21 = sphi 0, %s18
    %s22 = sphi 0, %s21
    %s38 = sphi 0, %s22
    %s42 = sphi 0, %s42
    %s44 = sphi 0, %s42
    %s45 = sphi 0, %s44
    %s59 = sphi 0, %s45
    %s65 = sphi 0, %s67
    %s68 = sphi 0, %s65
    %s69 = sphi 0, %s68
    %s85 = sphi 0, %s69
  $region4: #{tpu_custom_call.1} parent=0 // loop_header_branch
    %11 = sbr.rel (%p9) target = $region8
  $region5: #{tpu_custom_call.1} parent=0 // loop_body
    %s13 = ssub.s32 %s8, 1
    %s14 = ssub.s32 %s8, 2
    %s15 = sadd.s32 %s8, 1
    %s16 = ssub.s32 %s8, %s15
    %p17 = scmp.eq.s32.totalorder %s16, 0
    %s19 = sadd.s32 %s18, 1
    %s20 = scalar_select %p17, %s18, %s19
    %p23 = pneg %p17
    %p24 = scmp.eq.s32.totalorder %s8, 3
    %p25 = por %p23, %p24
    %p26 = scmp.ne.s32.totalorder %s18, %s21
    %p27 = scmp.eq.s32.totalorder %s8, 0
    %p28 = por %p26, %p27
    %p29 = scmp.ne.s32.totalorder %s18, %s21
    %p30 = scmp.eq.s32.totalorder %s13, 3
    %p31 = por %p29, %p30
    %p32 = scmp.ne.s32.totalorder %s21, %s22
    %p33 = scmp.eq.s32.totalorder %s13, 0
    %p34 = por %p32, %p33
    %p35 = scmp.ne.s32.totalorder %s21, %s22
    %p36 = scmp.eq.s32.totalorder %s14, 3
    %p37 = por %p35, %p36
    %p39 = scmp.ne.s32.totalorder %s22, %s38
    %p40 = scmp.eq.s32.totalorder %s14, 0
    %p41 = por %p39, %p40
    %s43 = sadd.s32 %s42, 1
    %p46 = scmp.eq.s32.totalorder %s8, 3
    %p47 = scmp.ne.s32.totalorder %s42, %s44
    %p48 = scmp.eq.s32.totalorder %s8, 0
    %p49 = por %p47, %p48
    %p50 = scmp.ne.s32.totalorder %s42, %s44
    %p51 = scmp.eq.s32.totalorder %s13, 3
    %p52 = por %p50, %p51
    %p53 = scmp.ne.s32.totalorder %s44, %s45
    %p54 = scmp.eq.s32.totalorder %s13, 0
    %p55 = por %p53, %p54
    %p56 = scmp.ne.s32.totalorder %s44, %s45
    %p57 = scmp.eq.s32.totalorder %s14, 3
    %p58 = por %p56, %p57
    %p60 = scmp.ne.s32.totalorder %s45, %s59
    %p61 = scmp.eq.s32.totalorder %s14, 0
    %p62 = por %p60, %p61
    %s63 = ssub.s32 %s8, %s15
    %p64 = scmp.eq.s32.totalorder %s63, 0
    %s66 = sadd.s32 %s65, 1
    %s67 = scalar_select %p64, %s65, %s66
    %p70 = pneg %p64
    %p71 = scmp.eq.s32.totalorder %s8, 3
    %p72 = por %p70, %p71
    %p73 = scmp.ne.s32.totalorder %s65, %s68
    %p74 = scmp.eq.s32.totalorder %s8, 0
    %p75 = por %p73, %p74
    %p76 = scmp.ne.s32.totalorder %s65, %s68
    %p77 = scmp.eq.s32.totalorder %s13, 3
    %p78 = por %p76, %p77
    %p79 = scmp.ne.s32.totalorder %s68, %s69
    %p80 = scmp.eq.s32.totalorder %s13, 0
    %p81 = por %p79, %p80
    %p82 = scmp.ne.s32.totalorder %s68, %s69
    %p83 = scmp.eq.s32.totalorder %s14, 3
    %p84 = por %p82, %p83
    %p86 = scmp.ne.s32.totalorder %s69, %s85
    %p87 = scmp.eq.s32.totalorder %s14, 0
    %p88 = por %p86, %p87
    %p89 = scmp.le.s32.totalorder 1, %s8
    %p90 = scmp.lt.s32.totalorder %s8, 5
    %p91 = pnand %p89, %p90
    %p92 = pneg %p91
    // Predicated region
    $region9: #{tpu_custom_call.1} parent=5 // pred_check
      _
    $region10: #{tpu_custom_call.1} parent=5 // pred_check_branch
      %94 = sbr.rel (%p91) target = $region12
    $region11: #{tpu_custom_call.1} parent=5 // pred_region
      %s95 = ssub.s32 %s8, 1
      // Predicated region
      $region13: #{tpu_custom_call.1} parent=11 // pred_check
        %p96 = pneg %p55
      $region14: #{tpu_custom_call.1} parent=11 // pred_check_branch
        %98 = sbr.rel (%p96) target = $region16
      $region15: #{tpu_custom_call.1} parent=11 // pred_region
        _
      $region16: #{tpu_custom_call.1} parent=11 // pred_fallthru
        _
    $region12: #{tpu_custom_call.1} parent=5 // pred_fallthru
      _
    %p99 = scmp.lt.s32.totalorder %s8, 4
    // Predicated region
    $region17: #{tpu_custom_call.1} parent=5 // pred_check
      %p100 = pneg %p99
    $region18: #{tpu_custom_call.1} parent=5 // pred_check_branch
      %102 = sbr.rel (%p100) target = $region20
    $region19: #{tpu_custom_call.1} parent=5 // pred_region
      // Predicated region
      $region21: #{tpu_custom_call.1} parent=19 // pred_check
        %p103 = pneg %p28
      $region22: #{tpu_custom_call.1} parent=19 // pred_check_branch
        %105 = sbr.rel (%p103) target = $region24
      $region23: #{tpu_custom_call.1} parent=19 // pred_region
        %s106 = smul.u32 32, %s8
        %p107 = scmp.lt.s32.totalorder %s106, 127
        %s108 = scalar_select %p107, %s106, 127
        %s109 = smul.addr %s108, 8
        %s110 = scalar_lea.vmem %s0, %s109
        %s111 = smul.u32 32, %s8
      $region24: #{tpu_custom_call.1} parent=19 // pred_fallthru
        _
    $region20: #{tpu_custom_call.1} parent=5 // pred_fallthru
      _
    %p112 = scmp.le.s32.totalorder 1, %s8
    %p113 = scmp.lt.s32.totalorder %s8, 5
    %p114 = pnand %p112, %p113
    %p115 = pneg %p114
    // Predicated region
    $region25: #{tpu_custom_call.1} parent=5 // pred_check
      _
    $region26: #{tpu_custom_call.1} parent=5 // pred_check_branch
      %117 = sbr.rel (%p114) target = $region28
    $region27: #{tpu_custom_call.1} parent=5 // pred_region
      %s118 = ssub.s32 %s8, 1
      %s119 = smul.u32 32, %s13
      %p120 = scmp.lt.s32.totalorder %s119, 127
      %s121 = scalar_select %p120, %s119, 127
      %s122 = smul.addr %s121, 8
      %s123 = scalar_lea.vmem %s0, %s122
      %p124 = pneg %p34
      %p125 = pneg %p31
      %p126 = pneg %p55
      %p127 = pneg %p52
      %p128 = pneg %p81
      %p129 = pneg %p78
      %s130 = smul.u32 32, %s13
      %p131 = scmp.lt.s32.totalorder %s130, 127
      %s132 = scalar_select %p131, %s130, 127
      %s133 = smul.addr %s132, 8
      %s134 = scalar_lea.vmem %s2, %s133
      %s135 = smul.u32 32, %s13
      %p136 = scmp.lt.s32.totalorder %s135, 127
      %s137 = scalar_select %p136, %s135, 127
      %s138 = smul.addr %s137, 8
      %s139 = scalar_lea.vmem %s0, %s138
      %s140 = smul.u32 32, %s13
      %s141 = smul.u32 32, %s13
      %p142 = scmp.lt.s32.totalorder %s141, 127
      %s143 = scalar_select %p142, %s141, 127
      %s144 = smul.addr %s143, 8
      %s145 = scalar_lea.vmem %s2, %s144
      %s146 = smul.u32 32, %s13
      %v147 = vld [vmem:[%s139] sm:$0xff]
      %v148 = vld [vmem:[%s139 + $0x8] sm:$0xff]
      %v149 = vld [vmem:[%s139 + $0x10] sm:$0xff]
      %v150 = vld [vmem:[%s139 + $0x18] sm:$0xff]
      %v151 = vld [vmem:[%s139 + $0x20] sm:$0xff]
      %v152 = vld [vmem:[%s139 + $0x28] sm:$0xff]
      %v153 = vld [vmem:[%s139 + $0x30] sm:$0xff]
      %v154 = vld [vmem:[%s139 + $0x38] sm:$0xff]
      %v155 = vld [vmem:[%s139 + $0x40] sm:$0xff]
      %v156 = vld [vmem:[%s139 + $0x48] sm:$0xff]
      %v157 = vld [vmem:[%s139 + $0x50] sm:$0xff]
      %v158 = vld [vmem:[%s139 + $0x58] sm:$0xff]
      %v159 = vld [vmem:[%s139 + $0x60] sm:$0xff]
      %v160 = vld [vmem:[%s139 + $0x68] sm:$0xff]
      %v161 = vld [vmem:[%s139 + $0x70] sm:$0xff]
      %v162 = vld [vmem:[%s139 + $0x78] sm:$0xff]
      %v163 = vld [vmem:[%s139 + $0x80] sm:$0xff]
      %v164 = vld [vmem:[%s139 + $0x88] sm:$0xff]
      %v165 = vld [vmem:[%s139 + $0x90] sm:$0xff]
      %v166 = vld [vmem:[%s139 + $0x98] sm:$0xff]
      %v167 = vld [vmem:[%s139 + $0xa0] sm:$0xff]
      %v168 = vld [vmem:[%s139 + $0xa8] sm:$0xff]
      %v169 = vld [vmem:[%s139 + $0xb0] sm:$0xff]
      %v170 = vld [vmem:[%s139 + $0xb8] sm:$0xff]
      %v171 = vld [vmem:[%s139 + $0xc0] sm:$0xff]
      %v172 = vld [vmem:[%s139 + $0xc8] sm:$0xff]
      %v173 = vld [vmem:[%s139 + $0xd0] sm:$0xff]
      %v174 = vld [vmem:[%s139 + $0xd8] sm:$0xff]
      %v175 = vld [vmem:[%s139 + $0xe0] sm:$0xff]
      %v176 = vld [vmem:[%s139 + $0xe8] sm:$0xff]
      %v177 = vld [vmem:[%s139 + $0xf0] sm:$0xff]
      %v178 = vld [vmem:[%s139 + $0xf8] sm:$0xff]
      %v179 = vld [vmem:[%s1] sm:$0xff]
      %v180 = vld [vmem:[%s1 + $0x8] sm:$0xff]
      %vm181 = vcmask 130048
      %v183 = vsel %vm181, %v147, 0
      %v186 = vsel %vm181, %v148, 0
      %v189 = vsel %vm181, %v149, 0
      %v192 = vsel %vm181, %v150, 0
      %v195 = vsel %vm181, %v151, 0
      %v198 = vsel %vm181, %v152, 0
      %v201 = vsel %vm181, %v153, 0
      %v204 = vsel %vm181, %v154, 0
      %v207 = vsel %vm181, %v155, 0
      %v210 = vsel %vm181, %v156, 0
      %v213 = vsel %vm181, %v157, 0
      %v216 = vsel %vm181, %v158, 0
      %v219 = vsel %vm181, %v159, 0
      %v222 = vsel %vm181, %v160, 0
      %v225 = vsel %vm181, %v161, 0
      %v228 = vsel %vm181, %v162, 0
      %v231 = vsel %vm181, %v163, 0
      %v234 = vsel %vm181, %v164, 0
      %v237 = vsel %vm181, %v165, 0
      %v240 = vsel %vm181, %v166, 0
      %v243 = vsel %vm181, %v167, 0
      %v246 = vsel %vm181, %v168, 0
      %v249 = vsel %vm181, %v169, 0
      %v252 = vsel %vm181, %v170, 0
      %v255 = vsel %vm181, %v171, 0
      %v258 = vsel %vm181, %v172, 0
      %v261 = vsel %vm181, %v173, 0
      %v264 = vsel %vm181, %v174, 0
      %v267 = vsel %vm181, %v175, 0
      %v270 = vsel %vm181, %v176, 0
      %v273 = vsel %vm181, %v177, 0
      %v276 = vsel %vm181, %v178, 0
      %278 = vmatprep.subr.mxu0 0.0
      %279 = vmatpush1.msra.mxu0 %v179
      %280 = vmatprep.subr.mxu0 0.0
      %281 = vmatpush1.msra.mxu0 %v180
      %282 = vmatprep.subr.mxu0 0.0
      %283 = vmatpush1.msra.mxu0 0.0
      %284 = vmatprep.subr.mxu0 0.0
      %285 = vmatpush1.msra.mxu0 0.0
      %286 = vmatprep.subr.mxu0 0.0
      %287 = vmatpush1.msra.mxu0 0.0
      %288 = vmatprep.subr.mxu0 0.0
      %289 = vmatpush1.msra.mxu0 0.0
      %290 = vmatprep.subr.mxu0 0.0
      %291 = vmatpush1.msra.mxu0 0.0
      %292 = vmatprep.subr.mxu0 0.0
      %293 = vmatpush1.msra.mxu0 0.0
      %294 = vmatprep.subr.mxu0 0.0
      %295 = vmatpush1.msra.mxu0 0.0
      %296 = vmatprep.subr.mxu0 0.0
      %297 = vmatpush1.msra.mxu0 0.0
      %298 = vmatprep.subr.mxu0 0.0
      %299 = vmatpush1.msra.mxu0 0.0
      %300 = vmatprep.subr.mxu0 0.0
      %301 = vmatpush1.msra.mxu0 0.0
      %302 = vmatprep.subr.mxu0 0.0
      %303 = vmatpush1.msra.mxu0 0.0
      %304 = vmatprep.subr.mxu0 0.0
      %305 = vmatpush1.msra.mxu0 0.0
      %306 = vmatprep.subr.mxu0 0.0
      %307 = vmatpush1.msra.mxu0 0.0
      %308 = vmatprep.subr.mxu0 0.0
      %309 = vmatpush1.msra.mxu0 0.0
      %310 = vmatprep.subr.mxu0 0.0
      %311 = vmatpush1.msra.mxu0 0.0
      %312 = vmatprep.subr.mxu0 0.0
      %313 = vmatpush1.msra.mxu0 0.0
      %314 = vmatprep.subr.mxu0 0.0
      %315 = vmatpush1.msra.mxu0 0.0
      %316 = vmatprep.subr.mxu0 0.0
      %317 = vmatpush1.msra.mxu0 0.0
      %318 = vmatprep.subr.mxu0 0.0
      %319 = vmatpush1.msra.mxu0 0.0
      %320 = vmatprep.subr.mxu0 0.0
      %321 = vmatpush1.msra.mxu0 0.0
      %322 = vmatprep.subr.mxu0 0.0
      %323 = vmatpush1.msra.mxu0 0.0
      %324 = vmatprep.subr.mxu0 0.0
      %325 = vmatpush1.msra.mxu0 0.0
      %326 = vmatprep.subr.mxu0 0.0
      %327 = vmatpush1.msra.mxu0 0.0
      %328 = vmatprep.subr.mxu0 0.0
      %329 = vmatpush1.msra.mxu0 0.0
      %330 = vmatprep.subr.mxu0 0.0
      %331 = vmatpush1.msra.mxu0 0.0
      %332 = vmatprep.subr.mxu0 0.0
      %333 = vmatpush1.msra.mxu0 0.0
      %334 = vmatprep.subr.mxu0 0.0
      %335 = vmatpush1.msra.mxu0 0.0
      %336 = vmatprep.subr.mxu0 0.0
      %337 = vmatpush1.msra.mxu0 0.0
      %338 = vmatprep.subr.mxu0 0.0
      %339 = vmatpush1.msra.mxu0 0.0
      %340 = vmatprep.subr.mxu0 0.0
      %341 = vmatpush1.msra.mxu0 0.0
      %342 = vmatprep.mubr.f32.mxu0 0.0
      %343 = vmatmul.mubr.f32.gmra.mrb[0].mxu0 %v183
      %v344 = vpop.f32.mrb[0].mxu0
      %v345 = vadd.f32 0.0, %v344
      %v346 = vpop.f32.mrb[0].mxu0
      %347 = vmatprep.mubr.f32.mxu0 0.0
      %348 = vmatmul.mubr.f32.gmra.mrb[0].mxu0 %v186
      %v349 = vpop.f32.mrb[0].mxu0
      %v350 = vadd.f32 0.0, %v349
      %v351 = vpop.f32.mrb[0].mxu0
      %352 = vmatprep.mubr.f32.mxu0 0.0
      %353 = vmatmul.mubr.f32.gmra.mrb[0].mxu0 %v189
      %v354 = vpop.f32.mrb[0].mxu0
      %v355 = vadd.f32 0.0, %v354
      %v356 = vpop.f32.mrb[0].mxu0
      %357 = vmatprep.mubr.f32.mxu0 0.0
      %358 = vmatmul.mubr.f32.gmra.mrb[0].mxu0 %v192
      %v359 = vpop.f32.mrb[0].mxu0
      %v360 = vadd.f32 0.0, %v359
      %v361 = vpop.f32.mrb[0].mxu0
      %362 = vmatprep.mubr.f32.mxu0 0.0
      %363 = vmatmul.mubr.f32.gmra.mrb[0].mxu0 %v195
      %v364 = vpop.f32.mrb[0].mxu0
      %v365 = vadd.f32 0.0, %v364
      %v366 = vpop.f32.mrb[0].mxu0
      %367 = vmatprep.mubr.f32.mxu0 0.0
      %368 = vmatmul.mubr.f32.gmra.mrb[0].mxu0 %v198
      %v369 = vpop.f32.mrb[0].mxu0
      %v370 = vadd.f32 0.0, %v369
      %v371 = vpop.f32.mrb[0].mxu0
      %372 = vmatprep.mubr.f32.mxu0 0.0
      %373 = vmatmul.mubr.f32.gmra.mrb[0].mxu0 %v201
      %v374 = vpop.f32.mrb[0].mxu0
      %v375 = vadd.f32 0.0, %v374
      %v376 = vpop.f32.mrb[0].mxu0
      %377 = vmatprep.mubr.f32.mxu0 0.0
      %378 = vmatmul.mubr.f32.gmra.mrb[0].mxu0 %v204
      %v379 = vpop.f32.mrb[0].mxu0
      %v380 = vadd.f32 0.0, %v379
      %v381 = vpop.f32.mrb[0].mxu0
      %382 = vmatprep.mubr.f32.mxu0 0.0
      %383 = vmatmul.mubr.f32.gmra.mrb[0].mxu0 %v207
      %v384 = vpop.f32.mrb[0].mxu0
      %v385 = vadd.f32 0.0, %v384
      %v386 = vpop.f32.mrb[0].mxu0
      %387 = vmatprep.mubr.f32.mxu0 0.0
      %388 = vmatmul.mubr.f32.gmra.mrb[0].mxu0 %v210
      %v389 = vpop.f32.mrb[0].mxu0
      %v390 = vadd.f32 0.0, %v389
      %v391 = vpop.f32.mrb[0].mxu0
      %392 = vmatprep.mubr.f32.mxu0 0.0
      %393 = vmatmul.mubr.f32.gmra.mrb[0].mxu0 %v213
      %v394 = vpop.f32.mrb[0].mxu0
      %v395 = vadd.f32 0.0, %v394
      %v396 = vpop.f32.mrb[0].mxu0
      %397 = vmatprep.mubr.f32.mxu0 0.0
      %398 = vmatmul.mubr.f32.gmra.mrb[0].mxu0 %v216
      %v399 = vpop.f32.mrb[0].mxu0
      %v400 = vadd.f32 0.0, %v399
      %v401 = vpop.f32.mrb[0].mxu0
      %402 = vmatprep.mubr.f32.mxu0 0.0
      %403 = vmatmul.mubr.f32.gmra.mrb[0].mxu0 %v219
      %v404 = vpop.f32.mrb[0].mxu0
      %v405 = vadd.f32 0.0, %v404
      %v406 = vpop.f32.mrb[0].mxu0
      %407 = vmatprep.mubr.f32.mxu0 0.0
      %408 = vmatmul.mubr.f32.gmra.mrb[0].mxu0 %v222
      %v409 = vpop.f32.mrb[0].mxu0
      %v410 = vadd.f32 0.0, %v409
      %v411 = vpop.f32.mrb[0].mxu0
      %412 = vmatprep.mubr.f32.mxu0 0.0
      %413 = vmatmul.mubr.f32.gmra.mrb[0].mxu0 %v225
      %v414 = vpop.f32.mrb[0].mxu0
      %v415 = vadd.f32 0.0, %v414
      %v416 = vpop.f32.mrb[0].mxu0
      %417 = vmatprep.mubr.f32.mxu0 0.0
      %418 = vmatmul.mubr.f32.gmra.mrb[0].mxu0 %v228
      %v419 = vpop.f32.mrb[0].mxu0
      %v420 = vadd.f32 0.0, %v419
      %v421 = vpop.f32.mrb[0].mxu0
      %422 = vmatprep.mubr.f32.mxu0 0.0
      %423 = vmatmul.mubr.f32.gmra.mrb[0].mxu0 %v231
      %v424 = vpop.f32.mrb[0].mxu0
      %v425 = vadd.f32 0.0, %v424
      %v426 = vpop.f32.mrb[0].mxu0
      %427 = vmatprep.mubr.f32.mxu0 0.0
      %428 = vmatmul.mubr.f32.gmra.mrb[0].mxu0 %v234
      %v429 = vpop.f32.mrb[0].mxu0
      %v430 = vadd.f32 0.0, %v429
      %v431 = vpop.f32.mrb[0].mxu0
      %432 = vmatprep.mubr.f32.mxu0 0.0
      %433 = vmatmul.mubr.f32.gmra.mrb[0].mxu0 %v237
      %v434 = vpop.f32.mrb[0].mxu0
      %v435 = vadd.f32 0.0, %v434
      %v436 = vpop.f32.mrb[0].mxu0
      %437 = vmatprep.mubr.f32.mxu0 0.0
      %438 = vmatmul.mubr.f32.gmra.mrb[0].mxu0 %v240
      %v439 = vpop.f32.mrb[0].mxu0
      %v440 = vadd.f32 0.0, %v439
      %v441 = vpop.f32.mrb[0].mxu0
      %442 = vmatprep.mubr.f32.mxu0 0.0
      %443 = vmatmul.mubr.f32.gmra.mrb[0].mxu0 %v243
      %v444 = vpop.f32.mrb[0].mxu0
      %v445 = vadd.f32 0.0, %v444
      %v446 = vpop.f32.mrb[0].mxu0
      %447 = vmatprep.mubr.f32.mxu0 0.0
      %448 = vmatmul.mubr.f32.gmra.mrb[0].mxu0 %v246
      %v449 = vpop.f32.mrb[0].mxu0
      %v450 = vadd.f32 0.0, %v449
      %v451 = vpop.f32.mrb[0].mxu0
      %452 = vmatprep.mubr.f32.mxu0 0.0
      %453 = vmatmul.mubr.f32.gmra.mrb[0].mxu0 %v249
      %v454 = vpop.f32.mrb[0].mxu0
      %v455 = vadd.f32 0.0, %v454
      %v456 = vpop.f32.mrb[0].mxu0
      %457 = vmatprep.mubr.f32.mxu0 0.0
      %458 = vmatmul.mubr.f32.gmra.mrb[0].mxu0 %v252
      %v459 = vpop.f32.mrb[0].mxu0
      %v460 = vadd.f32 0.0, %v459
      %v461 = vpop.f32.mrb[0].mxu0
      %462 = vmatprep.mubr.f32.mxu0 0.0
      %463 = vmatmul.mubr.f32.gmra.mrb[0].mxu0 %v255
      %v464 = vpop.f32.mrb[0].mxu0
      %v465 = vadd.f32 0.0, %v464
      %v466 = vpop.f32.mrb[0].mxu0
      %467 = vmatprep.mubr.f32.mxu0 0.0
      %468 = vmatmul.mubr.f32.gmra.mrb[0].mxu0 %v258
      %v469 = vpop.f32.mrb[0].mxu0
      %v470 = vadd.f32 0.0, %v469
      %v471 = vpop.f32.mrb[0].mxu0
      %472 = vmatprep.mubr.f32.mxu0 0.0
      %473 = vmatmul.mubr.f32.gmra.mrb[0].mxu0 %v261
      %v474 = vpop.f32.mrb[0].mxu0
      %v475 = vadd.f32 0.0, %v474
      %v476 = vpop.f32.mrb[0].mxu0
      %477 = vmatprep.mubr.f32.mxu0 0.0
      %478 = vmatmul.mubr.f32.gmra.mrb[0].mxu0 %v264
      %v479 = vpop.f32.mrb[0].mxu0
      %v480 = vadd.f32 0.0, %v479
      %v481 = vpop.f32.mrb[0].mxu0
      %482 = vmatprep.mubr.f32.mxu0 0.0
      %483 = vmatmul.mubr.f32.gmra.mrb[0].mxu0 %v267
      %v484 = vpop.f32.mrb[0].mxu0
      %v485 = vadd.f32 0.0, %v484
      %v486 = vpop.f32.mrb[0].mxu0
      %487 = vmatprep.mubr.f32.mxu0 0.0
      %488 = vmatmul.mubr.f32.gmra.mrb[0].mxu0 %v270
      %v489 = vpop.f32.mrb[0].mxu0
      %v490 = vadd.f32 0.0, %v489
      %v491 = vpop.f32.mrb[0].mxu0
      %492 = vmatprep.mubr.f32.mxu0 0.0
      %493 = vmatmul.mubr.f32.gmra.mrb[0].mxu0 %v273
      %v494 = vpop.f32.mrb[0].mxu0
      %v495 = vadd.f32 0.0, %v494
      %v496 = vpop.f32.mrb[0].mxu0
      %497 = vmatprep.mubr.f32.mxu0 0.0
      %498 = vmatmul.mubr.f32.gmra.mrb[0].mxu0 %v276
      %v499 = vpop.f32.mrb[0].mxu0
      %v500 = vadd.f32 0.0, %v499
      %v501 = vpop.f32.mrb[0].mxu0
      %502 = vdwg.mxu0
      %vm503 = vcmask 7168
      %504 = vst.msk [vmem:[%s145] sm:$0xff] %vm503, %v345
      %505 = vst.msk [vmem:[%s145 + $0x8] sm:$0xff] %vm503, %v350
      %506 = vst.msk [vmem:[%s145 + $0x10] sm:$0xff] %vm503, %v355
      %507 = vst.msk [vmem:[%s145 + $0x18] sm:$0xff] %vm503, %v360
      %508 = vst.msk [vmem:[%s145 + $0x20] sm:$0xff] %vm503, %v365
      %509 = vst.msk [vmem:[%s145 + $0x28] sm:$0xff] %vm503, %v370
      %510 = vst.msk [vmem:[%s145 + $0x30] sm:$0xff] %vm503, %v375
      %511 = vst.msk [vmem:[%s145 + $0x38] sm:$0xff] %vm503, %v380
      %512 = vst.msk [vmem:[%s145 + $0x40] sm:$0xff] %vm503, %v385
      %513 = vst.msk [vmem:[%s145 + $0x48] sm:$0xff] %vm503, %v390
      %514 = vst.msk [vmem:[%s145 + $0x50] sm:$0xff] %vm503, %v395
      %515 = vst.msk [vmem:[%s145 + $0x58] sm:$0xff] %vm503, %v400
      %516 = vst.msk [vmem:[%s145 + $0x60] sm:$0xff] %vm503, %v405
      %517 = vst.msk [vmem:[%s145 + $0x68] sm:$0xff] %vm503, %v410
      %518 = vst.msk [vmem:[%s145 + $0x70] sm:$0xff] %vm503, %v415
      %519 = vst.msk [vmem:[%s145 + $0x78] sm:$0xff] %vm503, %v420
      %520 = vst.msk [vmem:[%s145 + $0x80] sm:$0xff] %vm503, %v425
      %521 = vst.msk [vmem:[%s145 + $0x88] sm:$0xff] %vm503, %v430
      %522 = vst.msk [vmem:[%s145 + $0x90] sm:$0xff] %vm503, %v435
      %523 = vst.msk [vmem:[%s145 + $0x98] sm:$0xff] %vm503, %v440
      %524 = vst.msk [vmem:[%s145 + $0xa0] sm:$0xff] %vm503, %v445
      %525 = vst.msk [vmem:[%s145 + $0xa8] sm:$0xff] %vm503, %v450
      %526 = vst.msk [vmem:[%s145 + $0xb0] sm:$0xff] %vm503, %v455
      %527 = vst.msk [vmem:[%s145 + $0xb8] sm:$0xff] %vm503, %v460
      %528 = vst.msk [vmem:[%s145 + $0xc0] sm:$0xff] %vm503, %v465
      %529 = vst.msk [vmem:[%s145 + $0xc8] sm:$0xff] %vm503, %v470
      %530 = vst.msk [vmem:[%s145 + $0xd0] sm:$0xff] %vm503, %v475
      %531 = vst.msk [vmem:[%s145 + $0xd8] sm:$0xff] %vm503, %v480
      %532 = vst.msk [vmem:[%s145 + $0xe0] sm:$0xff] %vm503, %v485
      %533 = vst.msk [vmem:[%s145 + $0xe8] sm:$0xff] %vm503, %v490
      %534 = vst.msk [vmem:[%s145 + $0xf0] sm:$0xff] %vm503, %v495
      %535 = vst.msk [vmem:[%s145 + $0xf8] sm:$0xff] %vm503, %v500
      %v536 = vmul.f32 %v345, %v345
      %v537 = vmul.f32 %v350, %v350
      %v538 = vmul.f32 %v355, %v355
      %v539 = vmul.f32 %v360, %v360
      %v540 = vmul.f32 %v365, %v365
      %v541 = vmul.f32 %v370, %v370
      %v542 = vmul.f32 %v375, %v375
      %v543 = vmul.f32 %v380, %v380
      %v544 = vmul.f32 %v385, %v385
      %v545 = vmul.f32 %v390, %v390
      %v546 = vmul.f32 %v395, %v395
      %v547 = vmul.f32 %v400, %v400
      %v548 = vmul.f32 %v405, %v405
      %v549 = vmul.f32 %v410, %v410
      %v550 = vmul.f32 %v415, %v415
      %v551 = vmul.f32 %v420, %v420
      %v552 = vmul.f32 %v425, %v425
      %v553 = vmul.f32 %v430, %v430
      %v554 = vmul.f32 %v435, %v435
      %v555 = vmul.f32 %v440, %v440
      %v556 = vmul.f32 %v445, %v445
      %v557 = vmul.f32 %v450, %v450
      %v558 = vmul.f32 %v455, %v455
      %v559 = vmul.f32 %v460, %v460
      %v560 = vmul.f32 %v465, %v465
      %v561 = vmul.f32 %v470, %v470
      %v562 = vmul.f32 %v475, %v475
      %v563 = vmul.f32 %v480, %v480
      %v564 = vmul.f32 %v485, %v485
      %v565 = vmul.f32 %v490, %v490
      %v566 = vmul.f32 %v495, %v495
      %v567 = vmul.f32 %v500, %v500
      %vm568 = vcmask 15368
      %569 = vst.msk [vmem:[%s145] sm:$0xff] %vm568, %v536
      %570 = vst.msk [vmem:[%s145 + $0x8] sm:$0xff] %vm568, %v537
      %571 = vst.msk [vmem:[%s145 + $0x10] sm:$0xff] %vm568, %v538
      %572 = vst.msk [vmem:[%s145 + $0x18] sm:$0xff] %vm568, %v539
      %573 = vst.msk [vmem:[%s145 + $0x20] sm:$0xff] %vm568, %v540
      %574 = vst.msk [vmem:[%s145 + $0x28] sm:$0xff] %vm568, %v541
      %575 = vst.msk [vmem:[%s145 + $0x30] sm:$0xff] %vm568, %v542
      %576 = vst.msk [vmem:[%s145 + $0x38] sm:$0xff] %vm568, %v543
      %577 = vst.msk [vmem:[%s145 + $0x40] sm:$0xff] %vm568, %v544
      %578 = vst.msk [vmem:[%s145 + $0x48] sm:$0xff] %vm568, %v545
      %579 = vst.msk [vmem:[%s145 + $0x50] sm:$0xff] %vm568, %v546
      %580 = vst.msk [vmem:[%s145 + $0x58] sm:$0xff] %vm568, %v547
      %581 = vst.msk [vmem:[%s145 + $0x60] sm:$0xff] %vm568, %v548
      %582 = vst.msk [vmem:[%s145 + $0x68] sm:$0xff] %vm568, %v549
      %583 = vst.msk [vmem:[%s145 + $0x70] sm:$0xff] %vm568, %v550
      %584 = vst.msk [vmem:[%s145 + $0x78] sm:$0xff] %vm568, %v551
      %585 = vst.msk [vmem:[%s145 + $0x80] sm:$0xff] %vm568, %v552
      %586 = vst.msk [vmem:[%s145 + $0x88] sm:$0xff] %vm568, %v553
      %587 = vst.msk [vmem:[%s145 + $0x90] sm:$0xff] %vm568, %v554
      %588 = vst.msk [vmem:[%s145 + $0x98] sm:$0xff] %vm568, %v555
      %589 = vst.msk [vmem:[%s145 + $0xa0] sm:$0xff] %vm568, %v556
      %590 = vst.msk [vmem:[%s145 + $0xa8] sm:$0xff] %vm568, %v557
      %591 = vst.msk [vmem:[%s145 + $0xb0] sm:$0xff] %vm568, %v558
      %592 = vst.msk [vmem:[%s145 + $0xb8] sm:$0xff] %vm568, %v559
      %593 = vst.msk [vmem:[%s145 + $0xc0] sm:$0xff] %vm568, %v560
      %594 = vst.msk [vmem:[%s145 + $0xc8] sm:$0xff] %vm568, %v561
      %595 = vst.msk [vmem:[%s145 + $0xd0] sm:$0xff] %vm568, %v562
      %596 = vst.msk [vmem:[%s145 + $0xd8] sm:$0xff] %vm568, %v563
      %597 = vst.msk [vmem:[%s145 + $0xe0] sm:$0xff] %vm568, %v564
      %598 = vst.msk [vmem:[%s145 + $0xe8] sm:$0xff] %vm568, %v565
      %599 = vst.msk [vmem:[%s145 + $0xf0] sm:$0xff] %vm568, %v566
      %600 = vst.msk [vmem:[%s145 + $0xf8] sm:$0xff] %vm568, %v567
      %v601 = vand.u32 2147483647, %v345
      %vm602 = vcmp.le.f32.partialorder %v601, 0.7853982
      %vm603 = vcmp.lt.s32.totalorder %v345, 0
      %v604 = vand.u32 %v345, 2139095040
      %v605 = vshrl.u32 %v604, 23
      %v606 = vsub.s32 %v605, 127
      %v607 = vand.u32 2147483647, %v345
      %v608 = vand.u32 %v607, 8388607
      %v609 = vor.u32 %v608, 8388608
      %v610 = vsub.s32 0, %v609
      %v611 = vadd.s32 %v606, 1
      %vm612 = vcmp.gt.s32.totalorder %v611, 0
      %v613 = vsel %vm612, %v611, 0
      %v614 = vshrl.u32 %v613, 5
      %v615 = vand.u32 %v613, 31
      %v616 = vsub.s32 32, %v615
      %v617 = vshrl.u32 683565275, %v616
      %v618 = vshll.u32 683565275, %v615
      %v619 = vshrl.u32 2475754826, %v616
      %v620 = vor.u32 %v618, %v619
      %v621 = vshll.u32 2475754826, %v615
      %v622 = vshrl.u32 2131351028, %v616
      %v623 = vor.u32 %v621, %v622
      %v624 = vshll.u32 2131351028, %v615
      %v625 = vshrl.u32 2102212464, %v616
      %v626 = vor.u32 %v624, %v625
      %v627 = vshll.u32 2102212464, %v615
      %v628 = vshrl.u32 920167782, %v616
      %v629 = vor.u32 %v627, %v628
      %v630 = vshll.u32 920167782, %v615
      %v631 = vshrl.u32 1326507024, %v616
      %v632 = vor.u32 %v630, %v631
      %vm633 = vcmp.lt.s32.totalorder %v614, 1
      %vm634 = vcmp.lt.s32.totalorder %v614, 2
      %vm635 = vcmp.lt.s32.totalorder %v614, 3
      %vm636 = vcmp.lt.s32.totalorder %v614, 4
      %v637 = vsel %vm633, %v617, %v620
      %v638 = vsel %vm636, %v626, 2102212464
      %v639 = vsel %vm635, %v623, %v638
      %v640 = vsel %vm634, %v637, %v639
      %v641 = vsel %vm633, %v620, %v623
      %v642 = vsel %vm636, %v629, 920167782
      %v643 = vsel %vm635, %v626, %v642
      %v644 = vsel %vm634, %v641, %v643
      %v645 = vsel %vm633, %v623, %v626
      %v646 = vsel %vm636, %v632, 1326507024
      %v647 = vsel %vm635, %v629, %v646
      %v648 = vsel %vm634, %v645, %v647
      %v649 = vshll.u32 %v609, 8
      %v650 = vmul.u32.u64.compose %v649, %v648
      %v651 = vextract.low.u32 %v650
      %v652 = vextract.high.u32 %v650
      %v653 = vmul.u32.u64.compose %v649, %v644
      %v654 = vextract.low.u32 %v653
      %v655 = vextract.high.u32 %v653
      %v656 = vmul.u32 %v649, %v640
      %v657 = vadd.s32 %v652, %v654
      %vm658 = vc.u32 %v652, %v654
      %v659 = vadd.s32 %v655, 1
      %v660 = vsel %vm658, %v659, %v655
      %v661 = vadd.s32 %v656, %v660
      %v662 = vadd.s32 %v661, 536870912
      %v663 = vshrl.u32 %v662, 30
      %v664 = vshll.u32 %v663, 30
      %v665 = vsub.s32 %v661, %v664
      %vm666 = vcmp.lt.s32.totalorder %v665, 0
      %v667 = vsub.s32 0, %v665
      %v668 = vsel %vm666, %v667, %v665
      %v669 = vclz %v668
      %v670 = vsub.s32 %v669, 2
      %vm671 = vcmp.gt.s32.totalorder 0, %v670
      %v672 = vsel %vm671, 0, %v670
      %v673 = vsub.s32 32, %v672
      %v674 = vshll.u32 %v665, %v672
      %v675 = vshrl.u32 %v657, %v673
      %v676 = vor.u32 %v674, %v675
      %v677 = vsub.s32 4294967266, %v672
      %v678 = vadd.s32 %v677, 127
      %v679 = vshll.u32 %v678, 23
      %v680 = vor.u32 4788187, %v679
      %v681 = vand.u32 2147483647, %v680
      %v683 = vcvt.s32.f32 %v676
      %v684 = vmul.f32 %v683, %v681
      %v685 = vxor.u32 %v684, 2147483648
      %v686 = vsel %vm603, %v685, %v684
      %v687 = vsub.s32 4, %v663
      %v688 = vsel %vm603, %v687, %v663
      %v689 = vsel %vm602, %v345, %v686
      %v690 = vsel %vm602, 0, %v688
      %v691 = vcosq.f32.pop %v689
      %v692 = vsinq.f32.pop %v689
      %vm693 = vweird.f32 %v345
      %v694 = vadd.s32 %v690, 3
      %v695 = vand.u32 %v694, 3
      %vm696 = vcmp.lt.s32.totalorder %v695, 2
      %vm697 = vcmp.eq.s32.totalorder %v695, 0
      %v698 = vxor.u32 %v692, 2147483648
      %v699 = vsel %vm697, %v691, %v698
      %vm700 = vcmp.eq.s32.totalorder %v695, 2
      %v701 = vxor.u32 %v691, 2147483648
      %v702 = vsel %vm700, %v701, %v692
      %v703 = vsel %vm696, %v699, %v702
      %v704 = vsel %vm693, nan, %v703
      %v705 = vand.u32 2147483647, %v350
      %vm706 = vcmp.le.f32.partialorder %v705, 0.7853982
      %vm707 = vcmp.lt.s32.totalorder %v350, 0
      %v708 = vand.u32 %v350, 2139095040
      %v709 = vshrl.u32 %v708, 23
      %v710 = vsub.s32 %v709, 127
      %v711 = vand.u32 2147483647, %v350
      %v712 = vand.u32 %v711, 8388607
      %v713 = vor.u32 %v712, 8388608
      %v714 = vsub.s32 0, %v713
      %v715 = vadd.s32 %v710, 1
      %vm716 = vcmp.gt.s32.totalorder %v715, 0
      %v717 = vsel %vm716, %v715, 0
      %v718 = vshrl.u32 %v717, 5
      %v719 = vand.u32 %v717, 31
      %v720 = vsub.s32 32, %v719
      %v721 = vshrl.u32 683565275, %v720
      %v722 = vshll.u32 683565275, %v719
      %v723 = vshrl.u32 2475754826, %v720
      %v724 = vor.u32 %v722, %v723
      %v725 = vshll.u32 2475754826, %v719
      %v726 = vshrl.u32 2131351028, %v720
      %v727 = vor.u32 %v725, %v726
      %v728 = vshll.u32 2131351028, %v719
      %v729 = vshrl.u32 2102212464, %v720
      %v730 = vor.u32 %v728, %v729
      %v731 = vshll.u32 2102212464, %v719
      %v732 = vshrl.u32 920167782, %v720
      %v733 = vor.u32 %v731, %v732
      %v734 = vshll.u32 920167782, %v719
      %v735 = vshrl.u32 1326507024, %v720
      %v736 = vor.u32 %v734, %v735
      %vm737 = vcmp.lt.s32.totalorder %v718, 1
      %vm738 = vcmp.lt.s32.totalorder %v718, 2
      %vm739 = vcmp.lt.s32.totalorder %v718, 3
      %vm740 = vcmp.lt.s32.totalorder %v718, 4
      %v741 = vsel %vm737, %v721, %v724
      %v742 = vsel %vm740, %v730, 2102212464
      %v743 = vsel %vm739, %v727, %v742
      %v744 = vsel %vm738, %v741, %v743
      %v745 = vsel %vm737, %v724, %v727
      %v746 = vsel %vm740, %v733, 920167782
      %v747 = vsel %vm739, %v730, %v746
      %v748 = vsel %vm738, %v745, %v747
      %v749 = vsel %vm737, %v727, %v730
      %v750 = vsel %vm740, %v736, 1326507024
      %v751 = vsel %vm739, %v733, %v750
      %v752 = vsel %vm738, %v749, %v751
      %v753 = vshll.u32 %v713, 8
      %v754 = vmul.u32.u64.compose %v753, %v752
      %v755 = vextract.low.u32 %v754
      %v756 = vextract.high.u32 %v754
      %v757 = vmul.u32.u64.compose %v753, %v748
      %v758 = vextract.low.u32 %v757
      %v759 = vextract.high.u32 %v757
      %v760 = vmul.u32 %v753, %v744
      %v761 = vadd.s32 %v756, %v758
      %vm762 = vc.u32 %v756, %v758
      %v763 = vadd.s32 %v759, 1
      %v764 = vsel %vm762, %v763, %v759
      %v765 = vadd.s32 %v760, %v764
      %v766 = vadd.s32 %v765, 536870912
      %v767 = vshrl.u32 %v766, 30
      %v768 = vshll.u32 %v767, 30
      %v769 = vsub.s32 %v765, %v768
      %vm770 = vcmp.lt.s32.totalorder %v769, 0
      %v771 = vsub.s32 0, %v769
      %v772 = vsel %vm770, %v771, %v769
      %v773 = vclz %v772
      %v774 = vsub.s32 %v773, 2
      %vm775 = vcmp.gt.s32.totalorder 0, %v774
      %v776 = vsel %vm775, 0, %v774
      %v777 = vsub.s32 32, %v776
      %v778 = vshll.u32 %v769, %v776
      %v779 = vshrl.u32 %v761, %v777
      %v780 = vor.u32 %v778, %v779
      %v781 = vsub.s32 4294967266, %v776
      %v782 = vadd.s32 %v781, 127
      %v783 = vshll.u32 %v782, 23
      %v784 = vor.u32 4788187, %v783
      %v785 = vand.u32 2147483647, %v784
      %v787 = vcvt.s32.f32 %v780
      %v788 = vmul.f32 %v787, %v785
      %v789 = vxor.u32 %v788, 2147483648
      %v790 = vsel %vm707, %v789, %v788
      %v791 = vsub.s32 4, %v767
      %v792 = vsel %vm707, %v791, %v767
      %v793 = vsel %vm706, %v350, %v790
      %v794 = vsel %vm706, 0, %v792
      %v795 = vcosq.f32.pop %v793
      %v796 = vsinq.f32.pop %v793
      %vm797 = vweird.f32 %v350
      %v798 = vadd.s32 %v794, 3
      %v799 = vand.u32 %v798, 3
      %vm800 = vcmp.lt.s32.totalorder %v799, 2
      %vm801 = vcmp.eq.s32.totalorder %v799, 0
      %v802 = vxor.u32 %v796, 2147483648
      %v803 = vsel %vm801, %v795, %v802
      %vm804 = vcmp.eq.s32.totalorder %v799, 2
      %v805 = vxor.u32 %v795, 2147483648
      %v806 = vsel %vm804, %v805, %v796
      %v807 = vsel %vm800, %v803, %v806
      %v808 = vsel %vm797, nan, %v807
      %v809 = vand.u32 2147483647, %v355
      %vm810 = vcmp.le.f32.partialorder %v809, 0.7853982
      %vm811 = vcmp.lt.s32.totalorder %v355, 0
      %v812 = vand.u32 %v355, 2139095040
      %v813 = vshrl.u32 %v812, 23
      %v814 = vsub.s32 %v813, 127
      %v815 = vand.u32 2147483647, %v355
      %v816 = vand.u32 %v815, 8388607
      %v817 = vor.u32 %v816, 8388608
      %v818 = vsub.s32 0, %v817
      %v819 = vadd.s32 %v814, 1
      %vm820 = vcmp.gt.s32.totalorder %v819, 0
      %v821 = vsel %vm820, %v819, 0
      %v822 = vshrl.u32 %v821, 5
      %v823 = vand.u32 %v821, 31
      %v824 = vsub.s32 32, %v823
      %v825 = vshrl.u32 683565275, %v824
      %v826 = vshll.u32 683565275, %v823
      %v827 = vshrl.u32 2475754826, %v824
      %v828 = vor.u32 %v826, %v827
      %v829 = vshll.u32 2475754826, %v823
      %v830 = vshrl.u32 2131351028, %v824
      %v831 = vor.u32 %v829, %v830
      %v832 = vshll.u32 2131351028, %v823
      %v833 = vshrl.u32 2102212464, %v824
      %v834 = vor.u32 %v832, %v833
      %v835 = vshll.u32 2102212464, %v823
      %v836 = vshrl.u32 920167782, %v824
      %v837 = vor.u32 %v835, %v836
      %v838 = vshll.u32 920167782, %v823
      %v839 = vshrl.u32 1326507024, %v824
      %v840 = vor.u32 %v838, %v839
      %vm841 = vcmp.lt.s32.totalorder %v822, 1
      %vm842 = vcmp.lt.s32.totalorder %v822, 2
      %vm843 = vcmp.lt.s32.totalorder %v822, 3
      %vm844 = vcmp.lt.s32.totalorder %v822, 4
      %v845 = vsel %vm841, %v825, %v828
      %v846 = vsel %vm844, %v834, 2102212464
      %v847 = vsel %vm843, %v831, %v846
      %v848 = vsel %vm842, %v845, %v847
      %v849 = vsel %vm841, %v828, %v831
      %v850 = vsel %vm844, %v837, 920167782
      %v851 = vsel %vm843, %v834, %v850
      %v852 = vsel %vm842, %v849, %v851
      %v853 = vsel %vm841, %v831, %v834
      %v854 = vsel %vm844, %v840, 1326507024
      %v855 = vsel %vm843, %v837, %v854
      %v856 = vsel %vm842, %v853, %v855
      %v857 = vshll.u32 %v817, 8
      %v858 = vmul.u32.u64.compose %v857, %v856
      %v859 = vextract.low.u32 %v858
      %v860 = vextract.high.u32 %v858
      %v861 = vmul.u32.u64.compose %v857, %v852
      %v862 = vextract.low.u32 %v861
      %v863 = vextract.high.u32 %v861
      %v864 = vmul.u32 %v857, %v848
      %v865 = vadd.s32 %v860, %v862
      %vm866 = vc.u32 %v860, %v862
      %v867 = vadd.s32 %v863, 1
      %v868 = vsel %vm866, %v867, %v863
      %v869 = vadd.s32 %v864, %v868
      %v870 = vadd.s32 %v869, 536870912
      %v871 = vshrl.u32 %v870, 30
      %v872 = vshll.u32 %v871, 30
      %v873 = vsub.s32 %v869, %v872
      %vm874 = vcmp.lt.s32.totalorder %v873, 0
      %v875 = vsub.s32 0, %v873
      %v876 = vsel %vm874, %v875, %v873
      %v877 = vclz %v876
      %v878 = vsub.s32 %v877, 2
      %vm879 = vcmp.gt.s32.totalorder 0, %v878
      %v880 = vsel %vm879, 0, %v878
      %v881 = vsub.s32 32, %v880
      %v882 = vshll.u32 %v873, %v880
      %v883 = vshrl.u32 %v865, %v881
      %v884 = vor.u32 %v882, %v883
      %v885 = vsub.s32 4294967266, %v880
      %v886 = vadd.s32 %v885, 127
      %v887 = vshll.u32 %v886, 23
      %v888 = vor.u32 4788187, %v887
      %v889 = vand.u32 2147483647, %v888
      %v891 = vcvt.s32.f32 %v884
      %v892 = vmul.f32 %v891, %v889
      %v893 = vxor.u32 %v892, 2147483648
      %v894 = vsel %vm811, %v893, %v892
      %v895 = vsub.s32 4, %v871
      %v896 = vsel %vm811, %v895, %v871
      %v897 = vsel %vm810, %v355, %v894
      %v898 = vsel %vm810, 0, %v896
      %v899 = vcosq.f32.pop %v897
      %v900 = vsinq.f32.pop %v897
      %vm901 = vweird.f32 %v355
      %v902 = vadd.s32 %v898, 3
      %v903 = vand.u32 %v902, 3
      %vm904 = vcmp.lt.s32.totalorder %v903, 2
      %vm905 = vcmp.eq.s32.totalorder %v903, 0
      %v906 = vxor.u32 %v900, 2147483648
      %v907 = vsel %vm905, %v899, %v906
      %vm908 = vcmp.eq.s32.totalorder %v903, 2
      %v909 = vxor.u32 %v899, 2147483648
      %v910 = vsel %vm908, %v909, %v900
      %v911 = vsel %vm904, %v907, %v910
      %v912 = vsel %vm901, nan, %v911
      %v913 = vand.u32 2147483647, %v360
      %vm914 = vcmp.le.f32.partialorder %v913, 0.7853982
      %vm915 = vcmp.lt.s32.totalorder %v360, 0
      %v916 = vand.u32 %v360, 2139095040
      %v917 = vshrl.u32 %v916, 23
      %v918 = vsub.s32 %v917, 127
      %v919 = vand.u32 2147483647, %v360
      %v920 = vand.u32 %v919, 8388607
      %v921 = vor.u32 %v920, 8388608
      %v922 = vsub.s32 0, %v921
      %v923 = vadd.s32 %v918, 1
      %vm924 = vcmp.gt.s32.totalorder %v923, 0
      %v925 = vsel %vm924, %v923, 0
      %v926 = vshrl.u32 %v925, 5
      %v927 = vand.u32 %v925, 31
      %v928 = vsub.s32 32, %v927
      %v929 = vshrl.u32 683565275, %v928
      %v930 = vshll.u32 683565275, %v927
      %v931 = vshrl.u32 2475754826, %v928
      %v932 = vor.u32 %v930, %v931
      %v933 = vshll.u32 2475754826, %v927
      %v934 = vshrl.u32 2131351028, %v928
      %v935 = vor.u32 %v933, %v934
      %v936 = vshll.u32 2131351028, %v927
      %v937 = vshrl.u32 2102212464, %v928
      %v938 = vor.u32 %v936, %v937
      %v939 = vshll.u32 2102212464, %v927
      %v940 = vshrl.u32 920167782, %v928
      %v941 = vor.u32 %v939, %v940
      %v942 = vshll.u32 920167782, %v927
      %v943 = vshrl.u32 1326507024, %v928
      %v944 = vor.u32 %v942, %v943
      %vm945 = vcmp.lt.s32.totalorder %v926, 1
      %vm946 = vcmp.lt.s32.totalorder %v926, 2
      %vm947 = vcmp.lt.s32.totalorder %v926, 3
      %vm948 = vcmp.lt.s32.totalorder %v926, 4
      %v949 = vsel %vm945, %v929, %v932
      %v950 = vsel %vm948, %v938, 2102212464
      %v951 = vsel %vm947, %v935, %v950
      %v952 = vsel %vm946, %v949, %v951
      %v953 = vsel %vm945, %v932, %v935
      %v954 = vsel %vm948, %v941, 920167782
      %v955 = vsel %vm947, %v938, %v954
      %v956 = vsel %vm946, %v953, %v955
      %v957 = vsel %vm945, %v935, %v938
      %v958 = vsel %vm948, %v944, 1326507024
      %v959 = vsel %vm947, %v941, %v958
      %v960 = vsel %vm946, %v957, %v959
      %v961 = vshll.u32 %v921, 8
      %v962 = vmul.u32.u64.compose %v961, %v960
      %v963 = vextract.low.u32 %v962
      %v964 = vextract.high.u32 %v962
      %v965 = vmul.u32.u64.compose %v961, %v956
      %v966 = vextract.low.u32 %v965
      %v967 = vextract.high.u32 %v965
      %v968 = vmul.u32 %v961, %v952
      %v969 = vadd.s32 %v964, %v966
      %vm970 = vc.u32 %v964, %v966
      %v971 = vadd.s32 %v967, 1
      %v972 = vsel %vm970, %v971, %v967
      %v973 = vadd.s32 %v968, %v972
      %v974 = vadd.s32 %v973, 536870912
      %v975 = vshrl.u32 %v974, 30
      %v976 = vshll.u32 %v975, 30
      %v977 = vsub.s32 %v973, %v976
      %vm978 = vcmp.lt.s32.totalorder %v977, 0
      %v979 = vsub.s32 0, %v977
      %v980 = vsel %vm978, %v979, %v977
      %v981 = vclz %v980
      %v982 = vsub.s32 %v981, 2
      %vm983 = vcmp.gt.s32.totalorder 0, %v982
      %v984 = vsel %vm983, 0, %v982
      %v985 = vsub.s32 32, %v984
      %v986 = vshll.u32 %v977, %v984
      %v987 = vshrl.u32 %v969, %v985
      %v988 = vor.u32 %v986, %v987
      %v989 = vsub.s32 4294967266, %v984
      %v990 = vadd.s32 %v989, 127
      %v991 = vshll.u32 %v990, 23
      %v992 = vor.u32 4788187, %v991
      %v993 = vand.u32 2147483647, %v992
      %v995 = vcvt.s32.f32 %v988
      %v996 = vmul.f32 %v995, %v993
      %v997 = vxor.u32 %v996, 2147483648
      %v998 = vsel %vm915, %v997, %v996
      %v999 = vsub.s32 4, %v975
      %v1000 = vsel %vm915, %v999, %v975
      %v1001 = vsel %vm914, %v360, %v998
      %v1002 = vsel %vm914, 0, %v1000
      %v1003 = vcosq.f32.pop %v1001
      %v1004 = vsinq.f32.pop %v1001
      %vm1005 = vweird.f32 %v360
      %v1006 = vadd.s32 %v1002, 3
      %v1007 = vand.u32 %v1006, 3
      %vm1008 = vcmp.lt.s32.totalorder %v1007, 2
      %vm1009 = vcmp.eq.s32.totalorder %v1007, 0
      %v1010 = vxor.u32 %v1004, 2147483648
      %v1011 = vsel %vm1009, %v1003, %v1010
      %vm1012 = vcmp.eq.s32.totalorder %v1007, 2
      %v1013 = vxor.u32 %v1003, 2147483648
      %v1014 = vsel %vm1012, %v1013, %v1004
      %v1015 = vsel %vm1008, %v1011, %v1014
      %v1016 = vsel %vm1005, nan, %v1015
      %v1017 = vand.u32 2147483647, %v365
      %vm1018 = vcmp.le.f32.partialorder %v1017, 0.7853982
      %vm1019 = vcmp.lt.s32.totalorder %v365, 0
      %v1020 = vand.u32 %v365, 2139095040
      %v1021 = vshrl.u32 %v1020, 23
      %v1022 = vsub.s32 %v1021, 127
      %v1023 = vand.u32 2147483647, %v365
      %v1024 = vand.u32 %v1023, 8388607
      %v1025 = vor.u32 %v1024, 8388608
      %v1026 = vsub.s32 0, %v1025
      %v1027 = vadd.s32 %v1022, 1
      %vm1028 = vcmp.gt.s32.totalorder %v1027, 0
      %v1029 = vsel %vm1028, %v1027, 0
      %v1030 = vshrl.u32 %v1029, 5
      %v1031 = vand.u32 %v1029, 31
      %v1032 = vsub.s32 32, %v1031
      %v1033 = vshrl.u32 683565275, %v1032
      %v1034 = vshll.u32 683565275, %v1031
      %v1035 = vshrl.u32 2475754826, %v1032
      %v1036 = vor.u32 %v1034, %v1035
      %v1037 = vshll.u32 2475754826, %v1031
      %v1038 = vshrl.u32 2131351028, %v1032
      %v1039 = vor.u32 %v1037, %v1038
      %v1040 = vshll.u32 2131351028, %v1031
      %v1041 = vshrl.u32 2102212464, %v1032
      %v1042 = vor.u32 %v1040, %v1041
      %v1043 = vshll.u32 2102212464, %v1031
      %v1044 = vshrl.u32 920167782, %v1032
      %v1045 = vor.u32 %v1043, %v1044
      %v1046 = vshll.u32 920167782, %v1031
      %v1047 = vshrl.u32 1326507024, %v1032
      %v1048 = vor.u32 %v1046, %v1047
      %vm1049 = vcmp.lt.s32.totalorder %v1030, 1
      %vm1050 = vcmp.lt.s32.totalorder %v1030, 2
      %vm1051 = vcmp.lt.s32.totalorder %v1030, 3
      %vm1052 = vcmp.lt.s32.totalorder %v1030, 4
      %v1053 = vsel %vm1049, %v1033, %v1036
      %v1054 = vsel %vm1052, %v1042, 2102212464
      %v1055 = vsel %vm1051, %v1039, %v1054
      %v1056 = vsel %vm1050, %v1053, %v1055
      %v1057 = vsel %vm1049, %v1036, %v1039
      %v1058 = vsel %vm1052, %v1045, 920167782
      %v1059 = vsel %vm1051, %v1042, %v1058
      %v1060 = vsel %vm1050, %v1057, %v1059
      %v1061 = vsel %vm1049, %v1039, %v1042
      %v1062 = vsel %vm1052, %v1048, 1326507024
      %v1063 = vsel %vm1051, %v1045, %v1062
      %v1064 = vsel %vm1050, %v1061, %v1063
      %v1065 = vshll.u32 %v1025, 8
      %v1066 = vmul.u32.u64.compose %v1065, %v1064
      %v1067 = vextract.low.u32 %v1066
      %v1068 = vextract.high.u32 %v1066
      %v1069 = vmul.u32.u64.compose %v1065, %v1060
      %v1070 = vextract.low.u32 %v1069
      %v1071 = vextract.high.u32 %v1069
      %v1072 = vmul.u32 %v1065, %v1056
      %v1073 = vadd.s32 %v1068, %v1070
      %vm1074 = vc.u32 %v1068, %v1070
      %v1075 = vadd.s32 %v1071, 1
      %v1076 = vsel %vm1074, %v1075, %v1071
      %v1077 = vadd.s32 %v1072, %v1076
      %v1078 = vadd.s32 %v1077, 536870912
      %v1079 = vshrl.u32 %v1078, 30
      %v1080 = vshll.u32 %v1079, 30
      %v1081 = vsub.s32 %v1077, %v1080
      %vm1082 = vcmp.lt.s32.totalorder %v1081, 0
      %v1083 = vsub.s32 0, %v1081
      %v1084 = vsel %vm1082, %v1083, %v1081
      %v1085 = vclz %v1084
      %v1086 = vsub.s32 %v1085, 2
      %vm1087 = vcmp.gt.s32.totalorder 0, %v1086
      %v1088 = vsel %vm1087, 0, %v1086
      %v1089 = vsub.s32 32, %v1088
      %v1090 = vshll.u32 %v1081, %v1088
      %v1091 = vshrl.u32 %v1073, %v1089
      %v1092 = vor.u32 %v1090, %v1091
      %v1093 = vsub.s32 4294967266, %v1088
      %v1094 = vadd.s32 %v1093, 127
      %v1095 = vshll.u32 %v1094, 23
      %v1096 = vor.u32 4788187, %v1095
      %v1097 = vand.u32 2147483647, %v1096
      %v1099 = vcvt.s32.f32 %v1092
      %v1100 = vmul.f32 %v1099, %v1097
      %v1101 = vxor.u32 %v1100, 2147483648
      %v1102 = vsel %vm1019, %v1101, %v1100
      %v1103 = vsub.s32 4, %v1079
      %v1104 = vsel %vm1019, %v1103, %v1079
      %v1105 = vsel %vm1018, %v365, %v1102
      %v1106 = vsel %vm1018, 0, %v1104
      %v1107 = vcosq.f32.pop %v1105
      %v1108 = vsinq.f32.pop %v1105
      %vm1109 = vweird.f32 %v365
      %v1110 = vadd.s32 %v1106, 3
      %v1111 = vand.u32 %v1110, 3
      %vm1112 = vcmp.lt.s32.totalorder %v1111, 2
      %vm1113 = vcmp.eq.s32.totalorder %v1111, 0
      %v1114 = vxor.u32 %v1108, 2147483648
      %v1115 = vsel %vm1113, %v1107, %v1114
      %vm1116 = vcmp.eq.s32.totalorder %v1111, 2
      %v1117 = vxor.u32 %v1107, 2147483648
      %v1118 = vsel %vm1116, %v1117, %v1108
      %v1119 = vsel %vm1112, %v1115, %v1118
      %v1120 = vsel %vm1109, nan, %v1119
      %v1121 = vand.u32 2147483647, %v370
      %vm1122 = vcmp.le.f32.partialorder %v1121, 0.7853982
      %vm1123 = vcmp.lt.s32.totalorder %v370, 0
      %v1124 = vand.u32 %v370, 2139095040
      %v1125 = vshrl.u32 %v1124, 23
      %v1126 = vsub.s32 %v1125, 127
      %v1127 = vand.u32 2147483647, %v370
      %v1128 = vand.u32 %v1127, 8388607
      %v1129 = vor.u32 %v1128, 8388608
      %v1130 = vsub.s32 0, %v1129
      %v1131 = vadd.s32 %v1126, 1
      %vm1132 = vcmp.gt.s32.totalorder %v1131, 0
      %v1133 = vsel %vm1132, %v1131, 0
      %v1134 = vshrl.u32 %v1133, 5
      %v1135 = vand.u32 %v1133, 31
      %v1136 = vsub.s32 32, %v1135
      %v1137 = vshrl.u32 683565275, %v1136
      %v1138 = vshll.u32 683565275, %v1135
      %v1139 = vshrl.u32 2475754826, %v1136
      %v1140 = vor.u32 %v1138, %v1139
      %v1141 = vshll.u32 2475754826, %v1135
      %v1142 = vshrl.u32 2131351028, %v1136
      %v1143 = vor.u32 %v1141, %v1142
      %v1144 = vshll.u32 2131351028, %v1135
      %v1145 = vshrl.u32 2102212464, %v1136
      %v1146 = vor.u32 %v1144, %v1145
      %v1147 = vshll.u32 2102212464, %v1135
      %v1148 = vshrl.u32 920167782, %v1136
      %v1149 = vor.u32 %v1147, %v1148
      %v1150 = vshll.u32 920167782, %v1135
      %v1151 = vshrl.u32 1326507024, %v1136
      %v1152 = vor.u32 %v1150, %v1151
      %vm1153 = vcmp.lt.s32.totalorder %v1134, 1
      %vm1154 = vcmp.lt.s32.totalorder %v1134, 2
      %vm1155 = vcmp.lt.s32.totalorder %v1134, 3
      %vm1156 = vcmp.lt.s32.totalorder %v1134, 4
      %v1157 = vsel %vm1153, %v1137, %v1140
      %v1158 = vsel %vm1156, %v1146, 2102212464
      %v1159 = vsel %vm1155, %v1143, %v1158
      %v1160 = vsel %vm1154, %v1157, %v1159
      %v1161 = vsel %vm1153, %v1140, %v1143
      %v1162 = vsel %vm1156, %v1149, 920167782
      %v1163 = vsel %vm1155, %v1146, %v1162
      %v1164 = vsel %vm1154, %v1161, %v1163
      %v1165 = vsel %vm1153, %v1143, %v1146
      %v1166 = vsel %vm1156, %v1152, 1326507024
      %v1167 = vsel %vm1155, %v1149, %v1166
      %v1168 = vsel %vm1154, %v1165, %v1167
      %v1169 = vshll.u32 %v1129, 8
      %v1170 = vmul.u32.u64.compose %v1169, %v1168
      %v1171 = vextract.low.u32 %v1170
      %v1172 = vextract.high.u32 %v1170
      %v1173 = vmul.u32.u64.compose %v1169, %v1164
      %v1174 = vextract.low.u32 %v1173
      %v1175 = vextract.high.u32 %v1173
      %v1176 = vmul.u32 %v1169, %v1160
      %v1177 = vadd.s32 %v1172, %v1174
      %vm1178 = vc.u32 %v1172, %v1174
      %v1179 = vadd.s32 %v1175, 1
      %v1180 = vsel %vm1178, %v1179, %v1175
      %v1181 = vadd.s32 %v1176, %v1180
      %v1182 = vadd.s32 %v1181, 536870912
      %v1183 = vshrl.u32 %v1182, 30
      %v1184 = vshll.u32 %v1183, 30
      %v1185 = vsub.s32 %v1181, %v1184
      %vm1186 = vcmp.lt.s32.totalorder %v1185, 0
      %v1187 = vsub.s32 0, %v1185
      %v1188 = vsel %vm1186, %v1187, %v1185
      %v1189 = vclz %v1188
      %v1190 = vsub.s32 %v1189, 2
      %vm1191 = vcmp.gt.s32.totalorder 0, %v1190
      %v1192 = vsel %vm1191, 0, %v1190
      %v1193 = vsub.s32 32, %v1192
      %v1194 = vshll.u32 %v1185, %v1192
      %v1195 = vshrl.u32 %v1177, %v1193
      %v1196 = vor.u32 %v1194, %v1195
      %v1197 = vsub.s32 4294967266, %v1192
      %v1198 = vadd.s32 %v1197, 127
      %v1199 = vshll.u32 %v1198, 23
      %v1200 = vor.u32 4788187, %v1199
      %v1201 = vand.u32 2147483647, %v1200
      %v1203 = vcvt.s32.f32 %v1196
      %v1204 = vmul.f32 %v1203, %v1201
      %v1205 = vxor.u32 %v1204, 2147483648
      %v1206 = vsel %vm1123, %v1205, %v1204
      %v1207 = vsub.s32 4, %v1183
      %v1208 = vsel %vm1123, %v1207, %v1183
      %v1209 = vsel %vm1122, %v370, %v1206
      %v1210 = vsel %vm1122, 0, %v1208
      %v1211 = vcosq.f32.pop %v1209
      %v1212 = vsinq.f32.pop %v1209
      %vm1213 = vweird.f32 %v370
      %v1214 = vadd.s32 %v1210, 3
      %v1215 = vand.u32 %v1214, 3
      %vm1216 = vcmp.lt.s32.totalorder %v1215, 2
      %vm1217 = vcmp.eq.s32.totalorder %v1215, 0
      %v1218 = vxor.u32 %v1212, 2147483648
      %v1219 = vsel %vm1217, %v1211, %v1218
      %vm1220 = vcmp.eq.s32.totalorder %v1215, 2
      %v1221 = vxor.u32 %v1211, 2147483648
      %v1222 = vsel %vm1220, %v1221, %v1212
      %v1223 = vsel %vm1216, %v1219, %v1222
      %v1224 = vsel %vm1213, nan, %v1223
      %v1225 = vand.u32 2147483647, %v375
      %vm1226 = vcmp.le.f32.partialorder %v1225, 0.7853982
      %vm1227 = vcmp.lt.s32.totalorder %v375, 0
      %v1228 = vand.u32 %v375, 2139095040
      %v1229 = vshrl.u32 %v1228, 23
      %v1230 = vsub.s32 %v1229, 127
      %v1231 = vand.u32 2147483647, %v375
      %v1232 = vand.u32 %v1231, 8388607
      %v1233 = vor.u32 %v1232, 8388608
      %v1234 = vsub.s32 0, %v1233
      %v1235 = vadd.s32 %v1230, 1
      %vm1236 = vcmp.gt.s32.totalorder %v1235, 0
      %v1237 = vsel %vm1236, %v1235, 0
      %v1238 = vshrl.u32 %v1237, 5
      %v1239 = vand.u32 %v1237, 31
      %v1240 = vsub.s32 32, %v1239
      %v1241 = vshrl.u32 683565275, %v1240
      %v1242 = vshll.u32 683565275, %v1239
      %v1243 = vshrl.u32 2475754826, %v1240
      %v1244 = vor.u32 %v1242, %v1243
      %v1245 = vshll.u32 2475754826, %v1239
      %v1246 = vshrl.u32 2131351028, %v1240
      %v1247 = vor.u32 %v1245, %v1246
      %v1248 = vshll.u32 2131351028, %v1239
      %v1249 = vshrl.u32 2102212464, %v1240
      %v1250 = vor.u32 %v1248, %v1249
      %v1251 = vshll.u32 2102212464, %v1239
      %v1252 = vshrl.u32 920167782, %v1240
      %v1253 = vor.u32 %v1251, %v1252
      %v1254 = vshll.u32 920167782, %v1239
      %v1255 = vshrl.u32 1326507024, %v1240
      %v1256 = vor.u32 %v1254, %v1255
      %vm1257 = vcmp.lt.s32.totalorder %v1238, 1
      %vm1258 = vcmp.lt.s32.totalorder %v1238, 2
      %vm1259 = vcmp.lt.s32.totalorder %v1238, 3
      %vm1260 = vcmp.lt.s32.totalorder %v1238, 4
      %v1261 = vsel %vm1257, %v1241, %v1244
      %v1262 = vsel %vm1260, %v1250, 2102212464
      %v1263 = vsel %vm1259, %v1247, %v1262
      %v1264 = vsel %vm1258, %v1261, %v1263
      %v1265 = vsel %vm1257, %v1244, %v1247
      %v1266 = vsel %vm1260, %v1253, 920167782
      %v1267 = vsel %vm1259, %v1250, %v1266
      %v1268 = vsel %vm1258, %v1265, %v1267
      %v1269 = vsel %vm1257, %v1247, %v1250
      %v1270 = vsel %vm1260, %v1256, 1326507024
      %v1271 = vsel %vm1259, %v1253, %v1270
      %v1272 = vsel %vm1258, %v1269, %v1271
      %v1273 = vshll.u32 %v1233, 8
      %v1274 = vmul.u32.u64.compose %v1273, %v1272
      %v1275 = vextract.low.u32 %v1274
      %v1276 = vextract.high.u32 %v1274
      %v1277 = vmul.u32.u64.compose %v1273, %v1268
      %v1278 = vextract.low.u32 %v1277
      %v1279 = vextract.high.u32 %v1277
      %v1280 = vmul.u32 %v1273, %v1264
      %v1281 = vadd.s32 %v1276, %v1278
      %vm1282 = vc.u32 %v1276, %v1278
      %v1283 = vadd.s32 %v1279, 1
      %v1284 = vsel %vm1282, %v1283, %v1279
      %v1285 = vadd.s32 %v1280, %v1284
      %v1286 = vadd.s32 %v1285, 536870912
      %v1287 = vshrl.u32 %v1286, 30
      %v1288 = vshll.u32 %v1287, 30
      %v1289 = vsub.s32 %v1285, %v1288
      %vm1290 = vcmp.lt.s32.totalorder %v1289, 0
      %v1291 = vsub.s32 0, %v1289
      %v1292 = vsel %vm1290, %v1291, %v1289
      %v1293 = vclz %v1292
      %v1294 = vsub.s32 %v1293, 2
      %vm1295 = vcmp.gt.s32.totalorder 0, %v1294
      %v1296 = vsel %vm1295, 0, %v1294
      %v1297 = vsub.s32 32, %v1296
      %v1298 = vshll.u32 %v1289, %v1296
      %v1299 = vshrl.u32 %v1281, %v1297
      %v1300 = vor.u32 %v1298, %v1299
      %v1301 = vsub.s32 4294967266, %v1296
      %v1302 = vadd.s32 %v1301, 127
      %v1303 = vshll.u32 %v1302, 23
      %v1304 = vor.u32 4788187, %v1303
      %v1305 = vand.u32 2147483647, %v1304
      %v1307 = vcvt.s32.f32 %v1300
      %v1308 = vmul.f32 %v1307, %v1305
      %v1309 = vxor.u32 %v1308, 2147483648
      %v1310 = vsel %vm1227, %v1309, %v1308
      %v1311 = vsub.s32 4, %v1287
      %v1312 = vsel %vm1227, %v1311, %v1287
      %v1313 = vsel %vm1226, %v375, %v1310
      %v1314 = vsel %vm1226, 0, %v1312
      %v1315 = vcosq.f32.pop %v1313
      %v1316 = vsinq.f32.pop %v1313
      %vm1317 = vweird.f32 %v375
      %v1318 = vadd.s32 %v1314, 3
      %v1319 = vand.u32 %v1318, 3
      %vm1320 = vcmp.lt.s32.totalorder %v1319, 2
      %vm1321 = vcmp.eq.s32.totalorder %v1319, 0
      %v1322 = vxor.u32 %v1316, 2147483648
      %v1323 = vsel %vm1321, %v1315, %v1322
      %vm1324 = vcmp.eq.s32.totalorder %v1319, 2
      %v1325 = vxor.u32 %v1315, 2147483648
      %v1326 = vsel %vm1324, %v1325, %v1316
      %v1327 = vsel %vm1320, %v1323, %v1326
      %v1328 = vsel %vm1317, nan, %v1327
      %v1329 = vand.u32 2147483647, %v380
      %vm1330 = vcmp.le.f32.partialorder %v1329, 0.7853982
      %vm1331 = vcmp.lt.s32.totalorder %v380, 0
      %v1332 = vand.u32 %v380, 2139095040
      %v1333 = vshrl.u32 %v1332, 23
      %v1334 = vsub.s32 %v1333, 127
      %v1335 = vand.u32 2147483647, %v380
      %v1336 = vand.u32 %v1335, 8388607
      %v1337 = vor.u32 %v1336, 8388608
      %v1338 = vsub.s32 0, %v1337
      %v1339 = vadd.s32 %v1334, 1
      %vm1340 = vcmp.gt.s32.totalorder %v1339, 0
      %v1341 = vsel %vm1340, %v1339, 0
      %v1342 = vshrl.u32 %v1341, 5
      %v1343 = vand.u32 %v1341, 31
      %v1344 = vsub.s32 32, %v1343
      %v1345 = vshrl.u32 683565275, %v1344
      %v1346 = vshll.u32 683565275, %v1343
      %v1347 = vshrl.u32 2475754826, %v1344
      %v1348 = vor.u32 %v1346, %v1347
      %v1349 = vshll.u32 2475754826, %v1343
      %v1350 = vshrl.u32 2131351028, %v1344
      %v1351 = vor.u32 %v1349, %v1350
      %v1352 = vshll.u32 2131351028, %v1343
      %v1353 = vshrl.u32 2102212464, %v1344
      %v1354 = vor.u32 %v1352, %v1353
      %v1355 = vshll.u32 2102212464, %v1343
      %v1356 = vshrl.u32 920167782, %v1344
      %v1357 = vor.u32 %v1355, %v1356
      %v1358 = vshll.u32 920167782, %v1343
      %v1359 = vshrl.u32 1326507024, %v1344
      %v1360 = vor.u32 %v1358, %v1359
      %vm1361 = vcmp.lt.s32.totalorder %v1342, 1
      %vm1362 = vcmp.lt.s32.totalorder %v1342, 2
      %vm1363 = vcmp.lt.s32.totalorder %v1342, 3
      %vm1364 = vcmp.lt.s32.totalorder %v1342, 4
      %v1365 = vsel %vm1361, %v1345, %v1348
      %v1366 = vsel %vm1364, %v1354, 2102212464
      %v1367 = vsel %vm1363, %v1351, %v1366
      %v1368 = vsel %vm1362, %v1365, %v1367
      %v1369 = vsel %vm1361, %v1348, %v1351
      %v1370 = vsel %vm1364, %v1357, 920167782
      %v1371 = vsel %vm1363, %v1354, %v1370
      %v1372 = vsel %vm1362, %v1369, %v1371
      %v1373 = vsel %vm1361, %v1351, %v1354
      %v1374 = vsel %vm1364, %v1360, 1326507024
      %v1375 = vsel %vm1363, %v1357, %v1374
      %v1376 = vsel %vm1362, %v1373, %v1375
      %v1377 = vshll.u32 %v1337, 8
      %v1378 = vmul.u32.u64.compose %v1377, %v1376
      %v1379 = vextract.low.u32 %v1378
      %v1380 = vextract.high.u32 %v1378
      %v1381 = vmul.u32.u64.compose %v1377, %v1372
      %v1382 = vextract.low.u32 %v1381
      %v1383 = vextract.high.u32 %v1381
      %v1384 = vmul.u32 %v1377, %v1368
      %v1385 = vadd.s32 %v1380, %v1382
      %vm1386 = vc.u32 %v1380, %v1382
      %v1387 = vadd.s32 %v1383, 1
      %v1388 = vsel %vm1386, %v1387, %v1383
      %v1389 = vadd.s32 %v1384, %v1388
      %v1390 = vadd.s32 %v1389, 536870912
      %v1391 = vshrl.u32 %v1390, 30
      %v1392 = vshll.u32 %v1391, 30
      %v1393 = vsub.s32 %v1389, %v1392
      %vm1394 = vcmp.lt.s32.totalorder %v1393, 0
      %v1395 = vsub.s32 0, %v1393
      %v1396 = vsel %vm1394, %v1395, %v1393
      %v1397 = vclz %v1396
      %v1398 = vsub.s32 %v1397, 2
      %vm1399 = vcmp.gt.s32.totalorder 0, %v1398
      %v1400 = vsel %vm1399, 0, %v1398
      %v1401 = vsub.s32 32, %v1400
      %v1402 = vshll.u32 %v1393, %v1400
      %v1403 = vshrl.u32 %v1385, %v1401
      %v1404 = vor.u32 %v1402, %v1403
      %v1405 = vsub.s32 4294967266, %v1400
      %v1406 = vadd.s32 %v1405, 127
      %v1407 = vshll.u32 %v1406, 23
      %v1408 = vor.u32 4788187, %v1407
      %v1409 = vand.u32 2147483647, %v1408
      %v1411 = vcvt.s32.f32 %v1404
      %v1412 = vmul.f32 %v1411, %v1409
      %v1413 = vxor.u32 %v1412, 2147483648
      %v1414 = vsel %vm1331, %v1413, %v1412
      %v1415 = vsub.s32 4, %v1391
      %v1416 = vsel %vm1331, %v1415, %v1391
      %v1417 = vsel %vm1330, %v380, %v1414
      %v1418 = vsel %vm1330, 0, %v1416
      %v1419 = vcosq.f32.pop %v1417
      %v1420 = vsinq.f32.pop %v1417
      %vm1421 = vweird.f32 %v380
      %v1422 = vadd.s32 %v1418, 3
      %v1423 = vand.u32 %v1422, 3
      %vm1424 = vcmp.lt.s32.totalorder %v1423, 2
      %vm1425 = vcmp.eq.s32.totalorder %v1423, 0
      %v1426 = vxor.u32 %v1420, 2147483648
      %v1427 = vsel %vm1425, %v1419, %v1426
      %vm1428 = vcmp.eq.s32.totalorder %v1423, 2
      %v1429 = vxor.u32 %v1419, 2147483648
      %v1430 = vsel %vm1428, %v1429, %v1420
      %v1431 = vsel %vm1424, %v1427, %v1430
      %v1432 = vsel %vm1421, nan, %v1431
      %v1433 = vand.u32 2147483647, %v385
      %vm1434 = vcmp.le.f32.partialorder %v1433, 0.7853982
      %vm1435 = vcmp.lt.s32.totalorder %v385, 0
      %v1436 = vand.u32 %v385, 2139095040
      %v1437 = vshrl.u32 %v1436, 23
      %v1438 = vsub.s32 %v1437, 127
      %v1439 = vand.u32 2147483647, %v385
      %v1440 = vand.u32 %v1439, 8388607
      %v1441 = vor.u32 %v1440, 8388608
      %v1442 = vsub.s32 0, %v1441
      %v1443 = vadd.s32 %v1438, 1
      %vm1444 = vcmp.gt.s32.totalorder %v1443, 0
      %v1445 = vsel %vm1444, %v1443, 0
      %v1446 = vshrl.u32 %v1445, 5
      %v1447 = vand.u32 %v1445, 31
      %v1448 = vsub.s32 32, %v1447
      %v1449 = vshrl.u32 683565275, %v1448
      %v1450 = vshll.u32 683565275, %v1447
      %v1451 = vshrl.u32 2475754826, %v1448
      %v1452 = vor.u32 %v1450, %v1451
      %v1453 = vshll.u32 2475754826, %v1447
      %v1454 = vshrl.u32 2131351028, %v1448
      %v1455 = vor.u32 %v1453, %v1454
      %v1456 = vshll.u32 2131351028, %v1447
      %v1457 = vshrl.u32 2102212464, %v1448
      %v1458 = vor.u32 %v1456, %v1457
      %v1459 = vshll.u32 2102212464, %v1447
      %v1460 = vshrl.u32 920167782, %v1448
      %v1461 = vor.u32 %v1459, %v1460
      %v1462 = vshll.u32 920167782, %v1447
      %v1463 = vshrl.u32 1326507024, %v1448
      %v1464 = vor.u32 %v1462, %v1463
      %vm1465 = vcmp.lt.s32.totalorder %v1446, 1
      %vm1466 = vcmp.lt.s32.totalorder %v1446, 2
      %vm1467 = vcmp.lt.s32.totalorder %v1446, 3
      %vm1468 = vcmp.lt.s32.totalorder %v1446, 4
      %v1469 = vsel %vm1465, %v1449, %v1452
      %v1470 = vsel %vm1468, %v1458, 2102212464
      %v1471 = vsel %vm1467, %v1455, %v1470
      %v1472 = vsel %vm1466, %v1469, %v1471
      %v1473 = vsel %vm1465, %v1452, %v1455
      %v1474 = vsel %vm1468, %v1461, 920167782
      %v1475 = vsel %vm1467, %v1458, %v1474
      %v1476 = vsel %vm1466, %v1473, %v1475
      %v1477 = vsel %vm1465, %v1455, %v1458
      %v1478 = vsel %vm1468, %v1464, 1326507024
      %v1479 = vsel %vm1467, %v1461, %v1478
      %v1480 = vsel %vm1466, %v1477, %v1479
      %v1481 = vshll.u32 %v1441, 8
      %v1482 = vmul.u32.u64.compose %v1481, %v1480
      %v1483 = vextract.low.u32 %v1482
      %v1484 = vextract.high.u32 %v1482
      %v1485 = vmul.u32.u64.compose %v1481, %v1476
      %v1486 = vextract.low.u32 %v1485
      %v1487 = vextract.high.u32 %v1485
      %v1488 = vmul.u32 %v1481, %v1472
      %v1489 = vadd.s32 %v1484, %v1486
      %vm1490 = vc.u32 %v1484, %v1486
      %v1491 = vadd.s32 %v1487, 1
      %v1492 = vsel %vm1490, %v1491, %v1487
      %v1493 = vadd.s32 %v1488, %v1492
      %v1494 = vadd.s32 %v1493, 536870912
      %v1495 = vshrl.u32 %v1494, 30
      %v1496 = vshll.u32 %v1495, 30
      %v1497 = vsub.s32 %v1493, %v1496
      %vm1498 = vcmp.lt.s32.totalorder %v1497, 0
      %v1499 = vsub.s32 0, %v1497
      %v1500 = vsel %vm1498, %v1499, %v1497
      %v1501 = vclz %v1500
      %v1502 = vsub.s32 %v1501, 2
      %vm1503 = vcmp.gt.s32.totalorder 0, %v1502
      %v1504 = vsel %vm1503, 0, %v1502
      %v1505 = vsub.s32 32, %v1504
      %v1506 = vshll.u32 %v1497, %v1504
      %v1507 = vshrl.u32 %v1489, %v1505
      %v1508 = vor.u32 %v1506, %v1507
      %v1509 = vsub.s32 4294967266, %v1504
      %v1510 = vadd.s32 %v1509, 127
      %v1511 = vshll.u32 %v1510, 23
      %v1512 = vor.u32 4788187, %v1511
      %v1513 = vand.u32 2147483647, %v1512
      %v1515 = vcvt.s32.f32 %v1508
      %v1516 = vmul.f32 %v1515, %v1513
      %v1517 = vxor.u32 %v1516, 2147483648
      %v1518 = vsel %vm1435, %v1517, %v1516
      %v1519 = vsub.s32 4, %v1495
      %v1520 = vsel %vm1435, %v1519, %v1495
      %v1521 = vsel %vm1434, %v385, %v1518
      %v1522 = vsel %vm1434, 0, %v1520
      %v1523 = vcosq.f32.pop %v1521
      %v1524 = vsinq.f32.pop %v1521
      %vm1525 = vweird.f32 %v385
      %v1526 = vadd.s32 %v1522, 3
      %v1527 = vand.u32 %v1526, 3
      %vm1528 = vcmp.lt.s32.totalorder %v1527, 2
      %vm1529 = vcmp.eq.s32.totalorder %v1527, 0
      %v1530 = vxor.u32 %v1524, 2147483648
      %v1531 = vsel %vm1529, %v1523, %v1530
      %vm1532 = vcmp.eq.s32.totalorder %v1527, 2
      %v1533 = vxor.u32 %v1523, 2147483648
      %v1534 = vsel %vm1532, %v1533, %v1524
      %v1535 = vsel %vm1528, %v1531, %v1534
      %v1536 = vsel %vm1525, nan, %v1535
      %v1537 = vand.u32 2147483647, %v390
      %vm1538 = vcmp.le.f32.partialorder %v1537, 0.7853982
      %vm1539 = vcmp.lt.s32.totalorder %v390, 0
      %v1540 = vand.u32 %v390, 2139095040
      %v1541 = vshrl.u32 %v1540, 23
      %v1542 = vsub.s32 %v1541, 127
      %v1543 = vand.u32 2147483647, %v390
      %v1544 = vand.u32 %v1543, 8388607
      %v1545 = vor.u32 %v1544, 8388608
      %v1546 = vsub.s32 0, %v1545
      %v1547 = vadd.s32 %v1542, 1
      %vm1548 = vcmp.gt.s32.totalorder %v1547, 0
      %v1549 = vsel %vm1548, %v1547, 0
      %v1550 = vshrl.u32 %v1549, 5
      %v1551 = vand.u32 %v1549, 31
      %v1552 = vsub.s32 32, %v1551
      %v1553 = vshrl.u32 683565275, %v1552
      %v1554 = vshll.u32 683565275, %v1551
      %v1555 = vshrl.u32 2475754826, %v1552
      %v1556 = vor.u32 %v1554, %v1555
      %v1557 = vshll.u32 2475754826, %v1551
      %v1558 = vshrl.u32 2131351028, %v1552
      %v1559 = vor.u32 %v1557, %v1558
      %v1560 = vshll.u32 2131351028, %v1551
      %v1561 = vshrl.u32 2102212464, %v1552
      %v1562 = vor.u32 %v1560, %v1561
      %v1563 = vshll.u32 2102212464, %v1551
      %v1564 = vshrl.u32 920167782, %v1552
      %v1565 = vor.u32 %v1563, %v1564
      %v1566 = vshll.u32 920167782, %v1551
      %v1567 = vshrl.u32 1326507024, %v1552
      %v1568 = vor.u32 %v1566, %v1567
      %vm1569 = vcmp.lt.s32.totalorder %v1550, 1
      %vm1570 = vcmp.lt.s32.totalorder %v1550, 2
      %vm1571 = vcmp.lt.s32.totalorder %v1550, 3
      %vm1572 = vcmp.lt.s32.totalorder %v1550, 4
      %v1573 = vsel %vm1569, %v1553, %v1556
      %v1574 = vsel %vm1572, %v1562, 2102212464
      %v1575 = vsel %vm1571, %v1559, %v1574
      %v1576 = vsel %vm1570, %v1573, %v1575
      %v1577 = vsel %vm1569, %v1556, %v1559
      %v1578 = vsel %vm1572, %v1565, 920167782
      %v1579 = vsel %vm1571, %v1562, %v1578
      %v1580 = vsel %vm1570, %v1577, %v1579
      %v1581 = vsel %vm1569, %v1559, %v1562
      %v1582 = vsel %vm1572, %v1568, 1326507024
      %v1583 = vsel %vm1571, %v1565, %v1582
      %v1584 = vsel %vm1570, %v1581, %v1583
      %v1585 = vshll.u32 %v1545, 8
      %v1586 = vmul.u32.u64.compose %v1585, %v1584
      %v1587 = vextract.low.u32 %v1586
      %v1588 = vextract.high.u32 %v1586
      %v1589 = vmul.u32.u64.compose %v1585, %v1580
      %v1590 = vextract.low.u32 %v1589
      %v1591 = vextract.high.u32 %v1589
      %v1592 = vmul.u32 %v1585, %v1576
      %v1593 = vadd.s32 %v1588, %v1590
      %vm1594 = vc.u32 %v1588, %v1590
      %v1595 = vadd.s32 %v1591, 1
      %v1596 = vsel %vm1594, %v1595, %v1591
      %v1597 = vadd.s32 %v1592, %v1596
      %v1598 = vadd.s32 %v1597, 536870912
      %v1599 = vshrl.u32 %v1598, 30
      %v1600 = vshll.u32 %v1599, 30
      %v1601 = vsub.s32 %v1597, %v1600
      %vm1602 = vcmp.lt.s32.totalorder %v1601, 0
      %v1603 = vsub.s32 0, %v1601
      %v1604 = vsel %vm1602, %v1603, %v1601
      %v1605 = vclz %v1604
      %v1606 = vsub.s32 %v1605, 2
      %vm1607 = vcmp.gt.s32.totalorder 0, %v1606
      %v1608 = vsel %vm1607, 0, %v1606
      %v1609 = vsub.s32 32, %v1608
      %v1610 = vshll.u32 %v1601, %v1608
      %v1611 = vshrl.u32 %v1593, %v1609
      %v1612 = vor.u32 %v1610, %v1611
      %v1613 = vsub.s32 4294967266, %v1608
      %v1614 = vadd.s32 %v1613, 127
      %v1615 = vshll.u32 %v1614, 23
      %v1616 = vor.u32 4788187, %v1615
      %v1617 = vand.u32 2147483647, %v1616
      %v1619 = vcvt.s32.f32 %v1612
      %v1620 = vmul.f32 %v1619, %v1617
      %v1621 = vxor.u32 %v1620, 2147483648
      %v1622 = vsel %vm1539, %v1621, %v1620
      %v1623 = vsub.s32 4, %v1599
      %v1624 = vsel %vm1539, %v1623, %v1599
      %v1625 = vsel %vm1538, %v390, %v1622
      %v1626 = vsel %vm1538, 0, %v1624
      %v1627 = vcosq.f32.pop %v1625
      %v1628 = vsinq.f32.pop %v1625
      %vm1629 = vweird.f32 %v390
      %v1630 = vadd.s32 %v1626, 3
      %v1631 = vand.u32 %v1630, 3
      %vm1632 = vcmp.lt.s32.totalorder %v1631, 2
      %vm1633 = vcmp.eq.s32.totalorder %v1631, 0
      %v1634 = vxor.u32 %v1628, 2147483648
      %v1635 = vsel %vm1633, %v1627, %v1634
      %vm1636 = vcmp.eq.s32.totalorder %v1631, 2
      %v1637 = vxor.u32 %v1627, 2147483648
      %v1638 = vsel %vm1636, %v1637, %v1628
      %v1639 = vsel %vm1632, %v1635, %v1638
      %v1640 = vsel %vm1629, nan, %v1639
      %v1641 = vand.u32 2147483647, %v395
      %vm1642 = vcmp.le.f32.partialorder %v1641, 0.7853982
      %vm1643 = vcmp.lt.s32.totalorder %v395, 0
      %v1644 = vand.u32 %v395, 2139095040
      %v1645 = vshrl.u32 %v1644, 23
      %v1646 = vsub.s32 %v1645, 127
      %v1647 = vand.u32 2147483647, %v395
      %v1648 = vand.u32 %v1647, 8388607
      %v1649 = vor.u32 %v1648, 8388608
      %v1650 = vsub.s32 0, %v1649
      %v1651 = vadd.s32 %v1646, 1
      %vm1652 = vcmp.gt.s32.totalorder %v1651, 0
      %v1653 = vsel %vm1652, %v1651, 0
      %v1654 = vshrl.u32 %v1653, 5
      %v1655 = vand.u32 %v1653, 31
      %v1656 = vsub.s32 32, %v1655
      %v1657 = vshrl.u32 683565275, %v1656
      %v1658 = vshll.u32 683565275, %v1655
      %v1659 = vshrl.u32 2475754826, %v1656
      %v1660 = vor.u32 %v1658, %v1659
      %v1661 = vshll.u32 2475754826, %v1655
      %v1662 = vshrl.u32 2131351028, %v1656
      %v1663 = vor.u32 %v1661, %v1662
      %v1664 = vshll.u32 2131351028, %v1655
      %v1665 = vshrl.u32 2102212464, %v1656
      %v1666 = vor.u32 %v1664, %v1665
      %v1667 = vshll.u32 2102212464, %v1655
      %v1668 = vshrl.u32 920167782, %v1656
      %v1669 = vor.u32 %v1667, %v1668
      %v1670 = vshll.u32 920167782, %v1655
      %v1671 = vshrl.u32 1326507024, %v1656
      %v1672 = vor.u32 %v1670, %v1671
      %vm1673 = vcmp.lt.s32.totalorder %v1654, 1
      %vm1674 = vcmp.lt.s32.totalorder %v1654, 2
      %vm1675 = vcmp.lt.s32.totalorder %v1654, 3
      %vm1676 = vcmp.lt.s32.totalorder %v1654, 4
      %v1677 = vsel %vm1673, %v1657, %v1660
      %v1678 = vsel %vm1676, %v1666, 2102212464
      %v1679 = vsel %vm1675, %v1663, %v1678
      %v1680 = vsel %vm1674, %v1677, %v1679
      %v1681 = vsel %vm1673, %v1660, %v1663
      %v1682 = vsel %vm1676, %v1669, 920167782
      %v1683 = vsel %vm1675, %v1666, %v1682
      %v1684 = vsel %vm1674, %v1681, %v1683
      %v1685 = vsel %vm1673, %v1663, %v1666
      %v1686 = vsel %vm1676, %v1672, 1326507024
      %v1687 = vsel %vm1675, %v1669, %v1686
      %v1688 = vsel %vm1674, %v1685, %v1687
      %v1689 = vshll.u32 %v1649, 8
      %v1690 = vmul.u32.u64.compose %v1689, %v1688
      %v1691 = vextract.low.u32 %v1690
      %v1692 = vextract.high.u32 %v1690
      %v1693 = vmul.u32.u64.compose %v1689, %v1684
      %v1694 = vextract.low.u32 %v1693
      %v1695 = vextract.high.u32 %v1693
      %v1696 = vmul.u32 %v1689, %v1680
      %v1697 = vadd.s32 %v1692, %v1694
      %vm1698 = vc.u32 %v1692, %v1694
      %v1699 = vadd.s32 %v1695, 1
      %v1700 = vsel %vm1698, %v1699, %v1695
      %v1701 = vadd.s32 %v1696, %v1700
      %v1702 = vadd.s32 %v1701, 536870912
      %v1703 = vshrl.u32 %v1702, 30
      %v1704 = vshll.u32 %v1703, 30
      %v1705 = vsub.s32 %v1701, %v1704
      %vm1706 = vcmp.lt.s32.totalorder %v1705, 0
      %v1707 = vsub.s32 0, %v1705
      %v1708 = vsel %vm1706, %v1707, %v1705
      %v1709 = vclz %v1708
      %v1710 = vsub.s32 %v1709, 2
      %vm1711 = vcmp.gt.s32.totalorder 0, %v1710
      %v1712 = vsel %vm1711, 0, %v1710
      %v1713 = vsub.s32 32, %v1712
      %v1714 = vshll.u32 %v1705, %v1712
      %v1715 = vshrl.u32 %v1697, %v1713
      %v1716 = vor.u32 %v1714, %v1715
      %v1717 = vsub.s32 4294967266, %v1712
      %v1718 = vadd.s32 %v1717, 127
      %v1719 = vshll.u32 %v1718, 23
      %v1720 = vor.u32 4788187, %v1719
      %v1721 = vand.u32 2147483647, %v1720
      %v1723 = vcvt.s32.f32 %v1716
      %v1724 = vmul.f32 %v1723, %v1721
      %v1725 = vxor.u32 %v1724, 2147483648
      %v1726 = vsel %vm1643, %v1725, %v1724
      %v1727 = vsub.s32 4, %v1703
      %v1728 = vsel %vm1643, %v1727, %v1703
      %v1729 = vsel %vm1642, %v395, %v1726
      %v1730 = vsel %vm1642, 0, %v1728
      %v1731 = vcosq.f32.pop %v1729
      %v1732 = vsinq.f32.pop %v1729
      %vm1733 = vweird.f32 %v395
      %v1734 = vadd.s32 %v1730, 3
      %v1735 = vand.u32 %v1734, 3
      %vm1736 = vcmp.lt.s32.totalorder %v1735, 2
      %vm1737 = vcmp.eq.s32.totalorder %v1735, 0
      %v1738 = vxor.u32 %v1732, 2147483648
      %v1739 = vsel %vm1737, %v1731, %v1738
      %vm1740 = vcmp.eq.s32.totalorder %v1735, 2
      %v1741 = vxor.u32 %v1731, 2147483648
      %v1742 = vsel %vm1740, %v1741, %v1732
      %v1743 = vsel %vm1736, %v1739, %v1742
      %v1744 = vsel %vm1733, nan, %v1743
      %v1745 = vand.u32 2147483647, %v400
      %vm1746 = vcmp.le.f32.partialorder %v1745, 0.7853982
      %vm1747 = vcmp.lt.s32.totalorder %v400, 0
      %v1748 = vand.u32 %v400, 2139095040
      %v1749 = vshrl.u32 %v1748, 23
      %v1750 = vsub.s32 %v1749, 127
      %v1751 = vand.u32 2147483647, %v400
      %v1752 = vand.u32 %v1751, 8388607
      %v1753 = vor.u32 %v1752, 8388608
      %v1754 = vsub.s32 0, %v1753
      %v1755 = vadd.s32 %v1750, 1
      %vm1756 = vcmp.gt.s32.totalorder %v1755, 0
      %v1757 = vsel %vm1756, %v1755, 0
      %v1758 = vshrl.u32 %v1757, 5
      %v1759 = vand.u32 %v1757, 31
      %v1760 = vsub.s32 32, %v1759
      %v1761 = vshrl.u32 683565275, %v1760
      %v1762 = vshll.u32 683565275, %v1759
      %v1763 = vshrl.u32 2475754826, %v1760
      %v1764 = vor.u32 %v1762, %v1763
      %v1765 = vshll.u32 2475754826, %v1759
      %v1766 = vshrl.u32 2131351028, %v1760
      %v1767 = vor.u32 %v1765, %v1766
      %v1768 = vshll.u32 2131351028, %v1759
      %v1769 = vshrl.u32 2102212464, %v1760
      %v1770 = vor.u32 %v1768, %v1769
      %v1771 = vshll.u32 2102212464, %v1759
      %v1772 = vshrl.u32 920167782, %v1760
      %v1773 = vor.u32 %v1771, %v1772
      %v1774 = vshll.u32 920167782, %v1759
      %v1775 = vshrl.u32 1326507024, %v1760
      %v1776 = vor.u32 %v1774, %v1775
      %vm1777 = vcmp.lt.s32.totalorder %v1758, 1
      %vm1778 = vcmp.lt.s32.totalorder %v1758, 2
      %vm1779 = vcmp.lt.s32.totalorder %v1758, 3
      %vm1780 = vcmp.lt.s32.totalorder %v1758, 4
      %v1781 = vsel %vm1777, %v1761, %v1764
      %v1782 = vsel %vm1780, %v1770, 2102212464
      %v1783 = vsel %vm1779, %v1767, %v1782
      %v1784 = vsel %vm1778, %v1781, %v1783
      %v1785 = vsel %vm1777, %v1764, %v1767
      %v1786 = vsel %vm1780, %v1773, 920167782
      %v1787 = vsel %vm1779, %v1770, %v1786
      %v1788 = vsel %vm1778, %v1785, %v1787
      %v1789 = vsel %vm1777, %v1767, %v1770
      %v1790 = vsel %vm1780, %v1776, 1326507024
      %v1791 = vsel %vm1779, %v1773, %v1790
      %v1792 = vsel %vm1778, %v1789, %v1791
      %v1793 = vshll.u32 %v1753, 8
      %v1794 = vmul.u32.u64.compose %v1793, %v1792
      %v1795 = vextract.low.u32 %v1794
      %v1796 = vextract.high.u32 %v1794
      %v1797 = vmul.u32.u64.compose %v1793, %v1788
      %v1798 = vextract.low.u32 %v1797
      %v1799 = vextract.high.u32 %v1797
      %v1800 = vmul.u32 %v1793, %v1784
      %v1801 = vadd.s32 %v1796, %v1798
      %vm1802 = vc.u32 %v1796, %v1798
      %v1803 = vadd.s32 %v1799, 1
      %v1804 = vsel %vm1802, %v1803, %v1799
      %v1805 = vadd.s32 %v1800, %v1804
      %v1806 = vadd.s32 %v1805, 536870912
      %v1807 = vshrl.u32 %v1806, 30
      %v1808 = vshll.u32 %v1807, 30
      %v1809 = vsub.s32 %v1805, %v1808
      %vm1810 = vcmp.lt.s32.totalorder %v1809, 0
      %v1811 = vsub.s32 0, %v1809
      %v1812 = vsel %vm1810, %v1811, %v1809
      %v1813 = vclz %v1812
      %v1814 = vsub.s32 %v1813, 2
      %vm1815 = vcmp.gt.s32.totalorder 0, %v1814
      %v1816 = vsel %vm1815, 0, %v1814
      %v1817 = vsub.s32 32, %v1816
      %v1818 = vshll.u32 %v1809, %v1816
      %v1819 = vshrl.u32 %v1801, %v1817
      %v1820 = vor.u32 %v1818, %v1819
      %v1821 = vsub.s32 4294967266, %v1816
      %v1822 = vadd.s32 %v1821, 127
      %v1823 = vshll.u32 %v1822, 23
      %v1824 = vor.u32 4788187, %v1823
      %v1825 = vand.u32 2147483647, %v1824
      %v1827 = vcvt.s32.f32 %v1820
      %v1828 = vmul.f32 %v1827, %v1825
      %v1829 = vxor.u32 %v1828, 2147483648
      %v1830 = vsel %vm1747, %v1829, %v1828
      %v1831 = vsub.s32 4, %v1807
      %v1832 = vsel %vm1747, %v1831, %v1807
      %v1833 = vsel %vm1746, %v400, %v1830
      %v1834 = vsel %vm1746, 0, %v1832
      %v1835 = vcosq.f32.pop %v1833
      %v1836 = vsinq.f32.pop %v1833
      %vm1837 = vweird.f32 %v400
      %v1838 = vadd.s32 %v1834, 3
      %v1839 = vand.u32 %v1838, 3
      %vm1840 = vcmp.lt.s32.totalorder %v1839, 2
      %vm1841 = vcmp.eq.s32.totalorder %v1839, 0
      %v1842 = vxor.u32 %v1836, 2147483648
      %v1843 = vsel %vm1841, %v1835, %v1842
      %vm1844 = vcmp.eq.s32.totalorder %v1839, 2
      %v1845 = vxor.u32 %v1835, 2147483648
      %v1846 = vsel %vm1844, %v1845, %v1836
      %v1847 = vsel %vm1840, %v1843, %v1846
      %v1848 = vsel %vm1837, nan, %v1847
      %v1849 = vand.u32 2147483647, %v405
      %vm1850 = vcmp.le.f32.partialorder %v1849, 0.7853982
      %vm1851 = vcmp.lt.s32.totalorder %v405, 0
      %v1852 = vand.u32 %v405, 2139095040
      %v1853 = vshrl.u32 %v1852, 23
      %v1854 = vsub.s32 %v1853, 127
      %v1855 = vand.u32 2147483647, %v405
      %v1856 = vand.u32 %v1855, 8388607
      %v1857 = vor.u32 %v1856, 8388608
      %v1858 = vsub.s32 0, %v1857
      %v1859 = vadd.s32 %v1854, 1
      %vm1860 = vcmp.gt.s32.totalorder %v1859, 0
      %v1861 = vsel %vm1860, %v1859, 0
      %v1862 = vshrl.u32 %v1861, 5
      %v1863 = vand.u32 %v1861, 31
      %v1864 = vsub.s32 32, %v1863
      %v1865 = vshrl.u32 683565275, %v1864
      %v1866 = vshll.u32 683565275, %v1863
      %v1867 = vshrl.u32 2475754826, %v1864
      %v1868 = vor.u32 %v1866, %v1867
      %v1869 = vshll.u32 2475754826, %v1863
      %v1870 = vshrl.u32 2131351028, %v1864
      %v1871 = vor.u32 %v1869, %v1870
      %v1872 = vshll.u32 2131351028, %v1863
      %v1873 = vshrl.u32 2102212464, %v1864
      %v1874 = vor.u32 %v1872, %v1873
      %v1875 = vshll.u32 2102212464, %v1863
      %v1876 = vshrl.u32 920167782, %v1864
      %v1877 = vor.u32 %v1875, %v1876
      %v1878 = vshll.u32 920167782, %v1863
      %v1879 = vshrl.u32 1326507024, %v1864
      %v1880 = vor.u32 %v1878, %v1879
      %vm1881 = vcmp.lt.s32.totalorder %v1862, 1
      %vm1882 = vcmp.lt.s32.totalorder %v1862, 2
      %vm1883 = vcmp.lt.s32.totalorder %v1862, 3
      %vm1884 = vcmp.lt.s32.totalorder %v1862, 4
      %v1885 = vsel %vm1881, %v1865, %v1868
      %v1886 = vsel %vm1884, %v1874, 2102212464
      %v1887 = vsel %vm1883, %v1871, %v1886
      %v1888 = vsel %vm1882, %v1885, %v1887
      %v1889 = vsel %vm1881, %v1868, %v1871
      %v1890 = vsel %vm1884, %v1877, 920167782
      %v1891 = vsel %vm1883, %v1874, %v1890
      %v1892 = vsel %vm1882, %v1889, %v1891
      %v1893 = vsel %vm1881, %v1871, %v1874
      %v1894 = vsel %vm1884, %v1880, 1326507024
      %v1895 = vsel %vm1883, %v1877, %v1894
      %v1896 = vsel %vm1882, %v1893, %v1895
      %v1897 = vshll.u32 %v1857, 8
      %v1898 = vmul.u32.u64.compose %v1897, %v1896
      %v1899 = vextract.low.u32 %v1898
      %v1900 = vextract.high.u32 %v1898
      %v1901 = vmul.u32.u64.compose %v1897, %v1892
      %v1902 = vextract.low.u32 %v1901
      %v1903 = vextract.high.u32 %v1901
      %v1904 = vmul.u32 %v1897, %v1888
      %v1905 = vadd.s32 %v1900, %v1902
      %vm1906 = vc.u32 %v1900, %v1902
      %v1907 = vadd.s32 %v1903, 1
      %v1908 = vsel %vm1906, %v1907, %v1903
      %v1909 = vadd.s32 %v1904, %v1908
      %v1910 = vadd.s32 %v1909, 536870912
      %v1911 = vshrl.u32 %v1910, 30
      %v1912 = vshll.u32 %v1911, 30
      %v1913 = vsub.s32 %v1909, %v1912
      %vm1914 = vcmp.lt.s32.totalorder %v1913, 0
      %v1915 = vsub.s32 0, %v1913
      %v1916 = vsel %vm1914, %v1915, %v1913
      %v1917 = vclz %v1916
      %v1918 = vsub.s32 %v1917, 2
      %vm1919 = vcmp.gt.s32.totalorder 0, %v1918
      %v1920 = vsel %vm1919, 0, %v1918
      %v1921 = vsub.s32 32, %v1920
      %v1922 = vshll.u32 %v1913, %v1920
      %v1923 = vshrl.u32 %v1905, %v1921
      %v1924 = vor.u32 %v1922, %v1923
      %v1925 = vsub.s32 4294967266, %v1920
      %v1926 = vadd.s32 %v1925, 127
      %v1927 = vshll.u32 %v1926, 23
      %v1928 = vor.u32 4788187, %v1927
      %v1929 = vand.u32 2147483647, %v1928
      %v1931 = vcvt.s32.f32 %v1924
      %v1932 = vmul.f32 %v1931, %v1929
      %v1933 = vxor.u32 %v1932, 2147483648
      %v1934 = vsel %vm1851, %v1933, %v1932
      %v1935 = vsub.s32 4, %v1911
      %v1936 = vsel %vm1851, %v1935, %v1911
      %v1937 = vsel %vm1850, %v405, %v1934
      %v1938 = vsel %vm1850, 0, %v1936
      %v1939 = vcosq.f32.pop %v1937
      %v1940 = vsinq.f32.pop %v1937
      %vm1941 = vweird.f32 %v405
      %v1942 = vadd.s32 %v1938, 3
      %v1943 = vand.u32 %v1942, 3
      %vm1944 = vcmp.lt.s32.totalorder %v1943, 2
      %vm1945 = vcmp.eq.s32.totalorder %v1943, 0
      %v1946 = vxor.u32 %v1940, 2147483648
      %v1947 = vsel %vm1945, %v1939, %v1946
      %vm1948 = vcmp.eq.s32.totalorder %v1943, 2
      %v1949 = vxor.u32 %v1939, 2147483648
      %v1950 = vsel %vm1948, %v1949, %v1940
      %v1951 = vsel %vm1944, %v1947, %v1950
      %v1952 = vsel %vm1941, nan, %v1951
      %v1953 = vand.u32 2147483647, %v410
      %vm1954 = vcmp.le.f32.partialorder %v1953, 0.7853982
      %vm1955 = vcmp.lt.s32.totalorder %v410, 0
      %v1956 = vand.u32 %v410, 2139095040
      %v1957 = vshrl.u32 %v1956, 23
      %v1958 = vsub.s32 %v1957, 127
      %v1959 = vand.u32 2147483647, %v410
      %v1960 = vand.u32 %v1959, 8388607
      %v1961 = vor.u32 %v1960, 8388608
      %v1962 = vsub.s32 0, %v1961
      %v1963 = vadd.s32 %v1958, 1
      %vm1964 = vcmp.gt.s32.totalorder %v1963, 0
      %v1965 = vsel %vm1964, %v1963, 0
      %v1966 = vshrl.u32 %v1965, 5
      %v1967 = vand.u32 %v1965, 31
      %v1968 = vsub.s32 32, %v1967
      %v1969 = vshrl.u32 683565275, %v1968
      %v1970 = vshll.u32 683565275, %v1967
      %v1971 = vshrl.u32 2475754826, %v1968
      %v1972 = vor.u32 %v1970, %v1971
      %v1973 = vshll.u32 2475754826, %v1967
      %v1974 = vshrl.u32 2131351028, %v1968
      %v1975 = vor.u32 %v1973, %v1974
      %v1976 = vshll.u32 2131351028, %v1967
      %v1977 = vshrl.u32 2102212464, %v1968
      %v1978 = vor.u32 %v1976, %v1977
      %v1979 = vshll.u32 2102212464, %v1967
      %v1980 = vshrl.u32 920167782, %v1968
      %v1981 = vor.u32 %v1979, %v1980
      %v1982 = vshll.u32 920167782, %v1967
      %v1983 = vshrl.u32 1326507024, %v1968
      %v1984 = vor.u32 %v1982, %v1983
      %vm1985 = vcmp.lt.s32.totalorder %v1966, 1
      %vm1986 = vcmp.lt.s32.totalorder %v1966, 2
      %vm1987 = vcmp.lt.s32.totalorder %v1966, 3
      %vm1988 = vcmp.lt.s32.totalorder %v1966, 4
      %v1989 = vsel %vm1985, %v1969, %v1972
      %v1990 = vsel %vm1988, %v1978, 2102212464
      %v1991 = vsel %vm1987, %v1975, %v1990
      %v1992 = vsel %vm1986, %v1989, %v1991
      %v1993 = vsel %vm1985, %v1972, %v1975
      %v1994 = vsel %vm1988, %v1981, 920167782
      %v1995 = vsel %vm1987, %v1978, %v1994
      %v1996 = vsel %vm1986, %v1993, %v1995
      %v1997 = vsel %vm1985, %v1975, %v1978
      %v1998 = vsel %vm1988, %v1984, 1326507024
      %v1999 = vsel %vm1987, %v1981, %v1998
      %v2000 = vsel %vm1986, %v1997, %v1999
      %v2001 = vshll.u32 %v1961, 8
      %v2002 = vmul.u32.u64.compose %v2001, %v2000
      %v2003 = vextract.low.u32 %v2002
      %v2004 = vextract.high.u32 %v2002
      %v2005 = vmul.u32.u64.compose %v2001, %v1996
      %v2006 = vextract.low.u32 %v2005
      %v2007 = vextract.high.u32 %v2005
      %v2008 = vmul.u32 %v2001, %v1992
      %v2009 = vadd.s32 %v2004, %v2006
      %vm2010 = vc.u32 %v2004, %v2006
      %v2011 = vadd.s32 %v2007, 1
      %v2012 = vsel %vm2010, %v2011, %v2007
      %v2013 = vadd.s32 %v2008, %v2012
      %v2014 = vadd.s32 %v2013, 536870912
      %v2015 = vshrl.u32 %v2014, 30
      %v2016 = vshll.u32 %v2015, 30
      %v2017 = vsub.s32 %v2013, %v2016
      %vm2018 = vcmp.lt.s32.totalorder %v2017, 0
      %v2019 = vsub.s32 0, %v2017
      %v2020 = vsel %vm2018, %v2019, %v2017
      %v2021 = vclz %v2020
      %v2022 = vsub.s32 %v2021, 2
      %vm2023 = vcmp.gt.s32.totalorder 0, %v2022
      %v2024 = vsel %vm2023, 0, %v2022
      %v2025 = vsub.s32 32, %v2024
      %v2026 = vshll.u32 %v2017, %v2024
      %v2027 = vshrl.u32 %v2009, %v2025
      %v2028 = vor.u32 %v2026, %v2027
      %v2029 = vsub.s32 4294967266, %v2024
      %v2030 = vadd.s32 %v2029, 127
      %v2031 = vshll.u32 %v2030, 23
      %v2032 = vor.u32 4788187, %v2031
      %v2033 = vand.u32 2147483647, %v2032
      %v2035 = vcvt.s32.f32 %v2028
      %v2036 = vmul.f32 %v2035, %v2033
      %v2037 = vxor.u32 %v2036, 2147483648
      %v2038 = vsel %vm1955, %v2037, %v2036
      %v2039 = vsub.s32 4, %v2015
      %v2040 = vsel %vm1955, %v2039, %v2015
      %v2041 = vsel %vm1954, %v410, %v2038
      %v2042 = vsel %vm1954, 0, %v2040
      %v2043 = vcosq.f32.pop %v2041
      %v2044 = vsinq.f32.pop %v2041
      %vm2045 = vweird.f32 %v410
      %v2046 = vadd.s32 %v2042, 3
      %v2047 = vand.u32 %v2046, 3
      %vm2048 = vcmp.lt.s32.totalorder %v2047, 2
      %vm2049 = vcmp.eq.s32.totalorder %v2047, 0
      %v2050 = vxor.u32 %v2044, 2147483648
      %v2051 = vsel %vm2049, %v2043, %v2050
      %vm2052 = vcmp.eq.s32.totalorder %v2047, 2
      %v2053 = vxor.u32 %v2043, 2147483648
      %v2054 = vsel %vm2052, %v2053, %v2044
      %v2055 = vsel %vm2048, %v2051, %v2054
      %v2056 = vsel %vm2045, nan, %v2055
      %v2057 = vand.u32 2147483647, %v415
      %vm2058 = vcmp.le.f32.partialorder %v2057, 0.7853982
      %vm2059 = vcmp.lt.s32.totalorder %v415, 0
      %v2060 = vand.u32 %v415, 2139095040
      %v2061 = vshrl.u32 %v2060, 23
      %v2062 = vsub.s32 %v2061, 127
      %v2063 = vand.u32 2147483647, %v415
      %v2064 = vand.u32 %v2063, 8388607
      %v2065 = vor.u32 %v2064, 8388608
      %v2066 = vsub.s32 0, %v2065
      %v2067 = vadd.s32 %v2062, 1
      %vm2068 = vcmp.gt.s32.totalorder %v2067, 0
      %v2069 = vsel %vm2068, %v2067, 0
      %v2070 = vshrl.u32 %v2069, 5
      %v2071 = vand.u32 %v2069, 31
      %v2072 = vsub.s32 32, %v2071
      %v2073 = vshrl.u32 683565275, %v2072
      %v2074 = vshll.u32 683565275, %v2071
      %v2075 = vshrl.u32 2475754826, %v2072
      %v2076 = vor.u32 %v2074, %v2075
      %v2077 = vshll.u32 2475754826, %v2071
      %v2078 = vshrl.u32 2131351028, %v2072
      %v2079 = vor.u32 %v2077, %v2078
      %v2080 = vshll.u32 2131351028, %v2071
      %v2081 = vshrl.u32 2102212464, %v2072
      %v2082 = vor.u32 %v2080, %v2081
      %v2083 = vshll.u32 2102212464, %v2071
      %v2084 = vshrl.u32 920167782, %v2072
      %v2085 = vor.u32 %v2083, %v2084
      %v2086 = vshll.u32 920167782, %v2071
      %v2087 = vshrl.u32 1326507024, %v2072
      %v2088 = vor.u32 %v2086, %v2087
      %vm2089 = vcmp.lt.s32.totalorder %v2070, 1
      %vm2090 = vcmp.lt.s32.totalorder %v2070, 2
      %vm2091 = vcmp.lt.s32.totalorder %v2070, 3
      %vm2092 = vcmp.lt.s32.totalorder %v2070, 4
      %v2093 = vsel %vm2089, %v2073, %v2076
      %v2094 = vsel %vm2092, %v2082, 2102212464
      %v2095 = vsel %vm2091, %v2079, %v2094
      %v2096 = vsel %vm2090, %v2093, %v2095
      %v2097 = vsel %vm2089, %v2076, %v2079
      %v2098 = vsel %vm2092, %v2085, 920167782
      %v2099 = vsel %vm2091, %v2082, %v2098
      %v2100 = vsel %vm2090, %v2097, %v2099
      %v2101 = vsel %vm2089, %v2079, %v2082
      %v2102 = vsel %vm2092, %v2088, 1326507024
      %v2103 = vsel %vm2091, %v2085, %v2102
      %v2104 = vsel %vm2090, %v2101, %v2103
      %v2105 = vshll.u32 %v2065, 8
      %v2106 = vmul.u32.u64.compose %v2105, %v2104
      %v2107 = vextract.low.u32 %v2106
      %v2108 = vextract.high.u32 %v2106
      %v2109 = vmul.u32.u64.compose %v2105, %v2100
      %v2110 = vextract.low.u32 %v2109
      %v2111 = vextract.high.u32 %v2109
      %v2112 = vmul.u32 %v2105, %v2096
      %v2113 = vadd.s32 %v2108, %v2110
      %vm2114 = vc.u32 %v2108, %v2110
      %v2115 = vadd.s32 %v2111, 1
      %v2116 = vsel %vm2114, %v2115, %v2111
      %v2117 = vadd.s32 %v2112, %v2116
      %v2118 = vadd.s32 %v2117, 536870912
      %v2119 = vshrl.u32 %v2118, 30
      %v2120 = vshll.u32 %v2119, 30
      %v2121 = vsub.s32 %v2117, %v2120
      %vm2122 = vcmp.lt.s32.totalorder %v2121, 0
      %v2123 = vsub.s32 0, %v2121
      %v2124 = vsel %vm2122, %v2123, %v2121
      %v2125 = vclz %v2124
      %v2126 = vsub.s32 %v2125, 2
      %vm2127 = vcmp.gt.s32.totalorder 0, %v2126
      %v2128 = vsel %vm2127, 0, %v2126
      %v2129 = vsub.s32 32, %v2128
      %v2130 = vshll.u32 %v2121, %v2128
      %v2131 = vshrl.u32 %v2113, %v2129
      %v2132 = vor.u32 %v2130, %v2131
      %v2133 = vsub.s32 4294967266, %v2128
      %v2134 = vadd.s32 %v2133, 127
      %v2135 = vshll.u32 %v2134, 23
      %v2136 = vor.u32 4788187, %v2135
      %v2137 = vand.u32 2147483647, %v2136
      %v2139 = vcvt.s32.f32 %v2132
      %v2140 = vmul.f32 %v2139, %v2137
      %v2141 = vxor.u32 %v2140, 2147483648
      %v2142 = vsel %vm2059, %v2141, %v2140
      %v2143 = vsub.s32 4, %v2119
      %v2144 = vsel %vm2059, %v2143, %v2119
      %v2145 = vsel %vm2058, %v415, %v2142
      %v2146 = vsel %vm2058, 0, %v2144
      %v2147 = vcosq.f32.pop %v2145
      %v2148 = vsinq.f32.pop %v2145
      %vm2149 = vweird.f32 %v415
      %v2150 = vadd.s32 %v2146, 3
      %v2151 = vand.u32 %v2150, 3
      %vm2152 = vcmp.lt.s32.totalorder %v2151, 2
      %vm2153 = vcmp.eq.s32.totalorder %v2151, 0
      %v2154 = vxor.u32 %v2148, 2147483648
      %v2155 = vsel %vm2153, %v2147, %v2154
      %vm2156 = vcmp.eq.s32.totalorder %v2151, 2
      %v2157 = vxor.u32 %v2147, 2147483648
      %v2158 = vsel %vm2156, %v2157, %v2148
      %v2159 = vsel %vm2152, %v2155, %v2158
      %v2160 = vsel %vm2149, nan, %v2159
      %v2161 = vand.u32 2147483647, %v420
      %vm2162 = vcmp.le.f32.partialorder %v2161, 0.7853982
      %vm2163 = vcmp.lt.s32.totalorder %v420, 0
      %v2164 = vand.u32 %v420, 2139095040
      %v2165 = vshrl.u32 %v2164, 23
      %v2166 = vsub.s32 %v2165, 127
      %v2167 = vand.u32 2147483647, %v420
      %v2168 = vand.u32 %v2167, 8388607
      %v2169 = vor.u32 %v2168, 8388608
      %v2170 = vsub.s32 0, %v2169
      %v2171 = vadd.s32 %v2166, 1
      %vm2172 = vcmp.gt.s32.totalorder %v2171, 0
      %v2173 = vsel %vm2172, %v2171, 0
      %v2174 = vshrl.u32 %v2173, 5
      %v2175 = vand.u32 %v2173, 31
      %v2176 = vsub.s32 32, %v2175
      %v2177 = vshrl.u32 683565275, %v2176
      %v2178 = vshll.u32 683565275, %v2175
      %v2179 = vshrl.u32 2475754826, %v2176
      %v2180 = vor.u32 %v2178, %v2179
      %v2181 = vshll.u32 2475754826, %v2175
      %v2182 = vshrl.u32 2131351028, %v2176
      %v2183 = vor.u32 %v2181, %v2182
      %v2184 = vshll.u32 2131351028, %v2175
      %v2185 = vshrl.u32 2102212464, %v2176
      %v2186 = vor.u32 %v2184, %v2185
      %v2187 = vshll.u32 2102212464, %v2175
      %v2188 = vshrl.u32 920167782, %v2176
      %v2189 = vor.u32 %v2187, %v2188
      %v2190 = vshll.u32 920167782, %v2175
      %v2191 = vshrl.u32 1326507024, %v2176
      %v2192 = vor.u32 %v2190, %v2191
      %vm2193 = vcmp.lt.s32.totalorder %v2174, 1
      %vm2194 = vcmp.lt.s32.totalorder %v2174, 2
      %vm2195 = vcmp.lt.s32.totalorder %v2174, 3
      %vm2196 = vcmp.lt.s32.totalorder %v2174, 4
      %v2197 = vsel %vm2193, %v2177, %v2180
      %v2198 = vsel %vm2196, %v2186, 2102212464
      %v2199 = vsel %vm2195, %v2183, %v2198
      %v2200 = vsel %vm2194, %v2197, %v2199
      %v2201 = vsel %vm2193, %v2180, %v2183
      %v2202 = vsel %vm2196, %v2189, 920167782
      %v2203 = vsel %vm2195, %v2186, %v2202
      %v2204 = vsel %vm2194, %v2201, %v2203
      %v2205 = vsel %vm2193, %v2183, %v2186
      %v2206 = vsel %vm2196, %v2192, 1326507024
      %v2207 = vsel %vm2195, %v2189, %v2206
      %v2208 = vsel %vm2194, %v2205, %v2207
      %v2209 = vshll.u32 %v2169, 8
      %v2210 = vmul.u32.u64.compose %v2209, %v2208
      %v2211 = vextract.low.u32 %v2210
      %v2212 = vextract.high.u32 %v2210
      %v2213 = vmul.u32.u64.compose %v2209, %v2204
      %v2214 = vextract.low.u32 %v2213
      %v2215 = vextract.high.u32 %v2213
      %v2216 = vmul.u32 %v2209, %v2200
      %v2217 = vadd.s32 %v2212, %v2214
      %vm2218 = vc.u32 %v2212, %v2214
      %v2219 = vadd.s32 %v2215, 1
      %v2220 = vsel %vm2218, %v2219, %v2215
      %v2221 = vadd.s32 %v2216, %v2220
      %v2222 = vadd.s32 %v2221, 536870912
      %v2223 = vshrl.u32 %v2222, 30
      %v2224 = vshll.u32 %v2223, 30
      %v2225 = vsub.s32 %v2221, %v2224
      %vm2226 = vcmp.lt.s32.totalorder %v2225, 0
      %v2227 = vsub.s32 0, %v2225
      %v2228 = vsel %vm2226, %v2227, %v2225
      %v2229 = vclz %v2228
      %v2230 = vsub.s32 %v2229, 2
      %vm2231 = vcmp.gt.s32.totalorder 0, %v2230
      %v2232 = vsel %vm2231, 0, %v2230
      %v2233 = vsub.s32 32, %v2232
      %v2234 = vshll.u32 %v2225, %v2232
      %v2235 = vshrl.u32 %v2217, %v2233
      %v2236 = vor.u32 %v2234, %v2235
      %v2237 = vsub.s32 4294967266, %v2232
      %v2238 = vadd.s32 %v2237, 127
      %v2239 = vshll.u32 %v2238, 23
      %v2240 = vor.u32 4788187, %v2239
      %v2241 = vand.u32 2147483647, %v2240
      %v2243 = vcvt.s32.f32 %v2236
      %v2244 = vmul.f32 %v2243, %v2241
      %v2245 = vxor.u32 %v2244, 2147483648
      %v2246 = vsel %vm2163, %v2245, %v2244
      %v2247 = vsub.s32 4, %v2223
      %v2248 = vsel %vm2163, %v2247, %v2223
      %v2249 = vsel %vm2162, %v420, %v2246
      %v2250 = vsel %vm2162, 0, %v2248
      %v2251 = vcosq.f32.pop %v2249
      %v2252 = vsinq.f32.pop %v2249
      %vm2253 = vweird.f32 %v420
      %v2254 = vadd.s32 %v2250, 3
      %v2255 = vand.u32 %v2254, 3
      %vm2256 = vcmp.lt.s32.totalorder %v2255, 2
      %vm2257 = vcmp.eq.s32.totalorder %v2255, 0
      %v2258 = vxor.u32 %v2252, 2147483648
      %v2259 = vsel %vm2257, %v2251, %v2258
      %vm2260 = vcmp.eq.s32.totalorder %v2255, 2
      %v2261 = vxor.u32 %v2251, 2147483648
      %v2262 = vsel %vm2260, %v2261, %v2252
      %v2263 = vsel %vm2256, %v2259, %v2262
      %v2264 = vsel %vm2253, nan, %v2263
      %v2265 = vand.u32 2147483647, %v425
      %vm2266 = vcmp.le.f32.partialorder %v2265, 0.7853982
      %vm2267 = vcmp.lt.s32.totalorder %v425, 0
      %v2268 = vand.u32 %v425, 2139095040
      %v2269 = vshrl.u32 %v2268, 23
      %v2270 = vsub.s32 %v2269, 127
      %v2271 = vand.u32 2147483647, %v425
      %v2272 = vand.u32 %v2271, 8388607
      %v2273 = vor.u32 %v2272, 8388608
      %v2274 = vsub.s32 0, %v2273
      %v2275 = vadd.s32 %v2270, 1
      %vm2276 = vcmp.gt.s32.totalorder %v2275, 0
      %v2277 = vsel %vm2276, %v2275, 0
      %v2278 = vshrl.u32 %v2277, 5
      %v2279 = vand.u32 %v2277, 31
      %v2280 = vsub.s32 32, %v2279
      %v2281 = vshrl.u32 683565275, %v2280
      %v2282 = vshll.u32 683565275, %v2279
      %v2283 = vshrl.u32 2475754826, %v2280
      %v2284 = vor.u32 %v2282, %v2283
      %v2285 = vshll.u32 2475754826, %v2279
      %v2286 = vshrl.u32 2131351028, %v2280
      %v2287 = vor.u32 %v2285, %v2286
      %v2288 = vshll.u32 2131351028, %v2279
      %v2289 = vshrl.u32 2102212464, %v2280
      %v2290 = vor.u32 %v2288, %v2289
      %v2291 = vshll.u32 2102212464, %v2279
      %v2292 = vshrl.u32 920167782, %v2280
      %v2293 = vor.u32 %v2291, %v2292
      %v2294 = vshll.u32 920167782, %v2279
      %v2295 = vshrl.u32 1326507024, %v2280
      %v2296 = vor.u32 %v2294, %v2295
      %vm2297 = vcmp.lt.s32.totalorder %v2278, 1
      %vm2298 = vcmp.lt.s32.totalorder %v2278, 2
      %vm2299 = vcmp.lt.s32.totalorder %v2278, 3
      %vm2300 = vcmp.lt.s32.totalorder %v2278, 4
      %v2301 = vsel %vm2297, %v2281, %v2284
      %v2302 = vsel %vm2300, %v2290, 2102212464
      %v2303 = vsel %vm2299, %v2287, %v2302
      %v2304 = vsel %vm2298, %v2301, %v2303
      %v2305 = vsel %vm2297, %v2284, %v2287
      %v2306 = vsel %vm2300, %v2293, 920167782
      %v2307 = vsel %vm2299, %v2290, %v2306
      %v2308 = vsel %vm2298, %v2305, %v2307
      %v2309 = vsel %vm2297, %v2287, %v2290
      %v2310 = vsel %vm2300, %v2296, 1326507024
      %v2311 = vsel %vm2299, %v2293, %v2310
      %v2312 = vsel %vm2298, %v2309, %v2311
      %v2313 = vshll.u32 %v2273, 8
      %v2314 = vmul.u32.u64.compose %v2313, %v2312
      %v2315 = vextract.low.u32 %v2314
      %v2316 = vextract.high.u32 %v2314
      %v2317 = vmul.u32.u64.compose %v2313, %v2308
      %v2318 = vextract.low.u32 %v2317
      %v2319 = vextract.high.u32 %v2317
      %v2320 = vmul.u32 %v2313, %v2304
      %v2321 = vadd.s32 %v2316, %v2318
      %vm2322 = vc.u32 %v2316, %v2318
      %v2323 = vadd.s32 %v2319, 1
      %v2324 = vsel %vm2322, %v2323, %v2319
      %v2325 = vadd.s32 %v2320, %v2324
      %v2326 = vadd.s32 %v2325, 536870912
      %v2327 = vshrl.u32 %v2326, 30
      %v2328 = vshll.u32 %v2327, 30
      %v2329 = vsub.s32 %v2325, %v2328
      %vm2330 = vcmp.lt.s32.totalorder %v2329, 0
      %v2331 = vsub.s32 0, %v2329
      %v2332 = vsel %vm2330, %v2331, %v2329
      %v2333 = vclz %v2332
      %v2334 = vsub.s32 %v2333, 2
      %vm2335 = vcmp.gt.s32.totalorder 0, %v2334
      %v2336 = vsel %vm2335, 0, %v2334
      %v2337 = vsub.s32 32, %v2336
      %v2338 = vshll.u32 %v2329, %v2336
      %v2339 = vshrl.u32 %v2321, %v2337
      %v2340 = vor.u32 %v2338, %v2339
      %v2341 = vsub.s32 4294967266, %v2336
      %v2342 = vadd.s32 %v2341, 127
      %v2343 = vshll.u32 %v2342, 23
      %v2344 = vor.u32 4788187, %v2343
      %v2345 = vand.u32 2147483647, %v2344
      %v2347 = vcvt.s32.f32 %v2340
      %v2348 = vmul.f32 %v2347, %v2345
      %v2349 = vxor.u32 %v2348, 2147483648
      %v2350 = vsel %vm2267, %v2349, %v2348
      %v2351 = vsub.s32 4, %v2327
      %v2352 = vsel %vm2267, %v2351, %v2327
      %v2353 = vsel %vm2266, %v425, %v2350
      %v2354 = vsel %vm2266, 0, %v2352
      %v2355 = vcosq.f32.pop %v2353
      %v2356 = vsinq.f32.pop %v2353
      %vm2357 = vweird.f32 %v425
      %v2358 = vadd.s32 %v2354, 3
      %v2359 = vand.u32 %v2358, 3
      %vm2360 = vcmp.lt.s32.totalorder %v2359, 2
      %vm2361 = vcmp.eq.s32.totalorder %v2359, 0
      %v2362 = vxor.u32 %v2356, 2147483648
      %v2363 = vsel %vm2361, %v2355, %v2362
      %vm2364 = vcmp.eq.s32.totalorder %v2359, 2
      %v2365 = vxor.u32 %v2355, 2147483648
      %v2366 = vsel %vm2364, %v2365, %v2356
      %v2367 = vsel %vm2360, %v2363, %v2366
      %v2368 = vsel %vm2357, nan, %v2367
      %v2369 = vand.u32 2147483647, %v430
      %vm2370 = vcmp.le.f32.partialorder %v2369, 0.7853982
      %vm2371 = vcmp.lt.s32.totalorder %v430, 0
      %v2372 = vand.u32 %v430, 2139095040
      %v2373 = vshrl.u32 %v2372, 23
      %v2374 = vsub.s32 %v2373, 127
      %v2375 = vand.u32 2147483647, %v430
      %v2376 = vand.u32 %v2375, 8388607
      %v2377 = vor.u32 %v2376, 8388608
      %v2378 = vsub.s32 0, %v2377
      %v2379 = vadd.s32 %v2374, 1
      %vm2380 = vcmp.gt.s32.totalorder %v2379, 0
      %v2381 = vsel %vm2380, %v2379, 0
      %v2382 = vshrl.u32 %v2381, 5
      %v2383 = vand.u32 %v2381, 31
      %v2384 = vsub.s32 32, %v2383
      %v2385 = vshrl.u32 683565275, %v2384
      %v2386 = vshll.u32 683565275, %v2383
      %v2387 = vshrl.u32 2475754826, %v2384
      %v2388 = vor.u32 %v2386, %v2387
      %v2389 = vshll.u32 2475754826, %v2383
      %v2390 = vshrl.u32 2131351028, %v2384
      %v2391 = vor.u32 %v2389, %v2390
      %v2392 = vshll.u32 2131351028, %v2383
      %v2393 = vshrl.u32 2102212464, %v2384
      %v2394 = vor.u32 %v2392, %v2393
      %v2395 = vshll.u32 2102212464, %v2383
      %v2396 = vshrl.u32 920167782, %v2384
      %v2397 = vor.u32 %v2395, %v2396
      %v2398 = vshll.u32 920167782, %v2383
      %v2399 = vshrl.u32 1326507024, %v2384
      %v2400 = vor.u32 %v2398, %v2399
      %vm2401 = vcmp.lt.s32.totalorder %v2382, 1
      %vm2402 = vcmp.lt.s32.totalorder %v2382, 2
      %vm2403 = vcmp.lt.s32.totalorder %v2382, 3
      %vm2404 = vcmp.lt.s32.totalorder %v2382, 4
      %v2405 = vsel %vm2401, %v2385, %v2388
      %v2406 = vsel %vm2404, %v2394, 2102212464
      %v2407 = vsel %vm2403, %v2391, %v2406
      %v2408 = vsel %vm2402, %v2405, %v2407
      %v2409 = vsel %vm2401, %v2388, %v2391
      %v2410 = vsel %vm2404, %v2397, 920167782
      %v2411 = vsel %vm2403, %v2394, %v2410
      %v2412 = vsel %vm2402, %v2409, %v2411
      %v2413 = vsel %vm2401, %v2391, %v2394
      %v2414 = vsel %vm2404, %v2400, 1326507024
      %v2415 = vsel %vm2403, %v2397, %v2414
      %v2416 = vsel %vm2402, %v2413, %v2415
      %v2417 = vshll.u32 %v2377, 8
      %v2418 = vmul.u32.u64.compose %v2417, %v2416
      %v2419 = vextract.low.u32 %v2418
      %v2420 = vextract.high.u32 %v2418
      %v2421 = vmul.u32.u64.compose %v2417, %v2412
      %v2422 = vextract.low.u32 %v2421
      %v2423 = vextract.high.u32 %v2421
      %v2424 = vmul.u32 %v2417, %v2408
      %v2425 = vadd.s32 %v2420, %v2422
      %vm2426 = vc.u32 %v2420, %v2422
      %v2427 = vadd.s32 %v2423, 1
      %v2428 = vsel %vm2426, %v2427, %v2423
      %v2429 = vadd.s32 %v2424, %v2428
      %v2430 = vadd.s32 %v2429, 536870912
      %v2431 = vshrl.u32 %v2430, 30
      %v2432 = vshll.u32 %v2431, 30
      %v2433 = vsub.s32 %v2429, %v2432
      %vm2434 = vcmp.lt.s32.totalorder %v2433, 0
      %v2435 = vsub.s32 0, %v2433
      %v2436 = vsel %vm2434, %v2435, %v2433
      %v2437 = vclz %v2436
      %v2438 = vsub.s32 %v2437, 2
      %vm2439 = vcmp.gt.s32.totalorder 0, %v2438
      %v2440 = vsel %vm2439, 0, %v2438
      %v2441 = vsub.s32 32, %v2440
      %v2442 = vshll.u32 %v2433, %v2440
      %v2443 = vshrl.u32 %v2425, %v2441
      %v2444 = vor.u32 %v2442, %v2443
      %v2445 = vsub.s32 4294967266, %v2440
      %v2446 = vadd.s32 %v2445, 127
      %v2447 = vshll.u32 %v2446, 23
      %v2448 = vor.u32 4788187, %v2447
      %v2449 = vand.u32 2147483647, %v2448
      %v2451 = vcvt.s32.f32 %v2444
      %v2452 = vmul.f32 %v2451, %v2449
      %v2453 = vxor.u32 %v2452, 2147483648
      %v2454 = vsel %vm2371, %v2453, %v2452
      %v2455 = vsub.s32 4, %v2431
      %v2456 = vsel %vm2371, %v2455, %v2431
      %v2457 = vsel %vm2370, %v430, %v2454
      %v2458 = vsel %vm2370, 0, %v2456
      %v2459 = vcosq.f32.pop %v2457
      %v2460 = vsinq.f32.pop %v2457
      %vm2461 = vweird.f32 %v430
      %v2462 = vadd.s32 %v2458, 3
      %v2463 = vand.u32 %v2462, 3
      %vm2464 = vcmp.lt.s32.totalorder %v2463, 2
      %vm2465 = vcmp.eq.s32.totalorder %v2463, 0
      %v2466 = vxor.u32 %v2460, 2147483648
      %v2467 = vsel %vm2465, %v2459, %v2466
      %vm2468 = vcmp.eq.s32.totalorder %v2463, 2
      %v2469 = vxor.u32 %v2459, 2147483648
      %v2470 = vsel %vm2468, %v2469, %v2460
      %v2471 = vsel %vm2464, %v2467, %v2470
      %v2472 = vsel %vm2461, nan, %v2471
      %v2473 = vand.u32 2147483647, %v435
      %vm2474 = vcmp.le.f32.partialorder %v2473, 0.7853982
      %vm2475 = vcmp.lt.s32.totalorder %v435, 0
      %v2476 = vand.u32 %v435, 2139095040
      %v2477 = vshrl.u32 %v2476, 23
      %v2478 = vsub.s32 %v2477, 127
      %v2479 = vand.u32 2147483647, %v435
      %v2480 = vand.u32 %v2479, 8388607
      %v2481 = vor.u32 %v2480, 8388608
      %v2482 = vsub.s32 0, %v2481
      %v2483 = vadd.s32 %v2478, 1
      %vm2484 = vcmp.gt.s32.totalorder %v2483, 0
      %v2485 = vsel %vm2484, %v2483, 0
      %v2486 = vshrl.u32 %v2485, 5
      %v2487 = vand.u32 %v2485, 31
      %v2488 = vsub.s32 32, %v2487
      %v2489 = vshrl.u32 683565275, %v2488
      %v2490 = vshll.u32 683565275, %v2487
      %v2491 = vshrl.u32 2475754826, %v2488
      %v2492 = vor.u32 %v2490, %v2491
      %v2493 = vshll.u32 2475754826, %v2487
      %v2494 = vshrl.u32 2131351028, %v2488
      %v2495 = vor.u32 %v2493, %v2494
      %v2496 = vshll.u32 2131351028, %v2487
      %v2497 = vshrl.u32 2102212464, %v2488
      %v2498 = vor.u32 %v2496, %v2497
      %v2499 = vshll.u32 2102212464, %v2487
      %v2500 = vshrl.u32 920167782, %v2488
      %v2501 = vor.u32 %v2499, %v2500
      %v2502 = vshll.u32 920167782, %v2487
      %v2503 = vshrl.u32 1326507024, %v2488
      %v2504 = vor.u32 %v2502, %v2503
      %vm2505 = vcmp.lt.s32.totalorder %v2486, 1
      %vm2506 = vcmp.lt.s32.totalorder %v2486, 2
      %vm2507 = vcmp.lt.s32.totalorder %v2486, 3
      %vm2508 = vcmp.lt.s32.totalorder %v2486, 4
      %v2509 = vsel %vm2505, %v2489, %v2492
      %v2510 = vsel %vm2508, %v2498, 2102212464
      %v2511 = vsel %vm2507, %v2495, %v2510
      %v2512 = vsel %vm2506, %v2509, %v2511
      %v2513 = vsel %vm2505, %v2492, %v2495
      %v2514 = vsel %vm2508, %v2501, 920167782
      %v2515 = vsel %vm2507, %v2498, %v2514
      %v2516 = vsel %vm2506, %v2513, %v2515
      %v2517 = vsel %vm2505, %v2495, %v2498
      %v2518 = vsel %vm2508, %v2504, 1326507024
      %v2519 = vsel %vm2507, %v2501, %v2518
      %v2520 = vsel %vm2506, %v2517, %v2519
      %v2521 = vshll.u32 %v2481, 8
      %v2522 = vmul.u32.u64.compose %v2521, %v2520
      %v2523 = vextract.low.u32 %v2522
      %v2524 = vextract.high.u32 %v2522
      %v2525 = vmul.u32.u64.compose %v2521, %v2516
      %v2526 = vextract.low.u32 %v2525
      %v2527 = vextract.high.u32 %v2525
      %v2528 = vmul.u32 %v2521, %v2512
      %v2529 = vadd.s32 %v2524, %v2526
      %vm2530 = vc.u32 %v2524, %v2526
      %v2531 = vadd.s32 %v2527, 1
      %v2532 = vsel %vm2530, %v2531, %v2527
      %v2533 = vadd.s32 %v2528, %v2532
      %v2534 = vadd.s32 %v2533, 536870912
      %v2535 = vshrl.u32 %v2534, 30
      %v2536 = vshll.u32 %v2535, 30
      %v2537 = vsub.s32 %v2533, %v2536
      %vm2538 = vcmp.lt.s32.totalorder %v2537, 0
      %v2539 = vsub.s32 0, %v2537
      %v2540 = vsel %vm2538, %v2539, %v2537
      %v2541 = vclz %v2540
      %v2542 = vsub.s32 %v2541, 2
      %vm2543 = vcmp.gt.s32.totalorder 0, %v2542
      %v2544 = vsel %vm2543, 0, %v2542
      %v2545 = vsub.s32 32, %v2544
      %v2546 = vshll.u32 %v2537, %v2544
      %v2547 = vshrl.u32 %v2529, %v2545
      %v2548 = vor.u32 %v2546, %v2547
      %v2549 = vsub.s32 4294967266, %v2544
      %v2550 = vadd.s32 %v2549, 127
      %v2551 = vshll.u32 %v2550, 23
      %v2552 = vor.u32 4788187, %v2551
      %v2553 = vand.u32 2147483647, %v2552
      %v2555 = vcvt.s32.f32 %v2548
      %v2556 = vmul.f32 %v2555, %v2553
      %v2557 = vxor.u32 %v2556, 2147483648
      %v2558 = vsel %vm2475, %v2557, %v2556
      %v2559 = vsub.s32 4, %v2535
      %v2560 = vsel %vm2475, %v2559, %v2535
      %v2561 = vsel %vm2474, %v435, %v2558
      %v2562 = vsel %vm2474, 0, %v2560
      %v2563 = vcosq.f32.pop %v2561
      %v2564 = vsinq.f32.pop %v2561
      %vm2565 = vweird.f32 %v435
      %v2566 = vadd.s32 %v2562, 3
      %v2567 = vand.u32 %v2566, 3
      %vm2568 = vcmp.lt.s32.totalorder %v2567, 2
      %vm2569 = vcmp.eq.s32.totalorder %v2567, 0
      %v2570 = vxor.u32 %v2564, 2147483648
      %v2571 = vsel %vm2569, %v2563, %v2570
      %vm2572 = vcmp.eq.s32.totalorder %v2567, 2
      %v2573 = vxor.u32 %v2563, 2147483648
      %v2574 = vsel %vm2572, %v2573, %v2564
      %v2575 = vsel %vm2568, %v2571, %v2574
      %v2576 = vsel %vm2565, nan, %v2575
      %v2577 = vand.u32 2147483647, %v440
      %vm2578 = vcmp.le.f32.partialorder %v2577, 0.7853982
      %vm2579 = vcmp.lt.s32.totalorder %v440, 0
      %v2580 = vand.u32 %v440, 2139095040
      %v2581 = vshrl.u32 %v2580, 23
      %v2582 = vsub.s32 %v2581, 127
      %v2583 = vand.u32 2147483647, %v440
      %v2584 = vand.u32 %v2583, 8388607
      %v2585 = vor.u32 %v2584, 8388608
      %v2586 = vsub.s32 0, %v2585
      %v2587 = vadd.s32 %v2582, 1
      %vm2588 = vcmp.gt.s32.totalorder %v2587, 0
      %v2589 = vsel %vm2588, %v2587, 0
      %v2590 = vshrl.u32 %v2589, 5
      %v2591 = vand.u32 %v2589, 31
      %v2592 = vsub.s32 32, %v2591
      %v2593 = vshrl.u32 683565275, %v2592
      %v2594 = vshll.u32 683565275, %v2591
      %v2595 = vshrl.u32 2475754826, %v2592
      %v2596 = vor.u32 %v2594, %v2595
      %v2597 = vshll.u32 2475754826, %v2591
      %v2598 = vshrl.u32 2131351028, %v2592
      %v2599 = vor.u32 %v2597, %v2598
      %v2600 = vshll.u32 2131351028, %v2591
      %v2601 = vshrl.u32 2102212464, %v2592
      %v2602 = vor.u32 %v2600, %v2601
      %v2603 = vshll.u32 2102212464, %v2591
      %v2604 = vshrl.u32 920167782, %v2592
      %v2605 = vor.u32 %v2603, %v2604
      %v2606 = vshll.u32 920167782, %v2591
      %v2607 = vshrl.u32 1326507024, %v2592
      %v2608 = vor.u32 %v2606, %v2607
      %vm2609 = vcmp.lt.s32.totalorder %v2590, 1
      %vm2610 = vcmp.lt.s32.totalorder %v2590, 2
      %vm2611 = vcmp.lt.s32.totalorder %v2590, 3
      %vm2612 = vcmp.lt.s32.totalorder %v2590, 4
      %v2613 = vsel %vm2609, %v2593, %v2596
      %v2614 = vsel %vm2612, %v2602, 2102212464
      %v2615 = vsel %vm2611, %v2599, %v2614
      %v2616 = vsel %vm2610, %v2613, %v2615
      %v2617 = vsel %vm2609, %v2596, %v2599
      %v2618 = vsel %vm2612, %v2605, 920167782
      %v2619 = vsel %vm2611, %v2602, %v2618
      %v2620 = vsel %vm2610, %v2617, %v2619
      %v2621 = vsel %vm2609, %v2599, %v2602
      %v2622 = vsel %vm2612, %v2608, 1326507024
      %v2623 = vsel %vm2611, %v2605, %v2622
      %v2624 = vsel %vm2610, %v2621, %v2623
      %v2625 = vshll.u32 %v2585, 8
      %v2626 = vmul.u32.u64.compose %v2625, %v2624
      %v2627 = vextract.low.u32 %v2626
      %v2628 = vextract.high.u32 %v2626
      %v2629 = vmul.u32.u64.compose %v2625, %v2620
      %v2630 = vextract.low.u32 %v2629
      %v2631 = vextract.high.u32 %v2629
      %v2632 = vmul.u32 %v2625, %v2616
      %v2633 = vadd.s32 %v2628, %v2630
      %vm2634 = vc.u32 %v2628, %v2630
      %v2635 = vadd.s32 %v2631, 1
      %v2636 = vsel %vm2634, %v2635, %v2631
      %v2637 = vadd.s32 %v2632, %v2636
      %v2638 = vadd.s32 %v2637, 536870912
      %v2639 = vshrl.u32 %v2638, 30
      %v2640 = vshll.u32 %v2639, 30
      %v2641 = vsub.s32 %v2637, %v2640
      %vm2642 = vcmp.lt.s32.totalorder %v2641, 0
      %v2643 = vsub.s32 0, %v2641
      %v2644 = vsel %vm2642, %v2643, %v2641
      %v2645 = vclz %v2644
      %v2646 = vsub.s32 %v2645, 2
      %vm2647 = vcmp.gt.s32.totalorder 0, %v2646
      %v2648 = vsel %vm2647, 0, %v2646
      %v2649 = vsub.s32 32, %v2648
      %v2650 = vshll.u32 %v2641, %v2648
      %v2651 = vshrl.u32 %v2633, %v2649
      %v2652 = vor.u32 %v2650, %v2651
      %v2653 = vsub.s32 4294967266, %v2648
      %v2654 = vadd.s32 %v2653, 127
      %v2655 = vshll.u32 %v2654, 23
      %v2656 = vor.u32 4788187, %v2655
      %v2657 = vand.u32 2147483647, %v2656
      %v2659 = vcvt.s32.f32 %v2652
      %v2660 = vmul.f32 %v2659, %v2657
      %v2661 = vxor.u32 %v2660, 2147483648
      %v2662 = vsel %vm2579, %v2661, %v2660
      %v2663 = vsub.s32 4, %v2639
      %v2664 = vsel %vm2579, %v2663, %v2639
      %v2665 = vsel %vm2578, %v440, %v2662
      %v2666 = vsel %vm2578, 0, %v2664
      %v2667 = vcosq.f32.pop %v2665
      %v2668 = vsinq.f32.pop %v2665
      %vm2669 = vweird.f32 %v440
      %v2670 = vadd.s32 %v2666, 3
      %v2671 = vand.u32 %v2670, 3
      %vm2672 = vcmp.lt.s32.totalorder %v2671, 2
      %vm2673 = vcmp.eq.s32.totalorder %v2671, 0
      %v2674 = vxor.u32 %v2668, 2147483648
      %v2675 = vsel %vm2673, %v2667, %v2674
      %vm2676 = vcmp.eq.s32.totalorder %v2671, 2
      %v2677 = vxor.u32 %v2667, 2147483648
      %v2678 = vsel %vm2676, %v2677, %v2668
      %v2679 = vsel %vm2672, %v2675, %v2678
      %v2680 = vsel %vm2669, nan, %v2679
      %v2681 = vand.u32 2147483647, %v445
      %vm2682 = vcmp.le.f32.partialorder %v2681, 0.7853982
      %vm2683 = vcmp.lt.s32.totalorder %v445, 0
      %v2684 = vand.u32 %v445, 2139095040
      %v2685 = vshrl.u32 %v2684, 23
      %v2686 = vsub.s32 %v2685, 127
      %v2687 = vand.u32 2147483647, %v445
      %v2688 = vand.u32 %v2687, 8388607
      %v2689 = vor.u32 %v2688, 8388608
      %v2690 = vsub.s32 0, %v2689
      %v2691 = vadd.s32 %v2686, 1
      %vm2692 = vcmp.gt.s32.totalorder %v2691, 0
      %v2693 = vsel %vm2692, %v2691, 0
      %v2694 = vshrl.u32 %v2693, 5
      %v2695 = vand.u32 %v2693, 31
      %v2696 = vsub.s32 32, %v2695
      %v2697 = vshrl.u32 683565275, %v2696
      %v2698 = vshll.u32 683565275, %v2695
      %v2699 = vshrl.u32 2475754826, %v2696
      %v2700 = vor.u32 %v2698, %v2699
      %v2701 = vshll.u32 2475754826, %v2695
      %v2702 = vshrl.u32 2131351028, %v2696
      %v2703 = vor.u32 %v2701, %v2702
      %v2704 = vshll.u32 2131351028, %v2695
      %v2705 = vshrl.u32 2102212464, %v2696
      %v2706 = vor.u32 %v2704, %v2705
      %v2707 = vshll.u32 2102212464, %v2695
      %v2708 = vshrl.u32 920167782, %v2696
      %v2709 = vor.u32 %v2707, %v2708
      %v2710 = vshll.u32 920167782, %v2695
      %v2711 = vshrl.u32 1326507024, %v2696
      %v2712 = vor.u32 %v2710, %v2711
      %vm2713 = vcmp.lt.s32.totalorder %v2694, 1
      %vm2714 = vcmp.lt.s32.totalorder %v2694, 2
      %vm2715 = vcmp.lt.s32.totalorder %v2694, 3
      %vm2716 = vcmp.lt.s32.totalorder %v2694, 4
      %v2717 = vsel %vm2713, %v2697, %v2700
      %v2718 = vsel %vm2716, %v2706, 2102212464
      %v2719 = vsel %vm2715, %v2703, %v2718
      %v2720 = vsel %vm2714, %v2717, %v2719
      %v2721 = vsel %vm2713, %v2700, %v2703
      %v2722 = vsel %vm2716, %v2709, 920167782
      %v2723 = vsel %vm2715, %v2706, %v2722
      %v2724 = vsel %vm2714, %v2721, %v2723
      %v2725 = vsel %vm2713, %v2703, %v2706
      %v2726 = vsel %vm2716, %v2712, 1326507024
      %v2727 = vsel %vm2715, %v2709, %v2726
      %v2728 = vsel %vm2714, %v2725, %v2727
      %v2729 = vshll.u32 %v2689, 8
      %v2730 = vmul.u32.u64.compose %v2729, %v2728
      %v2731 = vextract.low.u32 %v2730
      %v2732 = vextract.high.u32 %v2730
      %v2733 = vmul.u32.u64.compose %v2729, %v2724
      %v2734 = vextract.low.u32 %v2733
      %v2735 = vextract.high.u32 %v2733
      %v2736 = vmul.u32 %v2729, %v2720
      %v2737 = vadd.s32 %v2732, %v2734
      %vm2738 = vc.u32 %v2732, %v2734
      %v2739 = vadd.s32 %v2735, 1
      %v2740 = vsel %vm2738, %v2739, %v2735
      %v2741 = vadd.s32 %v2736, %v2740
      %v2742 = vadd.s32 %v2741, 536870912
      %v2743 = vshrl.u32 %v2742, 30
      %v2744 = vshll.u32 %v2743, 30
      %v2745 = vsub.s32 %v2741, %v2744
      %vm2746 = vcmp.lt.s32.totalorder %v2745, 0
      %v2747 = vsub.s32 0, %v2745
      %v2748 = vsel %vm2746, %v2747, %v2745
      %v2749 = vclz %v2748
      %v2750 = vsub.s32 %v2749, 2
      %vm2751 = vcmp.gt.s32.totalorder 0, %v2750
      %v2752 = vsel %vm2751, 0, %v2750
      %v2753 = vsub.s32 32, %v2752
      %v2754 = vshll.u32 %v2745, %v2752
      %v2755 = vshrl.u32 %v2737, %v2753
      %v2756 = vor.u32 %v2754, %v2755
      %v2757 = vsub.s32 4294967266, %v2752
      %v2758 = vadd.s32 %v2757, 127
      %v2759 = vshll.u32 %v2758, 23
      %v2760 = vor.u32 4788187, %v2759
      %v2761 = vand.u32 2147483647, %v2760
      %v2763 = vcvt.s32.f32 %v2756
      %v2764 = vmul.f32 %v2763, %v2761
      %v2765 = vxor.u32 %v2764, 2147483648
      %v2766 = vsel %vm2683, %v2765, %v2764
      %v2767 = vsub.s32 4, %v2743
      %v2768 = vsel %vm2683, %v2767, %v2743
      %v2769 = vsel %vm2682, %v445, %v2766
      %v2770 = vsel %vm2682, 0, %v2768
      %v2771 = vcosq.f32.pop %v2769
      %v2772 = vsinq.f32.pop %v2769
      %vm2773 = vweird.f32 %v445
      %v2774 = vadd.s32 %v2770, 3
      %v2775 = vand.u32 %v2774, 3
      %vm2776 = vcmp.lt.s32.totalorder %v2775, 2
      %vm2777 = vcmp.eq.s32.totalorder %v2775, 0
      %v2778 = vxor.u32 %v2772, 2147483648
      %v2779 = vsel %vm2777, %v2771, %v2778
      %vm2780 = vcmp.eq.s32.totalorder %v2775, 2
      %v2781 = vxor.u32 %v2771, 2147483648
      %v2782 = vsel %vm2780, %v2781, %v2772
      %v2783 = vsel %vm2776, %v2779, %v2782
      %v2784 = vsel %vm2773, nan, %v2783
      %v2785 = vand.u32 2147483647, %v450
      %vm2786 = vcmp.le.f32.partialorder %v2785, 0.7853982
      %vm2787 = vcmp.lt.s32.totalorder %v450, 0
      %v2788 = vand.u32 %v450, 2139095040
      %v2789 = vshrl.u32 %v2788, 23
      %v2790 = vsub.s32 %v2789, 127
      %v2791 = vand.u32 2147483647, %v450
      %v2792 = vand.u32 %v2791, 8388607
      %v2793 = vor.u32 %v2792, 8388608
      %v2794 = vsub.s32 0, %v2793
      %v2795 = vadd.s32 %v2790, 1
      %vm2796 = vcmp.gt.s32.totalorder %v2795, 0
      %v2797 = vsel %vm2796, %v2795, 0
      %v2798 = vshrl.u32 %v2797, 5
      %v2799 = vand.u32 %v2797, 31
      %v2800 = vsub.s32 32, %v2799
      %v2801 = vshrl.u32 683565275, %v2800
      %v2802 = vshll.u32 683565275, %v2799
      %v2803 = vshrl.u32 2475754826, %v2800
      %v2804 = vor.u32 %v2802, %v2803
      %v2805 = vshll.u32 2475754826, %v2799
      %v2806 = vshrl.u32 2131351028, %v2800
      %v2807 = vor.u32 %v2805, %v2806
      %v2808 = vshll.u32 2131351028, %v2799
      %v2809 = vshrl.u32 2102212464, %v2800
      %v2810 = vor.u32 %v2808, %v2809
      %v2811 = vshll.u32 2102212464, %v2799
      %v2812 = vshrl.u32 920167782, %v2800
      %v2813 = vor.u32 %v2811, %v2812
      %v2814 = vshll.u32 920167782, %v2799
      %v2815 = vshrl.u32 1326507024, %v2800
      %v2816 = vor.u32 %v2814, %v2815
      %vm2817 = vcmp.lt.s32.totalorder %v2798, 1
      %vm2818 = vcmp.lt.s32.totalorder %v2798, 2
      %vm2819 = vcmp.lt.s32.totalorder %v2798, 3
      %vm2820 = vcmp.lt.s32.totalorder %v2798, 4
      %v2821 = vsel %vm2817, %v2801, %v2804
      %v2822 = vsel %vm2820, %v2810, 2102212464
      %v2823 = vsel %vm2819, %v2807, %v2822
      %v2824 = vsel %vm2818, %v2821, %v2823
      %v2825 = vsel %vm2817, %v2804, %v2807
      %v2826 = vsel %vm2820, %v2813, 920167782
      %v2827 = vsel %vm2819, %v2810, %v2826
      %v2828 = vsel %vm2818, %v2825, %v2827
      %v2829 = vsel %vm2817, %v2807, %v2810
      %v2830 = vsel %vm2820, %v2816, 1326507024
      %v2831 = vsel %vm2819, %v2813, %v2830
      %v2832 = vsel %vm2818, %v2829, %v2831
      %v2833 = vshll.u32 %v2793, 8
      %v2834 = vmul.u32.u64.compose %v2833, %v2832
      %v2835 = vextract.low.u32 %v2834
      %v2836 = vextract.high.u32 %v2834
      %v2837 = vmul.u32.u64.compose %v2833, %v2828
      %v2838 = vextract.low.u32 %v2837
      %v2839 = vextract.high.u32 %v2837
      %v2840 = vmul.u32 %v2833, %v2824
      %v2841 = vadd.s32 %v2836, %v2838
      %vm2842 = vc.u32 %v2836, %v2838
      %v2843 = vadd.s32 %v2839, 1
      %v2844 = vsel %vm2842, %v2843, %v2839
      %v2845 = vadd.s32 %v2840, %v2844
      %v2846 = vadd.s32 %v2845, 536870912
      %v2847 = vshrl.u32 %v2846, 30
      %v2848 = vshll.u32 %v2847, 30
      %v2849 = vsub.s32 %v2845, %v2848
      %vm2850 = vcmp.lt.s32.totalorder %v2849, 0
      %v2851 = vsub.s32 0, %v2849
      %v2852 = vsel %vm2850, %v2851, %v2849
      %v2853 = vclz %v2852
      %v2854 = vsub.s32 %v2853, 2
      %vm2855 = vcmp.gt.s32.totalorder 0, %v2854
      %v2856 = vsel %vm2855, 0, %v2854
      %v2857 = vsub.s32 32, %v2856
      %v2858 = vshll.u32 %v2849, %v2856
      %v2859 = vshrl.u32 %v2841, %v2857
      %v2860 = vor.u32 %v2858, %v2859
      %v2861 = vsub.s32 4294967266, %v2856
      %v2862 = vadd.s32 %v2861, 127
      %v2863 = vshll.u32 %v2862, 23
      %v2864 = vor.u32 4788187, %v2863
      %v2865 = vand.u32 2147483647, %v2864
      %v2867 = vcvt.s32.f32 %v2860
      %v2868 = vmul.f32 %v2867, %v2865
      %v2869 = vxor.u32 %v2868, 2147483648
      %v2870 = vsel %vm2787, %v2869, %v2868
      %v2871 = vsub.s32 4, %v2847
      %v2872 = vsel %vm2787, %v2871, %v2847
      %v2873 = vsel %vm2786, %v450, %v2870
      %v2874 = vsel %vm2786, 0, %v2872
      %v2875 = vcosq.f32.pop %v2873
      %v2876 = vsinq.f32.pop %v2873
      %vm2877 = vweird.f32 %v450
      %v2878 = vadd.s32 %v2874, 3
      %v2879 = vand.u32 %v2878, 3
      %vm2880 = vcmp.lt.s32.totalorder %v2879, 2
      %vm2881 = vcmp.eq.s32.totalorder %v2879, 0
      %v2882 = vxor.u32 %v2876, 2147483648
      %v2883 = vsel %vm2881, %v2875, %v2882
      %vm2884 = vcmp.eq.s32.totalorder %v2879, 2
      %v2885 = vxor.u32 %v2875, 2147483648
      %v2886 = vsel %vm2884, %v2885, %v2876
      %v2887 = vsel %vm2880, %v2883, %v2886
      %v2888 = vsel %vm2877, nan, %v2887
      %v2889 = vand.u32 2147483647, %v455
      %vm2890 = vcmp.le.f32.partialorder %v2889, 0.7853982
      %vm2891 = vcmp.lt.s32.totalorder %v455, 0
      %v2892 = vand.u32 %v455, 2139095040
      %v2893 = vshrl.u32 %v2892, 23
      %v2894 = vsub.s32 %v2893, 127
      %v2895 = vand.u32 2147483647, %v455
      %v2896 = vand.u32 %v2895, 8388607
      %v2897 = vor.u32 %v2896, 8388608
      %v2898 = vsub.s32 0, %v2897
      %v2899 = vadd.s32 %v2894, 1
      %vm2900 = vcmp.gt.s32.totalorder %v2899, 0
      %v2901 = vsel %vm2900, %v2899, 0
      %v2902 = vshrl.u32 %v2901, 5
      %v2903 = vand.u32 %v2901, 31
      %v2904 = vsub.s32 32, %v2903
      %v2905 = vshrl.u32 683565275, %v2904
      %v2906 = vshll.u32 683565275, %v2903
      %v2907 = vshrl.u32 2475754826, %v2904
      %v2908 = vor.u32 %v2906, %v2907
      %v2909 = vshll.u32 2475754826, %v2903
      %v2910 = vshrl.u32 2131351028, %v2904
      %v2911 = vor.u32 %v2909, %v2910
      %v2912 = vshll.u32 2131351028, %v2903
      %v2913 = vshrl.u32 2102212464, %v2904
      %v2914 = vor.u32 %v2912, %v2913
      %v2915 = vshll.u32 2102212464, %v2903
      %v2916 = vshrl.u32 920167782, %v2904
      %v2917 = vor.u32 %v2915, %v2916
      %v2918 = vshll.u32 920167782, %v2903
      %v2919 = vshrl.u32 1326507024, %v2904
      %v2920 = vor.u32 %v2918, %v2919
      %vm2921 = vcmp.lt.s32.totalorder %v2902, 1
      %vm2922 = vcmp.lt.s32.totalorder %v2902, 2
      %vm2923 = vcmp.lt.s32.totalorder %v2902, 3
      %vm2924 = vcmp.lt.s32.totalorder %v2902, 4
      %v2925 = vsel %vm2921, %v2905, %v2908
      %v2926 = vsel %vm2924, %v2914, 2102212464
      %v2927 = vsel %vm2923, %v2911, %v2926
      %v2928 = vsel %vm2922, %v2925, %v2927
      %v2929 = vsel %vm2921, %v2908, %v2911
      %v2930 = vsel %vm2924, %v2917, 920167782
      %v2931 = vsel %vm2923, %v2914, %v2930
      %v2932 = vsel %vm2922, %v2929, %v2931
      %v2933 = vsel %vm2921, %v2911, %v2914
      %v2934 = vsel %vm2924, %v2920, 1326507024
      %v2935 = vsel %vm2923, %v2917, %v2934
      %v2936 = vsel %vm2922, %v2933, %v2935
      %v2937 = vshll.u32 %v2897, 8
      %v2938 = vmul.u32.u64.compose %v2937, %v2936
      %v2939 = vextract.low.u32 %v2938
      %v2940 = vextract.high.u32 %v2938
      %v2941 = vmul.u32.u64.compose %v2937, %v2932
      %v2942 = vextract.low.u32 %v2941
      %v2943 = vextract.high.u32 %v2941
      %v2944 = vmul.u32 %v2937, %v2928
      %v2945 = vadd.s32 %v2940, %v2942
      %vm2946 = vc.u32 %v2940, %v2942
      %v2947 = vadd.s32 %v2943, 1
      %v2948 = vsel %vm2946, %v2947, %v2943
      %v2949 = vadd.s32 %v2944, %v2948
      %v2950 = vadd.s32 %v2949, 536870912
      %v2951 = vshrl.u32 %v2950, 30
      %v2952 = vshll.u32 %v2951, 30
      %v2953 = vsub.s32 %v2949, %v2952
      %vm2954 = vcmp.lt.s32.totalorder %v2953, 0
      %v2955 = vsub.s32 0, %v2953
      %v2956 = vsel %vm2954, %v2955, %v2953
      %v2957 = vclz %v2956
      %v2958 = vsub.s32 %v2957, 2
      %vm2959 = vcmp.gt.s32.totalorder 0, %v2958
      %v2960 = vsel %vm2959, 0, %v2958
      %v2961 = vsub.s32 32, %v2960
      %v2962 = vshll.u32 %v2953, %v2960
      %v2963 = vshrl.u32 %v2945, %v2961
      %v2964 = vor.u32 %v2962, %v2963
      %v2965 = vsub.s32 4294967266, %v2960
      %v2966 = vadd.s32 %v2965, 127
      %v2967 = vshll.u32 %v2966, 23
      %v2968 = vor.u32 4788187, %v2967
      %v2969 = vand.u32 2147483647, %v2968
      %v2971 = vcvt.s32.f32 %v2964
      %v2972 = vmul.f32 %v2971, %v2969
      %v2973 = vxor.u32 %v2972, 2147483648
      %v2974 = vsel %vm2891, %v2973, %v2972
      %v2975 = vsub.s32 4, %v2951
      %v2976 = vsel %vm2891, %v2975, %v2951
      %v2977 = vsel %vm2890, %v455, %v2974
      %v2978 = vsel %vm2890, 0, %v2976
      %v2979 = vcosq.f32.pop %v2977
      %v2980 = vsinq.f32.pop %v2977
      %vm2981 = vweird.f32 %v455
      %v2982 = vadd.s32 %v2978, 3
      %v2983 = vand.u32 %v2982, 3
      %vm2984 = vcmp.lt.s32.totalorder %v2983, 2
      %vm2985 = vcmp.eq.s32.totalorder %v2983, 0
      %v2986 = vxor.u32 %v2980, 2147483648
      %v2987 = vsel %vm2985, %v2979, %v2986
      %vm2988 = vcmp.eq.s32.totalorder %v2983, 2
      %v2989 = vxor.u32 %v2979, 2147483648
      %v2990 = vsel %vm2988, %v2989, %v2980
      %v2991 = vsel %vm2984, %v2987, %v2990
      %v2992 = vsel %vm2981, nan, %v2991
      %v2993 = vand.u32 2147483647, %v460
      %vm2994 = vcmp.le.f32.partialorder %v2993, 0.7853982
      %vm2995 = vcmp.lt.s32.totalorder %v460, 0
      %v2996 = vand.u32 %v460, 2139095040
      %v2997 = vshrl.u32 %v2996, 23
      %v2998 = vsub.s32 %v2997, 127
      %v2999 = vand.u32 2147483647, %v460
      %v3000 = vand.u32 %v2999, 8388607
      %v3001 = vor.u32 %v3000, 8388608
      %v3002 = vsub.s32 0, %v3001
      %v3003 = vadd.s32 %v2998, 1
      %vm3004 = vcmp.gt.s32.totalorder %v3003, 0
      %v3005 = vsel %vm3004, %v3003, 0
      %v3006 = vshrl.u32 %v3005, 5
      %v3007 = vand.u32 %v3005, 31
      %v3008 = vsub.s32 32, %v3007
      %v3009 = vshrl.u32 683565275, %v3008
      %v3010 = vshll.u32 683565275, %v3007
      %v3011 = vshrl.u32 2475754826, %v3008
      %v3012 = vor.u32 %v3010, %v3011
      %v3013 = vshll.u32 2475754826, %v3007
      %v3014 = vshrl.u32 2131351028, %v3008
      %v3015 = vor.u32 %v3013, %v3014
      %v3016 = vshll.u32 2131351028, %v3007
      %v3017 = vshrl.u32 2102212464, %v3008
      %v3018 = vor.u32 %v3016, %v3017
      %v3019 = vshll.u32 2102212464, %v3007
      %v3020 = vshrl.u32 920167782, %v3008
      %v3021 = vor.u32 %v3019, %v3020
      %v3022 = vshll.u32 920167782, %v3007
      %v3023 = vshrl.u32 1326507024, %v3008
      %v3024 = vor.u32 %v3022, %v3023
      %vm3025 = vcmp.lt.s32.totalorder %v3006, 1
      %vm3026 = vcmp.lt.s32.totalorder %v3006, 2
      %vm3027 = vcmp.lt.s32.totalorder %v3006, 3
      %vm3028 = vcmp.lt.s32.totalorder %v3006, 4
      %v3029 = vsel %vm3025, %v3009, %v3012
      %v3030 = vsel %vm3028, %v3018, 2102212464
      %v3031 = vsel %vm3027, %v3015, %v3030
      %v3032 = vsel %vm3026, %v3029, %v3031
      %v3033 = vsel %vm3025, %v3012, %v3015
      %v3034 = vsel %vm3028, %v3021, 920167782
      %v3035 = vsel %vm3027, %v3018, %v3034
      %v3036 = vsel %vm3026, %v3033, %v3035
      %v3037 = vsel %vm3025, %v3015, %v3018
      %v3038 = vsel %vm3028, %v3024, 1326507024
      %v3039 = vsel %vm3027, %v3021, %v3038
      %v3040 = vsel %vm3026, %v3037, %v3039
      %v3041 = vshll.u32 %v3001, 8
      %v3042 = vmul.u32.u64.compose %v3041, %v3040
      %v3043 = vextract.low.u32 %v3042
      %v3044 = vextract.high.u32 %v3042
      %v3045 = vmul.u32.u64.compose %v3041, %v3036
      %v3046 = vextract.low.u32 %v3045
      %v3047 = vextract.high.u32 %v3045
      %v3048 = vmul.u32 %v3041, %v3032
      %v3049 = vadd.s32 %v3044, %v3046
      %vm3050 = vc.u32 %v3044, %v3046
      %v3051 = vadd.s32 %v3047, 1
      %v3052 = vsel %vm3050, %v3051, %v3047
      %v3053 = vadd.s32 %v3048, %v3052
      %v3054 = vadd.s32 %v3053, 536870912
      %v3055 = vshrl.u32 %v3054, 30
      %v3056 = vshll.u32 %v3055, 30
      %v3057 = vsub.s32 %v3053, %v3056
      %vm3058 = vcmp.lt.s32.totalorder %v3057, 0
      %v3059 = vsub.s32 0, %v3057
      %v3060 = vsel %vm3058, %v3059, %v3057
      %v3061 = vclz %v3060
      %v3062 = vsub.s32 %v3061, 2
      %vm3063 = vcmp.gt.s32.totalorder 0, %v3062
      %v3064 = vsel %vm3063, 0, %v3062
      %v3065 = vsub.s32 32, %v3064
      %v3066 = vshll.u32 %v3057, %v3064
      %v3067 = vshrl.u32 %v3049, %v3065
      %v3068 = vor.u32 %v3066, %v3067
      %v3069 = vsub.s32 4294967266, %v3064
      %v3070 = vadd.s32 %v3069, 127
      %v3071 = vshll.u32 %v3070, 23
      %v3072 = vor.u32 4788187, %v3071
      %v3073 = vand.u32 2147483647, %v3072
      %v3075 = vcvt.s32.f32 %v3068
      %v3076 = vmul.f32 %v3075, %v3073
      %v3077 = vxor.u32 %v3076, 2147483648
      %v3078 = vsel %vm2995, %v3077, %v3076
      %v3079 = vsub.s32 4, %v3055
      %v3080 = vsel %vm2995, %v3079, %v3055
      %v3081 = vsel %vm2994, %v460, %v3078
      %v3082 = vsel %vm2994, 0, %v3080
      %v3083 = vcosq.f32.pop %v3081
      %v3084 = vsinq.f32.pop %v3081
      %vm3085 = vweird.f32 %v460
      %v3086 = vadd.s32 %v3082, 3
      %v3087 = vand.u32 %v3086, 3
      %vm3088 = vcmp.lt.s32.totalorder %v3087, 2
      %vm3089 = vcmp.eq.s32.totalorder %v3087, 0
      %v3090 = vxor.u32 %v3084, 2147483648
      %v3091 = vsel %vm3089, %v3083, %v3090
      %vm3092 = vcmp.eq.s32.totalorder %v3087, 2
      %v3093 = vxor.u32 %v3083, 2147483648
      %v3094 = vsel %vm3092, %v3093, %v3084
      %v3095 = vsel %vm3088, %v3091, %v3094
      %v3096 = vsel %vm3085, nan, %v3095
      %v3097 = vand.u32 2147483647, %v465
      %vm3098 = vcmp.le.f32.partialorder %v3097, 0.7853982
      %vm3099 = vcmp.lt.s32.totalorder %v465, 0
      %v3100 = vand.u32 %v465, 2139095040
      %v3101 = vshrl.u32 %v3100, 23
      %v3102 = vsub.s32 %v3101, 127
      %v3103 = vand.u32 2147483647, %v465
      %v3104 = vand.u32 %v3103, 8388607
      %v3105 = vor.u32 %v3104, 8388608
      %v3106 = vsub.s32 0, %v3105
      %v3107 = vadd.s32 %v3102, 1
      %vm3108 = vcmp.gt.s32.totalorder %v3107, 0
      %v3109 = vsel %vm3108, %v3107, 0
      %v3110 = vshrl.u32 %v3109, 5
      %v3111 = vand.u32 %v3109, 31
      %v3112 = vsub.s32 32, %v3111
      %v3113 = vshrl.u32 683565275, %v3112
      %v3114 = vshll.u32 683565275, %v3111
      %v3115 = vshrl.u32 2475754826, %v3112
      %v3116 = vor.u32 %v3114, %v3115
      %v3117 = vshll.u32 2475754826, %v3111
      %v3118 = vshrl.u32 2131351028, %v3112
      %v3119 = vor.u32 %v3117, %v3118
      %v3120 = vshll.u32 2131351028, %v3111
      %v3121 = vshrl.u32 2102212464, %v3112
      %v3122 = vor.u32 %v3120, %v3121
      %v3123 = vshll.u32 2102212464, %v3111
      %v3124 = vshrl.u32 920167782, %v3112
      %v3125 = vor.u32 %v3123, %v3124
      %v3126 = vshll.u32 920167782, %v3111
      %v3127 = vshrl.u32 1326507024, %v3112
      %v3128 = vor.u32 %v3126, %v3127
      %vm3129 = vcmp.lt.s32.totalorder %v3110, 1
      %vm3130 = vcmp.lt.s32.totalorder %v3110, 2
      %vm3131 = vcmp.lt.s32.totalorder %v3110, 3
      %vm3132 = vcmp.lt.s32.totalorder %v3110, 4
      %v3133 = vsel %vm3129, %v3113, %v3116
      %v3134 = vsel %vm3132, %v3122, 2102212464
      %v3135 = vsel %vm3131, %v3119, %v3134
      %v3136 = vsel %vm3130, %v3133, %v3135
      %v3137 = vsel %vm3129, %v3116, %v3119
      %v3138 = vsel %vm3132, %v3125, 920167782
      %v3139 = vsel %vm3131, %v3122, %v3138
      %v3140 = vsel %vm3130, %v3137, %v3139
      %v3141 = vsel %vm3129, %v3119, %v3122
      %v3142 = vsel %vm3132, %v3128, 1326507024
      %v3143 = vsel %vm3131, %v3125, %v3142
      %v3144 = vsel %vm3130, %v3141, %v3143
      %v3145 = vshll.u32 %v3105, 8
      %v3146 = vmul.u32.u64.compose %v3145, %v3144
      %v3147 = vextract.low.u32 %v3146
      %v3148 = vextract.high.u32 %v3146
      %v3149 = vmul.u32.u64.compose %v3145, %v3140
      %v3150 = vextract.low.u32 %v3149
      %v3151 = vextract.high.u32 %v3149
      %v3152 = vmul.u32 %v3145, %v3136
      %v3153 = vadd.s32 %v3148, %v3150
      %vm3154 = vc.u32 %v3148, %v3150
      %v3155 = vadd.s32 %v3151, 1
      %v3156 = vsel %vm3154, %v3155, %v3151
      %v3157 = vadd.s32 %v3152, %v3156
      %v3158 = vadd.s32 %v3157, 536870912
      %v3159 = vshrl.u32 %v3158, 30
      %v3160 = vshll.u32 %v3159, 30
      %v3161 = vsub.s32 %v3157, %v3160
      %vm3162 = vcmp.lt.s32.totalorder %v3161, 0
      %v3163 = vsub.s32 0, %v3161
      %v3164 = vsel %vm3162, %v3163, %v3161
      %v3165 = vclz %v3164
      %v3166 = vsub.s32 %v3165, 2
      %vm3167 = vcmp.gt.s32.totalorder 0, %v3166
      %v3168 = vsel %vm3167, 0, %v3166
      %v3169 = vsub.s32 32, %v3168
      %v3170 = vshll.u32 %v3161, %v3168
      %v3171 = vshrl.u32 %v3153, %v3169
      %v3172 = vor.u32 %v3170, %v3171
      %v3173 = vsub.s32 4294967266, %v3168
      %v3174 = vadd.s32 %v3173, 127
      %v3175 = vshll.u32 %v3174, 23
      %v3176 = vor.u32 4788187, %v3175
      %v3177 = vand.u32 2147483647, %v3176
      %v3179 = vcvt.s32.f32 %v3172
      %v3180 = vmul.f32 %v3179, %v3177
      %v3181 = vxor.u32 %v3180, 2147483648
      %v3182 = vsel %vm3099, %v3181, %v3180
      %v3183 = vsub.s32 4, %v3159
      %v3184 = vsel %vm3099, %v3183, %v3159
      %v3185 = vsel %vm3098, %v465, %v3182
      %v3186 = vsel %vm3098, 0, %v3184
      %v3187 = vcosq.f32.pop %v3185
      %v3188 = vsinq.f32.pop %v3185
      %vm3189 = vweird.f32 %v465
      %v3190 = vadd.s32 %v3186, 3
      %v3191 = vand.u32 %v3190, 3
      %vm3192 = vcmp.lt.s32.totalorder %v3191, 2
      %vm3193 = vcmp.eq.s32.totalorder %v3191, 0
      %v3194 = vxor.u32 %v3188, 2147483648
      %v3195 = vsel %vm3193, %v3187, %v3194
      %vm3196 = vcmp.eq.s32.totalorder %v3191, 2
      %v3197 = vxor.u32 %v3187, 2147483648
      %v3198 = vsel %vm3196, %v3197, %v3188
      %v3199 = vsel %vm3192, %v3195, %v3198
      %v3200 = vsel %vm3189, nan, %v3199
      %v3201 = vand.u32 2147483647, %v470
      %vm3202 = vcmp.le.f32.partialorder %v3201, 0.7853982
      %vm3203 = vcmp.lt.s32.totalorder %v470, 0
      %v3204 = vand.u32 %v470, 2139095040
      %v3205 = vshrl.u32 %v3204, 23
      %v3206 = vsub.s32 %v3205, 127
      %v3207 = vand.u32 2147483647, %v470
      %v3208 = vand.u32 %v3207, 8388607
      %v3209 = vor.u32 %v3208, 8388608
      %v3210 = vsub.s32 0, %v3209
      %v3211 = vadd.s32 %v3206, 1
      %vm3212 = vcmp.gt.s32.totalorder %v3211, 0
      %v3213 = vsel %vm3212, %v3211, 0
      %v3214 = vshrl.u32 %v3213, 5
      %v3215 = vand.u32 %v3213, 31
      %v3216 = vsub.s32 32, %v3215
      %v3217 = vshrl.u32 683565275, %v3216
      %v3218 = vshll.u32 683565275, %v3215
      %v3219 = vshrl.u32 2475754826, %v3216
      %v3220 = vor.u32 %v3218, %v3219
      %v3221 = vshll.u32 2475754826, %v3215
      %v3222 = vshrl.u32 2131351028, %v3216
      %v3223 = vor.u32 %v3221, %v3222
      %v3224 = vshll.u32 2131351028, %v3215
      %v3225 = vshrl.u32 2102212464, %v3216
      %v3226 = vor.u32 %v3224, %v3225
      %v3227 = vshll.u32 2102212464, %v3215
      %v3228 = vshrl.u32 920167782, %v3216
      %v3229 = vor.u32 %v3227, %v3228
      %v3230 = vshll.u32 920167782, %v3215
      %v3231 = vshrl.u32 1326507024, %v3216
      %v3232 = vor.u32 %v3230, %v3231
      %vm3233 = vcmp.lt.s32.totalorder %v3214, 1
      %vm3234 = vcmp.lt.s32.totalorder %v3214, 2
      %vm3235 = vcmp.lt.s32.totalorder %v3214, 3
      %vm3236 = vcmp.lt.s32.totalorder %v3214, 4
      %v3237 = vsel %vm3233, %v3217, %v3220
      %v3238 = vsel %vm3236, %v3226, 2102212464
      %v3239 = vsel %vm3235, %v3223, %v3238
      %v3240 = vsel %vm3234, %v3237, %v3239
      %v3241 = vsel %vm3233, %v3220, %v3223
      %v3242 = vsel %vm3236, %v3229, 920167782
      %v3243 = vsel %vm3235, %v3226, %v3242
      %v3244 = vsel %vm3234, %v3241, %v3243
      %v3245 = vsel %vm3233, %v3223, %v3226
      %v3246 = vsel %vm3236, %v3232, 1326507024
      %v3247 = vsel %vm3235, %v3229, %v3246
      %v3248 = vsel %vm3234, %v3245, %v3247
      %v3249 = vshll.u32 %v3209, 8
      %v3250 = vmul.u32.u64.compose %v3249, %v3248
      %v3251 = vextract.low.u32 %v3250
      %v3252 = vextract.high.u32 %v3250
      %v3253 = vmul.u32.u64.compose %v3249, %v3244
      %v3254 = vextract.low.u32 %v3253
      %v3255 = vextract.high.u32 %v3253
      %v3256 = vmul.u32 %v3249, %v3240
      %v3257 = vadd.s32 %v3252, %v3254
      %vm3258 = vc.u32 %v3252, %v3254
      %v3259 = vadd.s32 %v3255, 1
      %v3260 = vsel %vm3258, %v3259, %v3255
      %v3261 = vadd.s32 %v3256, %v3260
      %v3262 = vadd.s32 %v3261, 536870912
      %v3263 = vshrl.u32 %v3262, 30
      %v3264 = vshll.u32 %v3263, 30
      %v3265 = vsub.s32 %v3261, %v3264
      %vm3266 = vcmp.lt.s32.totalorder %v3265, 0
      %v3267 = vsub.s32 0, %v3265
      %v3268 = vsel %vm3266, %v3267, %v3265
      %v3269 = vclz %v3268
      %v3270 = vsub.s32 %v3269, 2
      %vm3271 = vcmp.gt.s32.totalorder 0, %v3270
      %v3272 = vsel %vm3271, 0, %v3270
      %v3273 = vsub.s32 32, %v3272
      %v3274 = vshll.u32 %v3265, %v3272
      %v3275 = vshrl.u32 %v3257, %v3273
      %v3276 = vor.u32 %v3274, %v3275
      %v3277 = vsub.s32 4294967266, %v3272
      %v3278 = vadd.s32 %v3277, 127
      %v3279 = vshll.u32 %v3278, 23
      %v3280 = vor.u32 4788187, %v3279
      %v3281 = vand.u32 2147483647, %v3280
      %v3283 = vcvt.s32.f32 %v3276
      %v3284 = vmul.f32 %v3283, %v3281
      %v3285 = vxor.u32 %v3284, 2147483648
      %v3286 = vsel %vm3203, %v3285, %v3284
      %v3287 = vsub.s32 4, %v3263
      %v3288 = vsel %vm3203, %v3287, %v3263
      %v3289 = vsel %vm3202, %v470, %v3286
      %v3290 = vsel %vm3202, 0, %v3288
      %v3291 = vcosq.f32.pop %v3289
      %v3292 = vsinq.f32.pop %v3289
      %vm3293 = vweird.f32 %v470
      %v3294 = vadd.s32 %v3290, 3
      %v3295 = vand.u32 %v3294, 3
      %vm3296 = vcmp.lt.s32.totalorder %v3295, 2
      %vm3297 = vcmp.eq.s32.totalorder %v3295, 0
      %v3298 = vxor.u32 %v3292, 2147483648
      %v3299 = vsel %vm3297, %v3291, %v3298
      %vm3300 = vcmp.eq.s32.totalorder %v3295, 2
      %v3301 = vxor.u32 %v3291, 2147483648
      %v3302 = vsel %vm3300, %v3301, %v3292
      %v3303 = vsel %vm3296, %v3299, %v3302
      %v3304 = vsel %vm3293, nan, %v3303
      %v3305 = vand.u32 2147483647, %v475
      %vm3306 = vcmp.le.f32.partialorder %v3305, 0.7853982
      %vm3307 = vcmp.lt.s32.totalorder %v475, 0
      %v3308 = vand.u32 %v475, 2139095040
      %v3309 = vshrl.u32 %v3308, 23
      %v3310 = vsub.s32 %v3309, 127
      %v3311 = vand.u32 2147483647, %v475
      %v3312 = vand.u32 %v3311, 8388607
      %v3313 = vor.u32 %v3312, 8388608
      %v3314 = vsub.s32 0, %v3313
      %v3315 = vadd.s32 %v3310, 1
      %vm3316 = vcmp.gt.s32.totalorder %v3315, 0
      %v3317 = vsel %vm3316, %v3315, 0
      %v3318 = vshrl.u32 %v3317, 5
      %v3319 = vand.u32 %v3317, 31
      %v3320 = vsub.s32 32, %v3319
      %v3321 = vshrl.u32 683565275, %v3320
      %v3322 = vshll.u32 683565275, %v3319
      %v3323 = vshrl.u32 2475754826, %v3320
      %v3324 = vor.u32 %v3322, %v3323
      %v3325 = vshll.u32 2475754826, %v3319
      %v3326 = vshrl.u32 2131351028, %v3320
      %v3327 = vor.u32 %v3325, %v3326
      %v3328 = vshll.u32 2131351028, %v3319
      %v3329 = vshrl.u32 2102212464, %v3320
      %v3330 = vor.u32 %v3328, %v3329
      %v3331 = vshll.u32 2102212464, %v3319
      %v3332 = vshrl.u32 920167782, %v3320
      %v3333 = vor.u32 %v3331, %v3332
      %v3334 = vshll.u32 920167782, %v3319
      %v3335 = vshrl.u32 1326507024, %v3320
      %v3336 = vor.u32 %v3334, %v3335
      %vm3337 = vcmp.lt.s32.totalorder %v3318, 1
      %vm3338 = vcmp.lt.s32.totalorder %v3318, 2
      %vm3339 = vcmp.lt.s32.totalorder %v3318, 3
      %vm3340 = vcmp.lt.s32.totalorder %v3318, 4
      %v3341 = vsel %vm3337, %v3321, %v3324
      %v3342 = vsel %vm3340, %v3330, 2102212464
      %v3343 = vsel %vm3339, %v3327, %v3342
      %v3344 = vsel %vm3338, %v3341, %v3343
      %v3345 = vsel %vm3337, %v3324, %v3327
      %v3346 = vsel %vm3340, %v3333, 920167782
      %v3347 = vsel %vm3339, %v3330, %v3346
      %v3348 = vsel %vm3338, %v3345, %v3347
      %v3349 = vsel %vm3337, %v3327, %v3330
      %v3350 = vsel %vm3340, %v3336, 1326507024
      %v3351 = vsel %vm3339, %v3333, %v3350
      %v3352 = vsel %vm3338, %v3349, %v3351
      %v3353 = vshll.u32 %v3313, 8
      %v3354 = vmul.u32.u64.compose %v3353, %v3352
      %v3355 = vextract.low.u32 %v3354
      %v3356 = vextract.high.u32 %v3354
      %v3357 = vmul.u32.u64.compose %v3353, %v3348
      %v3358 = vextract.low.u32 %v3357
      %v3359 = vextract.high.u32 %v3357
      %v3360 = vmul.u32 %v3353, %v3344
      %v3361 = vadd.s32 %v3356, %v3358
      %vm3362 = vc.u32 %v3356, %v3358
      %v3363 = vadd.s32 %v3359, 1
      %v3364 = vsel %vm3362, %v3363, %v3359
      %v3365 = vadd.s32 %v3360, %v3364
      %v3366 = vadd.s32 %v3365, 536870912
      %v3367 = vshrl.u32 %v3366, 30
      %v3368 = vshll.u32 %v3367, 30
      %v3369 = vsub.s32 %v3365, %v3368
      %vm3370 = vcmp.lt.s32.totalorder %v3369, 0
      %v3371 = vsub.s32 0, %v3369
      %v3372 = vsel %vm3370, %v3371, %v3369
      %v3373 = vclz %v3372
      %v3374 = vsub.s32 %v3373, 2
      %vm3375 = vcmp.gt.s32.totalorder 0, %v3374
      %v3376 = vsel %vm3375, 0, %v3374
      %v3377 = vsub.s32 32, %v3376
      %v3378 = vshll.u32 %v3369, %v3376
      %v3379 = vshrl.u32 %v3361, %v3377
      %v3380 = vor.u32 %v3378, %v3379
      %v3381 = vsub.s32 4294967266, %v3376
      %v3382 = vadd.s32 %v3381, 127
      %v3383 = vshll.u32 %v3382, 23
      %v3384 = vor.u32 4788187, %v3383
      %v3385 = vand.u32 2147483647, %v3384
      %v3387 = vcvt.s32.f32 %v3380
      %v3388 = vmul.f32 %v3387, %v3385
      %v3389 = vxor.u32 %v3388, 2147483648
      %v3390 = vsel %vm3307, %v3389, %v3388
      %v3391 = vsub.s32 4, %v3367
      %v3392 = vsel %vm3307, %v3391, %v3367
      %v3393 = vsel %vm3306, %v475, %v3390
      %v3394 = vsel %vm3306, 0, %v3392
      %v3395 = vcosq.f32.pop %v3393
      %v3396 = vsinq.f32.pop %v3393
      %vm3397 = vweird.f32 %v475
      %v3398 = vadd.s32 %v3394, 3
      %v3399 = vand.u32 %v3398, 3
      %vm3400 = vcmp.lt.s32.totalorder %v3399, 2
      %vm3401 = vcmp.eq.s32.totalorder %v3399, 0
      %v3402 = vxor.u32 %v3396, 2147483648
      %v3403 = vsel %vm3401, %v3395, %v3402
      %vm3404 = vcmp.eq.s32.totalorder %v3399, 2
      %v3405 = vxor.u32 %v3395, 2147483648
      %v3406 = vsel %vm3404, %v3405, %v3396
      %v3407 = vsel %vm3400, %v3403, %v3406
      %v3408 = vsel %vm3397, nan, %v3407
      %v3409 = vand.u32 2147483647, %v480
      %vm3410 = vcmp.le.f32.partialorder %v3409, 0.7853982
      %vm3411 = vcmp.lt.s32.totalorder %v480, 0
      %v3412 = vand.u32 %v480, 2139095040
      %v3413 = vshrl.u32 %v3412, 23
      %v3414 = vsub.s32 %v3413, 127
      %v3415 = vand.u32 2147483647, %v480
      %v3416 = vand.u32 %v3415, 8388607
      %v3417 = vor.u32 %v3416, 8388608
      %v3418 = vsub.s32 0, %v3417
      %v3419 = vadd.s32 %v3414, 1
      %vm3420 = vcmp.gt.s32.totalorder %v3419, 0
      %v3421 = vsel %vm3420, %v3419, 0
      %v3422 = vshrl.u32 %v3421, 5
      %v3423 = vand.u32 %v3421, 31
      %v3424 = vsub.s32 32, %v3423
      %v3425 = vshrl.u32 683565275, %v3424
      %v3426 = vshll.u32 683565275, %v3423
      %v3427 = vshrl.u32 2475754826, %v3424
      %v3428 = vor.u32 %v3426, %v3427
      %v3429 = vshll.u32 2475754826, %v3423
      %v3430 = vshrl.u32 2131351028, %v3424
      %v3431 = vor.u32 %v3429, %v3430
      %v3432 = vshll.u32 2131351028, %v3423
      %v3433 = vshrl.u32 2102212464, %v3424
      %v3434 = vor.u32 %v3432, %v3433
      %v3435 = vshll.u32 2102212464, %v3423
      %v3436 = vshrl.u32 920167782, %v3424
      %v3437 = vor.u32 %v3435, %v3436
      %v3438 = vshll.u32 920167782, %v3423
      %v3439 = vshrl.u32 1326507024, %v3424
      %v3440 = vor.u32 %v3438, %v3439
      %vm3441 = vcmp.lt.s32.totalorder %v3422, 1
      %vm3442 = vcmp.lt.s32.totalorder %v3422, 2
      %vm3443 = vcmp.lt.s32.totalorder %v3422, 3
      %vm3444 = vcmp.lt.s32.totalorder %v3422, 4
      %v3445 = vsel %vm3441, %v3425, %v3428
      %v3446 = vsel %vm3444, %v3434, 2102212464
      %v3447 = vsel %vm3443, %v3431, %v3446
      %v3448 = vsel %vm3442, %v3445, %v3447
      %v3449 = vsel %vm3441, %v3428, %v3431
      %v3450 = vsel %vm3444, %v3437, 920167782
      %v3451 = vsel %vm3443, %v3434, %v3450
      %v3452 = vsel %vm3442, %v3449, %v3451
      %v3453 = vsel %vm3441, %v3431, %v3434
      %v3454 = vsel %vm3444, %v3440, 1326507024
      %v3455 = vsel %vm3443, %v3437, %v3454
      %v3456 = vsel %vm3442, %v3453, %v3455
      %v3457 = vshll.u32 %v3417, 8
      %v3458 = vmul.u32.u64.compose %v3457, %v3456
      %v3459 = vextract.low.u32 %v3458
      %v3460 = vextract.high.u32 %v3458
      %v3461 = vmul.u32.u64.compose %v3457, %v3452
      %v3462 = vextract.low.u32 %v3461
      %v3463 = vextract.high.u32 %v3461
      %v3464 = vmul.u32 %v3457, %v3448
      %v3465 = vadd.s32 %v3460, %v3462
      %vm3466 = vc.u32 %v3460, %v3462
      %v3467 = vadd.s32 %v3463, 1
      %v3468 = vsel %vm3466, %v3467, %v3463
      %v3469 = vadd.s32 %v3464, %v3468
      %v3470 = vadd.s32 %v3469, 536870912
      %v3471 = vshrl.u32 %v3470, 30
      %v3472 = vshll.u32 %v3471, 30
      %v3473 = vsub.s32 %v3469, %v3472
      %vm3474 = vcmp.lt.s32.totalorder %v3473, 0
      %v3475 = vsub.s32 0, %v3473
      %v3476 = vsel %vm3474, %v3475, %v3473
      %v3477 = vclz %v3476
      %v3478 = vsub.s32 %v3477, 2
      %vm3479 = vcmp.gt.s32.totalorder 0, %v3478
      %v3480 = vsel %vm3479, 0, %v3478
      %v3481 = vsub.s32 32, %v3480
      %v3482 = vshll.u32 %v3473, %v3480
      %v3483 = vshrl.u32 %v3465, %v3481
      %v3484 = vor.u32 %v3482, %v3483
      %v3485 = vsub.s32 4294967266, %v3480
      %v3486 = vadd.s32 %v3485, 127
      %v3487 = vshll.u32 %v3486, 23
      %v3488 = vor.u32 4788187, %v3487
      %v3489 = vand.u32 2147483647, %v3488
      %v3491 = vcvt.s32.f32 %v3484
      %v3492 = vmul.f32 %v3491, %v3489
      %v3493 = vxor.u32 %v3492, 2147483648
      %v3494 = vsel %vm3411, %v3493, %v3492
      %v3495 = vsub.s32 4, %v3471
      %v3496 = vsel %vm3411, %v3495, %v3471
      %v3497 = vsel %vm3410, %v480, %v3494
      %v3498 = vsel %vm3410, 0, %v3496
      %v3499 = vcosq.f32.pop %v3497
      %v3500 = vsinq.f32.pop %v3497
      %vm3501 = vweird.f32 %v480
      %v3502 = vadd.s32 %v3498, 3
      %v3503 = vand.u32 %v3502, 3
      %vm3504 = vcmp.lt.s32.totalorder %v3503, 2
      %vm3505 = vcmp.eq.s32.totalorder %v3503, 0
      %v3506 = vxor.u32 %v3500, 2147483648
      %v3507 = vsel %vm3505, %v3499, %v3506
      %vm3508 = vcmp.eq.s32.totalorder %v3503, 2
      %v3509 = vxor.u32 %v3499, 2147483648
      %v3510 = vsel %vm3508, %v3509, %v3500
      %v3511 = vsel %vm3504, %v3507, %v3510
      %v3512 = vsel %vm3501, nan, %v3511
      %v3513 = vand.u32 2147483647, %v485
      %vm3514 = vcmp.le.f32.partialorder %v3513, 0.7853982
      %vm3515 = vcmp.lt.s32.totalorder %v485, 0
      %v3516 = vand.u32 %v485, 2139095040
      %v3517 = vshrl.u32 %v3516, 23
      %v3518 = vsub.s32 %v3517, 127
      %v3519 = vand.u32 2147483647, %v485
      %v3520 = vand.u32 %v3519, 8388607
      %v3521 = vor.u32 %v3520, 8388608
      %v3522 = vsub.s32 0, %v3521
      %v3523 = vadd.s32 %v3518, 1
      %vm3524 = vcmp.gt.s32.totalorder %v3523, 0
      %v3525 = vsel %vm3524, %v3523, 0
      %v3526 = vshrl.u32 %v3525, 5
      %v3527 = vand.u32 %v3525, 31
      %v3528 = vsub.s32 32, %v3527
      %v3529 = vshrl.u32 683565275, %v3528
      %v3530 = vshll.u32 683565275, %v3527
      %v3531 = vshrl.u32 2475754826, %v3528
      %v3532 = vor.u32 %v3530, %v3531
      %v3533 = vshll.u32 2475754826, %v3527
      %v3534 = vshrl.u32 2131351028, %v3528
      %v3535 = vor.u32 %v3533, %v3534
      %v3536 = vshll.u32 2131351028, %v3527
      %v3537 = vshrl.u32 2102212464, %v3528
      %v3538 = vor.u32 %v3536, %v3537
      %v3539 = vshll.u32 2102212464, %v3527
      %v3540 = vshrl.u32 920167782, %v3528
      %v3541 = vor.u32 %v3539, %v3540
      %v3542 = vshll.u32 920167782, %v3527
      %v3543 = vshrl.u32 1326507024, %v3528
      %v3544 = vor.u32 %v3542, %v3543
      %vm3545 = vcmp.lt.s32.totalorder %v3526, 1
      %vm3546 = vcmp.lt.s32.totalorder %v3526, 2
      %vm3547 = vcmp.lt.s32.totalorder %v3526, 3
      %vm3548 = vcmp.lt.s32.totalorder %v3526, 4
      %v3549 = vsel %vm3545, %v3529, %v3532
      %v3550 = vsel %vm3548, %v3538, 2102212464
      %v3551 = vsel %vm3547, %v3535, %v3550
      %v3552 = vsel %vm3546, %v3549, %v3551
      %v3553 = vsel %vm3545, %v3532, %v3535
      %v3554 = vsel %vm3548, %v3541, 920167782
      %v3555 = vsel %vm3547, %v3538, %v3554
      %v3556 = vsel %vm3546, %v3553, %v3555
      %v3557 = vsel %vm3545, %v3535, %v3538
      %v3558 = vsel %vm3548, %v3544, 1326507024
      %v3559 = vsel %vm3547, %v3541, %v3558
      %v3560 = vsel %vm3546, %v3557, %v3559
      %v3561 = vshll.u32 %v3521, 8
      %v3562 = vmul.u32.u64.compose %v3561, %v3560
      %v3563 = vextract.low.u32 %v3562
      %v3564 = vextract.high.u32 %v3562
      %v3565 = vmul.u32.u64.compose %v3561, %v3556
      %v3566 = vextract.low.u32 %v3565
      %v3567 = vextract.high.u32 %v3565
      %v3568 = vmul.u32 %v3561, %v3552
      %v3569 = vadd.s32 %v3564, %v3566
      %vm3570 = vc.u32 %v3564, %v3566
      %v3571 = vadd.s32 %v3567, 1
      %v3572 = vsel %vm3570, %v3571, %v3567
      %v3573 = vadd.s32 %v3568, %v3572
      %v3574 = vadd.s32 %v3573, 536870912
      %v3575 = vshrl.u32 %v3574, 30
      %v3576 = vshll.u32 %v3575, 30
      %v3577 = vsub.s32 %v3573, %v3576
      %vm3578 = vcmp.lt.s32.totalorder %v3577, 0
      %v3579 = vsub.s32 0, %v3577
      %v3580 = vsel %vm3578, %v3579, %v3577
      %v3581 = vclz %v3580
      %v3582 = vsub.s32 %v3581, 2
      %vm3583 = vcmp.gt.s32.totalorder 0, %v3582
      %v3584 = vsel %vm3583, 0, %v3582
      %v3585 = vsub.s32 32, %v3584
      %v3586 = vshll.u32 %v3577, %v3584
      %v3587 = vshrl.u32 %v3569, %v3585
      %v3588 = vor.u32 %v3586, %v3587
      %v3589 = vsub.s32 4294967266, %v3584
      %v3590 = vadd.s32 %v3589, 127
      %v3591 = vshll.u32 %v3590, 23
      %v3592 = vor.u32 4788187, %v3591
      %v3593 = vand.u32 2147483647, %v3592
      %v3595 = vcvt.s32.f32 %v3588
      %v3596 = vmul.f32 %v3595, %v3593
      %v3597 = vxor.u32 %v3596, 2147483648
      %v3598 = vsel %vm3515, %v3597, %v3596
      %v3599 = vsub.s32 4, %v3575
      %v3600 = vsel %vm3515, %v3599, %v3575
      %v3601 = vsel %vm3514, %v485, %v3598
      %v3602 = vsel %vm3514, 0, %v3600
      %v3603 = vcosq.f32.pop %v3601
      %v3604 = vsinq.f32.pop %v3601
      %vm3605 = vweird.f32 %v485
      %v3606 = vadd.s32 %v3602, 3
      %v3607 = vand.u32 %v3606, 3
      %vm3608 = vcmp.lt.s32.totalorder %v3607, 2
      %vm3609 = vcmp.eq.s32.totalorder %v3607, 0
      %v3610 = vxor.u32 %v3604, 2147483648
      %v3611 = vsel %vm3609, %v3603, %v3610
      %vm3612 = vcmp.eq.s32.totalorder %v3607, 2
      %v3613 = vxor.u32 %v3603, 2147483648
      %v3614 = vsel %vm3612, %v3613, %v3604
      %v3615 = vsel %vm3608, %v3611, %v3614
      %v3616 = vsel %vm3605, nan, %v3615
      %v3617 = vand.u32 2147483647, %v490
      %vm3618 = vcmp.le.f32.partialorder %v3617, 0.7853982
      %vm3619 = vcmp.lt.s32.totalorder %v490, 0
      %v3620 = vand.u32 %v490, 2139095040
      %v3621 = vshrl.u32 %v3620, 23
      %v3622 = vsub.s32 %v3621, 127
      %v3623 = vand.u32 2147483647, %v490
      %v3624 = vand.u32 %v3623, 8388607
      %v3625 = vor.u32 %v3624, 8388608
      %v3626 = vsub.s32 0, %v3625
      %v3627 = vadd.s32 %v3622, 1
      %vm3628 = vcmp.gt.s32.totalorder %v3627, 0
      %v3629 = vsel %vm3628, %v3627, 0
      %v3630 = vshrl.u32 %v3629, 5
      %v3631 = vand.u32 %v3629, 31
      %v3632 = vsub.s32 32, %v3631
      %v3633 = vshrl.u32 683565275, %v3632
      %v3634 = vshll.u32 683565275, %v3631
      %v3635 = vshrl.u32 2475754826, %v3632
      %v3636 = vor.u32 %v3634, %v3635
      %v3637 = vshll.u32 2475754826, %v3631
      %v3638 = vshrl.u32 2131351028, %v3632
      %v3639 = vor.u32 %v3637, %v3638
      %v3640 = vshll.u32 2131351028, %v3631
      %v3641 = vshrl.u32 2102212464, %v3632
      %v3642 = vor.u32 %v3640, %v3641
      %v3643 = vshll.u32 2102212464, %v3631
      %v3644 = vshrl.u32 920167782, %v3632
      %v3645 = vor.u32 %v3643, %v3644
      %v3646 = vshll.u32 920167782, %v3631
      %v3647 = vshrl.u32 1326507024, %v3632
      %v3648 = vor.u32 %v3646, %v3647
      %vm3649 = vcmp.lt.s32.totalorder %v3630, 1
      %vm3650 = vcmp.lt.s32.totalorder %v3630, 2
      %vm3651 = vcmp.lt.s32.totalorder %v3630, 3
      %vm3652 = vcmp.lt.s32.totalorder %v3630, 4
      %v3653 = vsel %vm3649, %v3633, %v3636
      %v3654 = vsel %vm3652, %v3642, 2102212464
      %v3655 = vsel %vm3651, %v3639, %v3654
      %v3656 = vsel %vm3650, %v3653, %v3655
      %v3657 = vsel %vm3649, %v3636, %v3639
      %v3658 = vsel %vm3652, %v3645, 920167782
      %v3659 = vsel %vm3651, %v3642, %v3658
      %v3660 = vsel %vm3650, %v3657, %v3659
      %v3661 = vsel %vm3649, %v3639, %v3642
      %v3662 = vsel %vm3652, %v3648, 1326507024
      %v3663 = vsel %vm3651, %v3645, %v3662
      %v3664 = vsel %vm3650, %v3661, %v3663
      %v3665 = vshll.u32 %v3625, 8
      %v3666 = vmul.u32.u64.compose %v3665, %v3664
      %v3667 = vextract.low.u32 %v3666
      %v3668 = vextract.high.u32 %v3666
      %v3669 = vmul.u32.u64.compose %v3665, %v3660
      %v3670 = vextract.low.u32 %v3669
      %v3671 = vextract.high.u32 %v3669
      %v3672 = vmul.u32 %v3665, %v3656
      %v3673 = vadd.s32 %v3668, %v3670
      %vm3674 = vc.u32 %v3668, %v3670
      %v3675 = vadd.s32 %v3671, 1
      %v3676 = vsel %vm3674, %v3675, %v3671
      %v3677 = vadd.s32 %v3672, %v3676
      %v3678 = vadd.s32 %v3677, 536870912
      %v3679 = vshrl.u32 %v3678, 30
      %v3680 = vshll.u32 %v3679, 30
      %v3681 = vsub.s32 %v3677, %v3680
      %vm3682 = vcmp.lt.s32.totalorder %v3681, 0
      %v3683 = vsub.s32 0, %v3681
      %v3684 = vsel %vm3682, %v3683, %v3681
      %v3685 = vclz %v3684
      %v3686 = vsub.s32 %v3685, 2
      %vm3687 = vcmp.gt.s32.totalorder 0, %v3686
      %v3688 = vsel %vm3687, 0, %v3686
      %v3689 = vsub.s32 32, %v3688
      %v3690 = vshll.u32 %v3681, %v3688
      %v3691 = vshrl.u32 %v3673, %v3689
      %v3692 = vor.u32 %v3690, %v3691
      %v3693 = vsub.s32 4294967266, %v3688
      %v3694 = vadd.s32 %v3693, 127
      %v3695 = vshll.u32 %v3694, 23
      %v3696 = vor.u32 4788187, %v3695
      %v3697 = vand.u32 2147483647, %v3696
      %v3699 = vcvt.s32.f32 %v3692
      %v3700 = vmul.f32 %v3699, %v3697
      %v3701 = vxor.u32 %v3700, 2147483648
      %v3702 = vsel %vm3619, %v3701, %v3700
      %v3703 = vsub.s32 4, %v3679
      %v3704 = vsel %vm3619, %v3703, %v3679
      %v3705 = vsel %vm3618, %v490, %v3702
      %v3706 = vsel %vm3618, 0, %v3704
      %v3707 = vcosq.f32.pop %v3705
      %v3708 = vsinq.f32.pop %v3705
      %vm3709 = vweird.f32 %v490
      %v3710 = vadd.s32 %v3706, 3
      %v3711 = vand.u32 %v3710, 3
      %vm3712 = vcmp.lt.s32.totalorder %v3711, 2
      %vm3713 = vcmp.eq.s32.totalorder %v3711, 0
      %v3714 = vxor.u32 %v3708, 2147483648
      %v3715 = vsel %vm3713, %v3707, %v3714
      %vm3716 = vcmp.eq.s32.totalorder %v3711, 2
      %v3717 = vxor.u32 %v3707, 2147483648
      %v3718 = vsel %vm3716, %v3717, %v3708
      %v3719 = vsel %vm3712, %v3715, %v3718
      %v3720 = vsel %vm3709, nan, %v3719
      %v3721 = vand.u32 2147483647, %v495
      %vm3722 = vcmp.le.f32.partialorder %v3721, 0.7853982
      %vm3723 = vcmp.lt.s32.totalorder %v495, 0
      %v3724 = vand.u32 %v495, 2139095040
      %v3725 = vshrl.u32 %v3724, 23
      %v3726 = vsub.s32 %v3725, 127
      %v3727 = vand.u32 2147483647, %v495
      %v3728 = vand.u32 %v3727, 8388607
      %v3729 = vor.u32 %v3728, 8388608
      %v3730 = vsub.s32 0, %v3729
      %v3731 = vadd.s32 %v3726, 1
      %vm3732 = vcmp.gt.s32.totalorder %v3731, 0
      %v3733 = vsel %vm3732, %v3731, 0
      %v3734 = vshrl.u32 %v3733, 5
      %v3735 = vand.u32 %v3733, 31
      %v3736 = vsub.s32 32, %v3735
      %v3737 = vshrl.u32 683565275, %v3736
      %v3738 = vshll.u32 683565275, %v3735
      %v3739 = vshrl.u32 2475754826, %v3736
      %v3740 = vor.u32 %v3738, %v3739
      %v3741 = vshll.u32 2475754826, %v3735
      %v3742 = vshrl.u32 2131351028, %v3736
      %v3743 = vor.u32 %v3741, %v3742
      %v3744 = vshll.u32 2131351028, %v3735
      %v3745 = vshrl.u32 2102212464, %v3736
      %v3746 = vor.u32 %v3744, %v3745
      %v3747 = vshll.u32 2102212464, %v3735
      %v3748 = vshrl.u32 920167782, %v3736
      %v3749 = vor.u32 %v3747, %v3748
      %v3750 = vshll.u32 920167782, %v3735
      %v3751 = vshrl.u32 1326507024, %v3736
      %v3752 = vor.u32 %v3750, %v3751
      %vm3753 = vcmp.lt.s32.totalorder %v3734, 1
      %vm3754 = vcmp.lt.s32.totalorder %v3734, 2
      %vm3755 = vcmp.lt.s32.totalorder %v3734, 3
      %vm3756 = vcmp.lt.s32.totalorder %v3734, 4
      %v3757 = vsel %vm3753, %v3737, %v3740
      %v3758 = vsel %vm3756, %v3746, 2102212464
      %v3759 = vsel %vm3755, %v3743, %v3758
      %v3760 = vsel %vm3754, %v3757, %v3759
      %v3761 = vsel %vm3753, %v3740, %v3743
      %v3762 = vsel %vm3756, %v3749, 920167782
      %v3763 = vsel %vm3755, %v3746, %v3762
      %v3764 = vsel %vm3754, %v3761, %v3763
      %v3765 = vsel %vm3753, %v3743, %v3746
      %v3766 = vsel %vm3756, %v3752, 1326507024
      %v3767 = vsel %vm3755, %v3749, %v3766
      %v3768 = vsel %vm3754, %v3765, %v3767
      %v3769 = vshll.u32 %v3729, 8
      %v3770 = vmul.u32.u64.compose %v3769, %v3768
      %v3771 = vextract.low.u32 %v3770
      %v3772 = vextract.high.u32 %v3770
      %v3773 = vmul.u32.u64.compose %v3769, %v3764
      %v3774 = vextract.low.u32 %v3773
      %v3775 = vextract.high.u32 %v3773
      %v3776 = vmul.u32 %v3769, %v3760
      %v3777 = vadd.s32 %v3772, %v3774
      %vm3778 = vc.u32 %v3772, %v3774
      %v3779 = vadd.s32 %v3775, 1
      %v3780 = vsel %vm3778, %v3779, %v3775
      %v3781 = vadd.s32 %v3776, %v3780
      %v3782 = vadd.s32 %v3781, 536870912
      %v3783 = vshrl.u32 %v3782, 30
      %v3784 = vshll.u32 %v3783, 30
      %v3785 = vsub.s32 %v3781, %v3784
      %vm3786 = vcmp.lt.s32.totalorder %v3785, 0
      %v3787 = vsub.s32 0, %v3785
      %v3788 = vsel %vm3786, %v3787, %v3785
      %v3789 = vclz %v3788
      %v3790 = vsub.s32 %v3789, 2
      %vm3791 = vcmp.gt.s32.totalorder 0, %v3790
      %v3792 = vsel %vm3791, 0, %v3790
      %v3793 = vsub.s32 32, %v3792
      %v3794 = vshll.u32 %v3785, %v3792
      %v3795 = vshrl.u32 %v3777, %v3793
      %v3796 = vor.u32 %v3794, %v3795
      %v3797 = vsub.s32 4294967266, %v3792
      %v3798 = vadd.s32 %v3797, 127
      %v3799 = vshll.u32 %v3798, 23
      %v3800 = vor.u32 4788187, %v3799
      %v3801 = vand.u32 2147483647, %v3800
      %v3803 = vcvt.s32.f32 %v3796
      %v3804 = vmul.f32 %v3803, %v3801
      %v3805 = vxor.u32 %v3804, 2147483648
      %v3806 = vsel %vm3723, %v3805, %v3804
      %v3807 = vsub.s32 4, %v3783
      %v3808 = vsel %vm3723, %v3807, %v3783
      %v3809 = vsel %vm3722, %v495, %v3806
      %v3810 = vsel %vm3722, 0, %v3808
      %v3811 = vcosq.f32.pop %v3809
      %v3812 = vsinq.f32.pop %v3809
      %vm3813 = vweird.f32 %v495
      %v3814 = vadd.s32 %v3810, 3
      %v3815 = vand.u32 %v3814, 3
      %vm3816 = vcmp.lt.s32.totalorder %v3815, 2
      %vm3817 = vcmp.eq.s32.totalorder %v3815, 0
      %v3818 = vxor.u32 %v3812, 2147483648
      %v3819 = vsel %vm3817, %v3811, %v3818
      %vm3820 = vcmp.eq.s32.totalorder %v3815, 2
      %v3821 = vxor.u32 %v3811, 2147483648
      %v3822 = vsel %vm3820, %v3821, %v3812
      %v3823 = vsel %vm3816, %v3819, %v3822
      %v3824 = vsel %vm3813, nan, %v3823
      %v3825 = vand.u32 2147483647, %v500
      %vm3826 = vcmp.le.f32.partialorder %v3825, 0.7853982
      %vm3827 = vcmp.lt.s32.totalorder %v500, 0
      %v3828 = vand.u32 %v500, 2139095040
      %v3829 = vshrl.u32 %v3828, 23
      %v3830 = vsub.s32 %v3829, 127
      %v3831 = vand.u32 2147483647, %v500
      %v3832 = vand.u32 %v3831, 8388607
      %v3833 = vor.u32 %v3832, 8388608
      %v3834 = vsub.s32 0, %v3833
      %v3835 = vadd.s32 %v3830, 1
      %vm3836 = vcmp.gt.s32.totalorder %v3835, 0
      %v3837 = vsel %vm3836, %v3835, 0
      %v3838 = vshrl.u32 %v3837, 5
      %v3839 = vand.u32 %v3837, 31
      %v3840 = vsub.s32 32, %v3839
      %v3841 = vshrl.u32 683565275, %v3840
      %v3842 = vshll.u32 683565275, %v3839
      %v3843 = vshrl.u32 2475754826, %v3840
      %v3844 = vor.u32 %v3842, %v3843
      %v3845 = vshll.u32 2475754826, %v3839
      %v3846 = vshrl.u32 2131351028, %v3840
      %v3847 = vor.u32 %v3845, %v3846
      %v3848 = vshll.u32 2131351028, %v3839
      %v3849 = vshrl.u32 2102212464, %v3840
      %v3850 = vor.u32 %v3848, %v3849
      %v3851 = vshll.u32 2102212464, %v3839
      %v3852 = vshrl.u32 920167782, %v3840
      %v3853 = vor.u32 %v3851, %v3852
      %v3854 = vshll.u32 920167782, %v3839
      %v3855 = vshrl.u32 1326507024, %v3840
      %v3856 = vor.u32 %v3854, %v3855
      %vm3857 = vcmp.lt.s32.totalorder %v3838, 1
      %vm3858 = vcmp.lt.s32.totalorder %v3838, 2
      %vm3859 = vcmp.lt.s32.totalorder %v3838, 3
      %vm3860 = vcmp.lt.s32.totalorder %v3838, 4
      %v3861 = vsel %vm3857, %v3841, %v3844
      %v3862 = vsel %vm3860, %v3850, 2102212464
      %v3863 = vsel %vm3859, %v3847, %v3862
      %v3864 = vsel %vm3858, %v3861, %v3863
      %v3865 = vsel %vm3857, %v3844, %v3847
      %v3866 = vsel %vm3860, %v3853, 920167782
      %v3867 = vsel %vm3859, %v3850, %v3866
      %v3868 = vsel %vm3858, %v3865, %v3867
      %v3869 = vsel %vm3857, %v3847, %v3850
      %v3870 = vsel %vm3860, %v3856, 1326507024
      %v3871 = vsel %vm3859, %v3853, %v3870
      %v3872 = vsel %vm3858, %v3869, %v3871
      %v3873 = vshll.u32 %v3833, 8
      %v3874 = vmul.u32.u64.compose %v3873, %v3872
      %v3875 = vextract.low.u32 %v3874
      %v3876 = vextract.high.u32 %v3874
      %v3877 = vmul.u32.u64.compose %v3873, %v3868
      %v3878 = vextract.low.u32 %v3877
      %v3879 = vextract.high.u32 %v3877
      %v3880 = vmul.u32 %v3873, %v3864
      %v3881 = vadd.s32 %v3876, %v3878
      %vm3882 = vc.u32 %v3876, %v3878
      %v3883 = vadd.s32 %v3879, 1
      %v3884 = vsel %vm3882, %v3883, %v3879
      %v3885 = vadd.s32 %v3880, %v3884
      %v3886 = vadd.s32 %v3885, 536870912
      %v3887 = vshrl.u32 %v3886, 30
      %v3888 = vshll.u32 %v3887, 30
      %v3889 = vsub.s32 %v3885, %v3888
      %vm3890 = vcmp.lt.s32.totalorder %v3889, 0
      %v3891 = vsub.s32 0, %v3889
      %v3892 = vsel %vm3890, %v3891, %v3889
      %v3893 = vclz %v3892
      %v3894 = vsub.s32 %v3893, 2
      %vm3895 = vcmp.gt.s32.totalorder 0, %v3894
      %v3896 = vsel %vm3895, 0, %v3894
      %v3897 = vsub.s32 32, %v3896
      %v3898 = vshll.u32 %v3889, %v3896
      %v3899 = vshrl.u32 %v3881, %v3897
      %v3900 = vor.u32 %v3898, %v3899
      %v3901 = vsub.s32 4294967266, %v3896
      %v3902 = vadd.s32 %v3901, 127
      %v3903 = vshll.u32 %v3902, 23
      %v3904 = vor.u32 4788187, %v3903
      %v3905 = vand.u32 2147483647, %v3904
      %v3907 = vcvt.s32.f32 %v3900
      %v3908 = vmul.f32 %v3907, %v3905
      %v3909 = vxor.u32 %v3908, 2147483648
      %v3910 = vsel %vm3827, %v3909, %v3908
      %v3911 = vsub.s32 4, %v3887
      %v3912 = vsel %vm3827, %v3911, %v3887
      %v3913 = vsel %vm3826, %v500, %v3910
      %v3914 = vsel %vm3826, 0, %v3912
      %v3915 = vcosq.f32.pop %v3913
      %v3916 = vsinq.f32.pop %v3913
      %vm3917 = vweird.f32 %v500
      %v3918 = vadd.s32 %v3914, 3
      %v3919 = vand.u32 %v3918, 3
      %vm3920 = vcmp.lt.s32.totalorder %v3919, 2
      %vm3921 = vcmp.eq.s32.totalorder %v3919, 0
      %v3922 = vxor.u32 %v3916, 2147483648
      %v3923 = vsel %vm3921, %v3915, %v3922
      %vm3924 = vcmp.eq.s32.totalorder %v3919, 2
      %v3925 = vxor.u32 %v3915, 2147483648
      %v3926 = vsel %vm3924, %v3925, %v3916
      %v3927 = vsel %vm3920, %v3923, %v3926
      %v3928 = vsel %vm3917, nan, %v3927
      %vm3929 = vcmask 23568
      %3930 = vst.msk [vmem:[%s145] sm:$0xff] %vm3929, %v704
      %3931 = vst.msk [vmem:[%s145 + $0x8] sm:$0xff] %vm3929, %v808
      %3932 = vst.msk [vmem:[%s145 + $0x10] sm:$0xff] %vm3929, %v912
      %3933 = vst.msk [vmem:[%s145 + $0x18] sm:$0xff] %vm3929, %v1016
      %3934 = vst.msk [vmem:[%s145 + $0x20] sm:$0xff] %vm3929, %v1120
      %3935 = vst.msk [vmem:[%s145 + $0x28] sm:$0xff] %vm3929, %v1224
      %3936 = vst.msk [vmem:[%s145 + $0x30] sm:$0xff] %vm3929, %v1328
      %3937 = vst.msk [vmem:[%s145 + $0x38] sm:$0xff] %vm3929, %v1432
      %3938 = vst.msk [vmem:[%s145 + $0x40] sm:$0xff] %vm3929, %v1536
      %3939 = vst.msk [vmem:[%s145 + $0x48] sm:$0xff] %vm3929, %v1640
      %3940 = vst.msk [vmem:[%s145 + $0x50] sm:$0xff] %vm3929, %v1744
      %3941 = vst.msk [vmem:[%s145 + $0x58] sm:$0xff] %vm3929, %v1848
      %3942 = vst.msk [vmem:[%s145 + $0x60] sm:$0xff] %vm3929, %v1952
      %3943 = vst.msk [vmem:[%s145 + $0x68] sm:$0xff] %vm3929, %v2056
      %3944 = vst.msk [vmem:[%s145 + $0x70] sm:$0xff] %vm3929, %v2160
      %3945 = vst.msk [vmem:[%s145 + $0x78] sm:$0xff] %vm3929, %v2264
      %3946 = vst.msk [vmem:[%s145 + $0x80] sm:$0xff] %vm3929, %v2368
      %3947 = vst.msk [vmem:[%s145 + $0x88] sm:$0xff] %vm3929, %v2472
      %3948 = vst.msk [vmem:[%s145 + $0x90] sm:$0xff] %vm3929, %v2576
      %3949 = vst.msk [vmem:[%s145 + $0x98] sm:$0xff] %vm3929, %v2680
      %3950 = vst.msk [vmem:[%s145 + $0xa0] sm:$0xff] %vm3929, %v2784
      %3951 = vst.msk [vmem:[%s145 + $0xa8] sm:$0xff] %vm3929, %v2888
      %3952 = vst.msk [vmem:[%s145 + $0xb0] sm:$0xff] %vm3929, %v2992
      %3953 = vst.msk [vmem:[%s145 + $0xb8] sm:$0xff] %vm3929, %v3096
      %3954 = vst.msk [vmem:[%s145 + $0xc0] sm:$0xff] %vm3929, %v3200
      %3955 = vst.msk [vmem:[%s145 + $0xc8] sm:$0xff] %vm3929, %v3304
      %3956 = vst.msk [vmem:[%s145 + $0xd0] sm:$0xff] %vm3929, %v3408
      %3957 = vst.msk [vmem:[%s145 + $0xd8] sm:$0xff] %vm3929, %v3512
      %3958 = vst.msk [vmem:[%s145 + $0xe0] sm:$0xff] %vm3929, %v3616
      %3959 = vst.msk [vmem:[%s145 + $0xe8] sm:$0xff] %vm3929, %v3720
      %3960 = vst.msk [vmem:[%s145 + $0xf0] sm:$0xff] %vm3929, %v3824
      %3961 = vst.msk [vmem:[%s145 + $0xf8] sm:$0xff] %vm3929, %v3928
      %v3962 = vxor.u32 %v345, 2147483648
      %v3963 = vxor.u32 %v350, 2147483648
      %v3964 = vxor.u32 %v355, 2147483648
      %v3965 = vxor.u32 %v360, 2147483648
      %v3966 = vxor.u32 %v365, 2147483648
      %v3967 = vxor.u32 %v370, 2147483648
      %v3968 = vxor.u32 %v375, 2147483648
      %v3969 = vxor.u32 %v380, 2147483648
      %v3970 = vxor.u32 %v385, 2147483648
      %v3971 = vxor.u32 %v390, 2147483648
      %v3972 = vxor.u32 %v395, 2147483648
      %v3973 = vxor.u32 %v400, 2147483648
      %v3974 = vxor.u32 %v405, 2147483648
      %v3975 = vxor.u32 %v410, 2147483648
      %v3976 = vxor.u32 %v415, 2147483648
      %v3977 = vxor.u32 %v420, 2147483648
      %v3978 = vxor.u32 %v425, 2147483648
      %v3979 = vxor.u32 %v430, 2147483648
      %v3980 = vxor.u32 %v435, 2147483648
      %v3981 = vxor.u32 %v440, 2147483648
      %v3982 = vxor.u32 %v445, 2147483648
      %v3983 = vxor.u32 %v450, 2147483648
      %v3984 = vxor.u32 %v455, 2147483648
      %v3985 = vxor.u32 %v460, 2147483648
      %v3986 = vxor.u32 %v465, 2147483648
      %v3987 = vxor.u32 %v470, 2147483648
      %v3988 = vxor.u32 %v475, 2147483648
      %v3989 = vxor.u32 %v480, 2147483648
      %v3990 = vxor.u32 %v485, 2147483648
      %v3991 = vxor.u32 %v490, 2147483648
      %v3992 = vxor.u32 %v495, 2147483648
      %v3993 = vxor.u32 %v500, 2147483648
      %v3994 = vmul.f32 %v3962, 1.442695
      %v3995 = vpow.pop %v3994
      %v3996 = vmul.f32 %v3963, 1.442695
      %v3997 = vpow.pop %v3996
      %v3998 = vmul.f32 %v3964, 1.442695
      %v3999 = vpow.pop %v3998
      %v4000 = vmul.f32 %v3965, 1.442695
      %v4001 = vpow.pop %v4000
      %v4002 = vmul.f32 %v3966, 1.442695
      %v4003 = vpow.pop %v4002
      %v4004 = vmul.f32 %v3967, 1.442695
      %v4005 = vpow.pop %v4004
      %v4006 = vmul.f32 %v3968, 1.442695
      %v4007 = vpow.pop %v4006
      %v4008 = vmul.f32 %v3969, 1.442695
      %v4009 = vpow.pop %v4008
      %v4010 = vmul.f32 %v3970, 1.442695
      %v4011 = vpow.pop %v4010
      %v4012 = vmul.f32 %v3971, 1.442695
      %v4013 = vpow.pop %v4012
      %v4014 = vmul.f32 %v3972, 1.442695
      %v4015 = vpow.pop %v4014
      %v4016 = vmul.f32 %v3973, 1.442695
      %v4017 = vpow.pop %v4016
      %v4018 = vmul.f32 %v3974, 1.442695
      %v4019 = vpow.pop %v4018
      %v4020 = vmul.f32 %v3975, 1.442695
      %v4021 = vpow.pop %v4020
      %v4022 = vmul.f32 %v3976, 1.442695
      %v4023 = vpow.pop %v4022
      %v4024 = vmul.f32 %v3977, 1.442695
      %v4025 = vpow.pop %v4024
      %v4026 = vmul.f32 %v3978, 1.442695
      %v4027 = vpow.pop %v4026
      %v4028 = vmul.f32 %v3979, 1.442695
      %v4029 = vpow.pop %v4028
      %v4030 = vmul.f32 %v3980, 1.442695
      %v4031 = vpow.pop %v4030
      %v4032 = vmul.f32 %v3981, 1.442695
      %v4033 = vpow.pop %v4032
      %v4034 = vmul.f32 %v3982, 1.442695
      %v4035 = vpow.pop %v4034
      %v4036 = vmul.f32 %v3983, 1.442695
      %v4037 = vpow.pop %v4036
      %v4038 = vmul.f32 %v3984, 1.442695
      %v4039 = vpow.pop %v4038
      %v4040 = vmul.f32 %v3985, 1.442695
      %v4041 = vpow.pop %v4040
      %v4042 = vmul.f32 %v3986, 1.442695
      %v4043 = vpow.pop %v4042
      %v4044 = vmul.f32 %v3987, 1.442695
      %v4045 = vpow.pop %v4044
      %v4046 = vmul.f32 %v3988, 1.442695
      %v4047 = vpow.pop %v4046
      %v4048 = vmul.f32 %v3989, 1.442695
      %v4049 = vpow.pop %v4048
      %v4050 = vmul.f32 %v3990, 1.442695
      %v4051 = vpow.pop %v4050
      %v4052 = vmul.f32 %v3991, 1.442695
      %v4053 = vpow.pop %v4052
      %v4054 = vmul.f32 %v3992, 1.442695
      %v4055 = vpow.pop %v4054
      %v4056 = vmul.f32 %v3993, 1.442695
      %v4057 = vpow.pop %v4056
      %v4058 = vadd.f32 %v3995, 1.0
      %v4059 = vadd.f32 %v3997, 1.0
      %v4060 = vadd.f32 %v3999, 1.0
      %v4061 = vadd.f32 %v4001, 1.0
      %v4062 = vadd.f32 %v4003, 1.0
      %v4063 = vadd.f32 %v4005, 1.0
      %v4064 = vadd.f32 %v4007, 1.0
      %v4065 = vadd.f32 %v4009, 1.0
      %v4066 = vadd.f32 %v4011, 1.0
      %v4067 = vadd.f32 %v4013, 1.0
      %v4068 = vadd.f32 %v4015, 1.0
      %v4069 = vadd.f32 %v4017, 1.0
      %v4070 = vadd.f32 %v4019, 1.0
      %v4071 = vadd.f32 %v4021, 1.0
      %v4072 = vadd.f32 %v4023, 1.0
      %v4073 = vadd.f32 %v4025, 1.0
      %v4074 = vadd.f32 %v4027, 1.0
      %v4075 = vadd.f32 %v4029, 1.0
      %v4076 = vadd.f32 %v4031, 1.0
      %v4077 = vadd.f32 %v4033, 1.0
      %v4078 = vadd.f32 %v4035, 1.0
      %v4079 = vadd.f32 %v4037, 1.0
      %v4080 = vadd.f32 %v4039, 1.0
      %v4081 = vadd.f32 %v4041, 1.0
      %v4082 = vadd.f32 %v4043, 1.0
      %v4083 = vadd.f32 %v4045, 1.0
      %v4084 = vadd.f32 %v4047, 1.0
      %v4085 = vadd.f32 %v4049, 1.0
      %v4086 = vadd.f32 %v4051, 1.0
      %v4087 = vadd.f32 %v4053, 1.0
      %v4088 = vadd.f32 %v4055, 1.0
      %v4089 = vadd.f32 %v4057, 1.0
      %v4090 = vrcp.pop %v4058
      %v4091 = vmul.f32 1.0, %v4090
      %v4092 = vrcp.pop %v4059
      %v4093 = vmul.f32 1.0, %v4092
      %v4094 = vrcp.pop %v4060
      %v4095 = vmul.f32 1.0, %v4094
      %v4096 = vrcp.pop %v4061
      %v4097 = vmul.f32 1.0, %v4096
      %v4098 = vrcp.pop %v4062
      %v4099 = vmul.f32 1.0, %v4098
      %v4100 = vrcp.pop %v4063
      %v4101 = vmul.f32 1.0, %v4100
      %v4102 = vrcp.pop %v4064
      %v4103 = vmul.f32 1.0, %v4102
      %v4104 = vrcp.pop %v4065
      %v4105 = vmul.f32 1.0, %v4104
      %v4106 = vrcp.pop %v4066
      %v4107 = vmul.f32 1.0, %v4106
      %v4108 = vrcp.pop %v4067
      %v4109 = vmul.f32 1.0, %v4108
      %v4110 = vrcp.pop %v4068
      %v4111 = vmul.f32 1.0, %v4110
      %v4112 = vrcp.pop %v4069
      %v4113 = vmul.f32 1.0, %v4112
      %v4114 = vrcp.pop %v4070
      %v4115 = vmul.f32 1.0, %v4114
      %v4116 = vrcp.pop %v4071
      %v4117 = vmul.f32 1.0, %v4116
      %v4118 = vrcp.pop %v4072
      %v4119 = vmul.f32 1.0, %v4118
      %v4120 = vrcp.pop %v4073
      %v4121 = vmul.f32 1.0, %v4120
      %v4122 = vrcp.pop %v4074
      %v4123 = vmul.f32 1.0, %v4122
      %v4124 = vrcp.pop %v4075
      %v4125 = vmul.f32 1.0, %v4124
      %v4126 = vrcp.pop %v4076
      %v4127 = vmul.f32 1.0, %v4126
      %v4128 = vrcp.pop %v4077
      %v4129 = vmul.f32 1.0, %v4128
      %v4130 = vrcp.pop %v4078
      %v4131 = vmul.f32 1.0, %v4130
      %v4132 = vrcp.pop %v4079
      %v4133 = vmul.f32 1.0, %v4132
      %v4134 = vrcp.pop %v4080
      %v4135 = vmul.f32 1.0, %v4134
      %v4136 = vrcp.pop %v4081
      %v4137 = vmul.f32 1.0, %v4136
      %v4138 = vrcp.pop %v4082
      %v4139 = vmul.f32 1.0, %v4138
      %v4140 = vrcp.pop %v4083
      %v4141 = vmul.f32 1.0, %v4140
      %v4142 = vrcp.pop %v4084
      %v4143 = vmul.f32 1.0, %v4142
      %v4144 = vrcp.pop %v4085
      %v4145 = vmul.f32 1.0, %v4144
      %v4146 = vrcp.pop %v4086
      %v4147 = vmul.f32 1.0, %v4146
      %v4148 = vrcp.pop %v4087
      %v4149 = vmul.f32 1.0, %v4148
      %v4150 = vrcp.pop %v4088
      %v4151 = vmul.f32 1.0, %v4150
      %v4152 = vrcp.pop %v4089
      %v4153 = vmul.f32 1.0, %v4152
      %vm4154 = vcmask 31768
      %4155 = vst.msk [vmem:[%s145] sm:$0xff] %vm4154, %v4091
      %4156 = vst.msk [vmem:[%s145 + $0x8] sm:$0xff] %vm4154, %v4093
      %4157 = vst.msk [vmem:[%s145 + $0x10] sm:$0xff] %vm4154, %v4095
      %4158 = vst.msk [vmem:[%s145 + $0x18] sm:$0xff] %vm4154, %v4097
      %4159 = vst.msk [vmem:[%s145 + $0x20] sm:$0xff] %vm4154, %v4099
      %4160 = vst.msk [vmem:[%s145 + $0x28] sm:$0xff] %vm4154, %v4101
      %4161 = vst.msk [vmem:[%s145 + $0x30] sm:$0xff] %vm4154, %v4103
      %4162 = vst.msk [vmem:[%s145 + $0x38] sm:$0xff] %vm4154, %v4105
      %4163 = vst.msk [vmem:[%s145 + $0x40] sm:$0xff] %vm4154, %v4107
      %4164 = vst.msk [vmem:[%s145 + $0x48] sm:$0xff] %vm4154, %v4109
      %4165 = vst.msk [vmem:[%s145 + $0x50] sm:$0xff] %vm4154, %v4111
      %4166 = vst.msk [vmem:[%s145 + $0x58] sm:$0xff] %vm4154, %v4113
      %4167 = vst.msk [vmem:[%s145 + $0x60] sm:$0xff] %vm4154, %v4115
      %4168 = vst.msk [vmem:[%s145 + $0x68] sm:$0xff] %vm4154, %v4117
      %4169 = vst.msk [vmem:[%s145 + $0x70] sm:$0xff] %vm4154, %v4119
      %4170 = vst.msk [vmem:[%s145 + $0x78] sm:$0xff] %vm4154, %v4121
      %4171 = vst.msk [vmem:[%s145 + $0x80] sm:$0xff] %vm4154, %v4123
      %4172 = vst.msk [vmem:[%s145 + $0x88] sm:$0xff] %vm4154, %v4125
      %4173 = vst.msk [vmem:[%s145 + $0x90] sm:$0xff] %vm4154, %v4127
      %4174 = vst.msk [vmem:[%s145 + $0x98] sm:$0xff] %vm4154, %v4129
      %4175 = vst.msk [vmem:[%s145 + $0xa0] sm:$0xff] %vm4154, %v4131
      %4176 = vst.msk [vmem:[%s145 + $0xa8] sm:$0xff] %vm4154, %v4133
      %4177 = vst.msk [vmem:[%s145 + $0xb0] sm:$0xff] %vm4154, %v4135
      %4178 = vst.msk [vmem:[%s145 + $0xb8] sm:$0xff] %vm4154, %v4137
      %4179 = vst.msk [vmem:[%s145 + $0xc0] sm:$0xff] %vm4154, %v4139
      %4180 = vst.msk [vmem:[%s145 + $0xc8] sm:$0xff] %vm4154, %v4141
      %4181 = vst.msk [vmem:[%s145 + $0xd0] sm:$0xff] %vm4154, %v4143
      %4182 = vst.msk [vmem:[%s145 + $0xd8] sm:$0xff] %vm4154, %v4145
      %4183 = vst.msk [vmem:[%s145 + $0xe0] sm:$0xff] %vm4154, %v4147
      %4184 = vst.msk [vmem:[%s145 + $0xe8] sm:$0xff] %vm4154, %v4149
      %4185 = vst.msk [vmem:[%s145 + $0xf0] sm:$0xff] %vm4154, %v4151
      %4186 = vst.msk [vmem:[%s145 + $0xf8] sm:$0xff] %vm4154, %v4153
      %4219 = vrot.lane.b32.xlu0 %v345, 127
      %v4220 = vpop.permute.xlu0 %4219
      %4221 = vrot.lane.b32.xlu0 %v350, 127
      %v4222 = vpop.permute.xlu0 %4221
      %4223 = vrot.lane.b32.xlu0 %v355, 127
      %v4224 = vpop.permute.xlu0 %4223
      %4225 = vrot.lane.b32.xlu0 %v360, 127
      %v4226 = vpop.permute.xlu0 %4225
      %4227 = vrot.lane.b32.xlu0 %v365, 127
      %v4228 = vpop.permute.xlu0 %4227
      %4229 = vrot.lane.b32.xlu0 %v370, 127
      %v4230 = vpop.permute.xlu0 %4229
      %4231 = vrot.lane.b32.xlu0 %v375, 127
      %v4232 = vpop.permute.xlu0 %4231
      %4233 = vrot.lane.b32.xlu0 %v380, 127
      %v4234 = vpop.permute.xlu0 %4233
      %4235 = vrot.lane.b32.xlu0 %v385, 127
      %v4236 = vpop.permute.xlu0 %4235
      %4237 = vrot.lane.b32.xlu0 %v390, 127
      %v4238 = vpop.permute.xlu0 %4237
      %4239 = vrot.lane.b32.xlu0 %v395, 127
      %v4240 = vpop.permute.xlu0 %4239
      %4241 = vrot.lane.b32.xlu0 %v400, 127
      %v4242 = vpop.permute.xlu0 %4241
      %4243 = vrot.lane.b32.xlu0 %v405, 127
      %v4244 = vpop.permute.xlu0 %4243
      %4245 = vrot.lane.b32.xlu0 %v410, 127
      %v4246 = vpop.permute.xlu0 %4245
      %4247 = vrot.lane.b32.xlu0 %v415, 127
      %v4248 = vpop.permute.xlu0 %4247
      %4249 = vrot.lane.b32.xlu0 %v420, 127
      %v4250 = vpop.permute.xlu0 %4249
      %4251 = vrot.lane.b32.xlu0 %v425, 127
      %v4252 = vpop.permute.xlu0 %4251
      %4253 = vrot.lane.b32.xlu0 %v430, 127
      %v4254 = vpop.permute.xlu0 %4253
      %4255 = vrot.lane.b32.xlu0 %v435, 127
      %v4256 = vpop.permute.xlu0 %4255
      %4257 = vrot.lane.b32.xlu0 %v440, 127
      %v4258 = vpop.permute.xlu0 %4257
      %4259 = vrot.lane.b32.xlu0 %v445, 127
      %v4260 = vpop.permute.xlu0 %4259
      %4261 = vrot.lane.b32.xlu0 %v450, 127
      %v4262 = vpop.permute.xlu0 %4261
      %4263 = vrot.lane.b32.xlu0 %v455, 127
      %v4264 = vpop.permute.xlu0 %4263
      %4265 = vrot.lane.b32.xlu0 %v460, 127
      %v4266 = vpop.permute.xlu0 %4265
      %4267 = vrot.lane.b32.xlu0 %v465, 127
      %v4268 = vpop.permute.xlu0 %4267
      %4269 = vrot.lane.b32.xlu0 %v470, 127
      %v4270 = vpop.permute.xlu0 %4269
      %4271 = vrot.lane.b32.xlu0 %v475, 127
      %v4272 = vpop.permute.xlu0 %4271
      %4273 = vrot.lane.b32.xlu0 %v480, 127
      %v4274 = vpop.permute.xlu0 %4273
      %4275 = vrot.lane.b32.xlu0 %v485, 127
      %v4276 = vpop.permute.xlu0 %4275
      %4277 = vrot.lane.b32.xlu0 %v490, 127
      %v4278 = vpop.permute.xlu0 %4277
      %4279 = vrot.lane.b32.xlu0 %v495, 127
      %v4280 = vpop.permute.xlu0 %4279
      %4281 = vrot.lane.b32.xlu0 %v500, 127
      %v4282 = vpop.permute.xlu0 %4281
      %v4315 = vmul.f32 %v345, %v4220
      %v4316 = vmul.f32 %v350, %v4222
      %v4317 = vmul.f32 %v355, %v4224
      %v4318 = vmul.f32 %v360, %v4226
      %v4319 = vmul.f32 %v365, %v4228
      %v4320 = vmul.f32 %v370, %v4230
      %v4321 = vmul.f32 %v375, %v4232
      %v4322 = vmul.f32 %v380, %v4234
      %v4323 = vmul.f32 %v385, %v4236
      %v4324 = vmul.f32 %v390, %v4238
      %v4325 = vmul.f32 %v395, %v4240
      %v4326 = vmul.f32 %v400, %v4242
      %v4327 = vmul.f32 %v405, %v4244
      %v4328 = vmul.f32 %v410, %v4246
      %v4329 = vmul.f32 %v415, %v4248
      %v4330 = vmul.f32 %v420, %v4250
      %v4331 = vmul.f32 %v425, %v4252
      %v4332 = vmul.f32 %v430, %v4254
      %v4333 = vmul.f32 %v435, %v4256
      %v4334 = vmul.f32 %v440, %v4258
      %v4335 = vmul.f32 %v445, %v4260
      %v4336 = vmul.f32 %v450, %v4262
      %v4337 = vmul.f32 %v455, %v4264
      %v4338 = vmul.f32 %v460, %v4266
      %v4339 = vmul.f32 %v465, %v4268
      %v4340 = vmul.f32 %v470, %v4270
      %v4341 = vmul.f32 %v475, %v4272
      %v4342 = vmul.f32 %v480, %v4274
      %v4343 = vmul.f32 %v485, %v4276
      %v4344 = vmul.f32 %v490, %v4278
      %v4345 = vmul.f32 %v495, %v4280
      %v4346 = vmul.f32 %v500, %v4282
      %vm4347 = vcmask 39968
      %4348 = vst.msk [vmem:[%s145] sm:$0xff] %vm4347, %v4315
      %4349 = vst.msk [vmem:[%s145 + $0x8] sm:$0xff] %vm4347, %v4316
      %4350 = vst.msk [vmem:[%s145 + $0x10] sm:$0xff] %vm4347, %v4317
      %4351 = vst.msk [vmem:[%s145 + $0x18] sm:$0xff] %vm4347, %v4318
      %4352 = vst.msk [vmem:[%s145 + $0x20] sm:$0xff] %vm4347, %v4319
      %4353 = vst.msk [vmem:[%s145 + $0x28] sm:$0xff] %vm4347, %v4320
      %4354 = vst.msk [vmem:[%s145 + $0x30] sm:$0xff] %vm4347, %v4321
      %4355 = vst.msk [vmem:[%s145 + $0x38] sm:$0xff] %vm4347, %v4322
      %4356 = vst.msk [vmem:[%s145 + $0x40] sm:$0xff] %vm4347, %v4323
      %4357 = vst.msk [vmem:[%s145 + $0x48] sm:$0xff] %vm4347, %v4324
      %4358 = vst.msk [vmem:[%s145 + $0x50] sm:$0xff] %vm4347, %v4325
      %4359 = vst.msk [vmem:[%s145 + $0x58] sm:$0xff] %vm4347, %v4326
      %4360 = vst.msk [vmem:[%s145 + $0x60] sm:$0xff] %vm4347, %v4327
      %4361 = vst.msk [vmem:[%s145 + $0x68] sm:$0xff] %vm4347, %v4328
      %4362 = vst.msk [vmem:[%s145 + $0x70] sm:$0xff] %vm4347, %v4329
      %4363 = vst.msk [vmem:[%s145 + $0x78] sm:$0xff] %vm4347, %v4330
      %4364 = vst.msk [vmem:[%s145 + $0x80] sm:$0xff] %vm4347, %v4331
      %4365 = vst.msk [vmem:[%s145 + $0x88] sm:$0xff] %vm4347, %v4332
      %4366 = vst.msk [vmem:[%s145 + $0x90] sm:$0xff] %vm4347, %v4333
      %4367 = vst.msk [vmem:[%s145 + $0x98] sm:$0xff] %vm4347, %v4334
      %4368 = vst.msk [vmem:[%s145 + $0xa0] sm:$0xff] %vm4347, %v4335
      %4369 = vst.msk [vmem:[%s145 + $0xa8] sm:$0xff] %vm4347, %v4336
      %4370 = vst.msk [vmem:[%s145 + $0xb0] sm:$0xff] %vm4347, %v4337
      %4371 = vst.msk [vmem:[%s145 + $0xb8] sm:$0xff] %vm4347, %v4338
      %4372 = vst.msk [vmem:[%s145 + $0xc0] sm:$0xff] %vm4347, %v4339
      %4373 = vst.msk [vmem:[%s145 + $0xc8] sm:$0xff] %vm4347, %v4340
      %4374 = vst.msk [vmem:[%s145 + $0xd0] sm:$0xff] %vm4347, %v4341
      %4375 = vst.msk [vmem:[%s145 + $0xd8] sm:$0xff] %vm4347, %v4342
      %4376 = vst.msk [vmem:[%s145 + $0xe0] sm:$0xff] %vm4347, %v4343
      %4377 = vst.msk [vmem:[%s145 + $0xe8] sm:$0xff] %vm4347, %v4344
      %4378 = vst.msk [vmem:[%s145 + $0xf0] sm:$0xff] %vm4347, %v4345
      %4379 = vst.msk [vmem:[%s145 + $0xf8] sm:$0xff] %vm4347, %v4346
      %s4380 = smul.u32 32, %s13
      %p4381 = scmp.lt.s32.totalorder %s4380, 127
      %s4382 = scalar_select %p4381, %s4380, 127
      %s4383 = smul.addr %s4382, 8
      %s4384 = scalar_lea.vmem %s2, %s4383
      // Predicated region
      $region29: #{tpu_custom_call.1} parent=27 // pred_check
        %p4385 = pneg %p78
      $region30: #{tpu_custom_call.1} parent=27 // pred_check_branch
        %4387 = sbr.rel (%p4385) target = $region32
      $region31: #{tpu_custom_call.1} parent=27 // pred_region
        %s4388 = smul.u32 32, %s13
      $region32: #{tpu_custom_call.1} parent=27 // pred_fallthru
        _
    $region28: #{tpu_custom_call.1} parent=5 // pred_fallthru
      _
    %p4389 = scmp.le.s32.totalorder 2, %s8
    // Predicated region
    $region33: #{tpu_custom_call.1} parent=5 // pred_check
      %p4390 = pneg %p4389
    $region34: #{tpu_custom_call.1} parent=5 // pred_check_branch
      %4392 = sbr.rel (%p4390) target = $region36
    $region35: #{tpu_custom_call.1} parent=5 // pred_region
      %s4393 = ssub.s32 %s8, 2
      // Predicated region
      $region37: #{tpu_custom_call.1} parent=35 // pred_check
        %p4394 = pneg %p84
      $region38: #{tpu_custom_call.1} parent=35 // pred_check_branch
        %4396 = sbr.rel (%p4394) target = $region40
      $region39: #{tpu_custom_call.1} parent=35 // pred_region
        %s4397 = smul.u32 32, %s14
        %p4398 = scmp.lt.s32.totalorder %s4397, 127
        %s4399 = scalar_select %p4398, %s4397, 127
        %s4400 = smul.addr %s4399, 8
        %s4401 = scalar_lea.vmem %s2, %s4400
      $region40: #{tpu_custom_call.1} parent=35 // pred_fallthru
        _
    $region36: #{tpu_custom_call.1} parent=5 // pred_fallthru
      _
  $region6: #{tpu_custom_call.1} parent=0 // loop_footer
    %s12 = sadd.s32 1, %s8
  $region7: #{tpu_custom_call.1} parent=0 // loop_footer_branch
    %7 = sbr.rel target = $region3
  $region8: #{tpu_custom_call.1} parent=0 // loop_exit
    _

</llo_original>
